<compile_context>
chip_gen: v5e
topology: v5e:2x2
jax: 0.10.0
libtpu: 0.0.40
codegen_flags: <defaults>
</compile_context>

<pallas_src>
import math
import jax
import jax.numpy as jnp
from jax.experimental import pallas as pl
from jax.experimental.pallas import tpu as pltpu


# ----------------------------------------------------------------------------
# Fused per-timestep kernel (runs once per grid step t).
# ----------------------------------------------------------------------------
def _grcu_gin_kernel(
        a_t_ref, feat_ref, mask_ref,
        w1_init_ref, w2_init_ref, w3_init_ref,
        sc1_ref, wg1_ref, ug1_ref, bg1_ref,
        sc2_ref, wg2_ref, ug2_ref, bg2_ref,
        sc3_ref, wg3_ref, ug3_ref, bg3_ref,
        out_ref,
        w1_s, w2_s, w3_s, z0_s, z1_s, z2_s):
    t = pl.program_id(0)

    # Load the initial GIN weights into the resident VMEM carries at t == 0.
    @pl.when(t == 0)
    def _():
        w1_s[...] = w1_init_ref[...]
        w2_s[...] = w2_init_ref[...]
        w3_s[...] = w3_init_ref[...]

    N = feat_ref.shape[0]
    mask = mask_ref[...]                                       # [1, N] (lane-dense)
    iota = jax.lax.broadcasted_iota(jnp.int32, (1, N), 1)

    # ---- GIN 'sum' aggregation, eps fixed at 0 (not learned): Z0 = feat + A^T @ feat.
    # A is passed pre-transposed (bf16, exact for 0/1 edges) so this is a plain matmul.
    feat = feat_ref[...]
    a_t = a_t_ref[...].astype(jnp.float32)
    z0 = feat + jnp.dot(a_t, feat, preferred_element_type=jnp.float32)
    z0_s[...] = z0

    def topk_scores(scorer_row, z):
        # scores = (Z @ scorer) / ||scorer|| + mask, emitted lane-dense as [1, N].
        inv_norm = jax.lax.rsqrt(jnp.sum(scorer_row * scorer_row))
        s = jax.lax.dot_general(scorer_row, z,
                                dimension_numbers=(((1,), (1,)), ((), ())),
                                preferred_element_type=jnp.float32)    # [1, N]
        return s * inv_norm + mask

    def evolve_and_project(z_s_ref, z, scorer_row, q_ref, wg_ref, ug_ref, bg_ref):
        """TopK select + mat_GRU_cell (stacked gates) + relu(Z @ new_Q). Updates q_ref."""
        rows, cols = q_ref.shape

        # ---- in-kernel TopK: cols iterations of argmax (descending value order, lowest index
        # wins ties, matching lax.top_k) + dynamic-slice row gather from VMEM scratch.
        # TODO(synk): pad_with_last_val branch (fewer than k finite scores) is not handled;
        #             masks are assumed finite here.
        s = topk_scores(scorer_row, z)
        gathered = []
        for _ in range(cols):
            m = jnp.max(s, axis=1, keepdims=True)                       # [1, 1]
            idx = jnp.min(jnp.where(s == m, iota, N))                   # scalar int32
            row = z_s_ref[pl.ds(idx, 1), :] * jnp.tanh(m)               # [1, rows]
            gathered.append(row)
            s = jnp.where(iota == idx, float("-inf"), s)
        x_t = jnp.concatenate(gathered, axis=0)                         # [cols, rows] == x^T

        # ---- mat_GRU_cell with stacked gates (update | reset | htilda along sublanes).
        q = q_ref[...]                                                  # [rows, cols]
        w = wg_ref[...]                                                 # [3*rows, rows]
        u = ug_ref[...]                                                 # [3*rows, rows]
        b = bg_ref[...]                                                 # [3*rows, cols]
        wx = jax.lax.dot_general(w, x_t,
                                 dimension_numbers=(((1,), (1,)), ((), ())),
                                 preferred_element_type=jnp.float32)    # [3*rows, cols]
        uq = jnp.dot(u[:2 * rows], q, preferred_element_type=jnp.float32)
        update = jax.nn.sigmoid(wx[:rows] + uq[:rows] + b[:rows])
        reset = jax.nn.sigmoid(wx[rows:2 * rows] + uq[rows:2 * rows] + b[rows:2 * rows])
        h_cap = jnp.tanh(wx[2 * rows:]
                         + jnp.dot(u[2 * rows:], reset * q,
                                   preferred_element_type=jnp.float32)
                         + b[2 * rows:])
        new_q = (1.0 - update) * q + update * h_cap
        q_ref[...] = new_q                                              # carried to step t+1

        # args.activation taken to be ReLU.
        return jnp.maximum(jnp.dot(z, new_q, preferred_element_type=jnp.float32), 0.0)

    z1 = evolve_and_project(z0_s, z0, sc1_ref[...], w1_s, wg1_ref, ug1_ref, bg1_ref)
    z1_s[...] = z1
    z2 = evolve_and_project(z1_s, z1, sc2_ref[...], w2_s, wg2_ref, ug2_ref, bg2_ref)
    z2_s[...] = z2
    z3 = evolve_and_project(z2_s, z2, sc3_ref[...], w3_s, wg3_ref, ug3_ref, bg3_ref)
    out_ref[...] = z3


def _cost_estimate(T, N, fin, fout):
    def cell_flops(r, c):
        return 2 * 3 * r * r * c + 2 * 3 * r * r * c + 12 * r * c       # Wx + U dots + gates
    flops = T * (2 * N * N * fin + N * fin                               # GIN aggregation
                 + 2 * N * (fin + 2 * fout) + 3 * N                      # score rows
                 + cell_flops(fin, fout) + 2 * cell_flops(fout, fout)
                 + 2 * N * fout * (fin + 2 * fout))                      # Z @ new_Q (x3)
    transcendentals = T * (3 * fout * fin + 6 * fout * fout + 3 * fout)
    bytes_accessed = (T * (2 * N * N + 4 * N * fin + 4 * N + 4 * N * fout)
                      + 4 * (fin * fout + 2 * fout * fout)
                      + 4 * (fin + 2 * fout)
                      + 4 * (6 * fin * fin + 3 * fin * fout)
                      + 4 * 2 * (6 * fout * fout + 3 * fout * fout))
    return pl.CostEstimate(flops=int(flops), transcendentals=int(transcendentals),
                           bytes_accessed=int(bytes_accessed))


# ----------------------------------------------------------------------------
# Forward: one pallas_call with grid=(T,), W1/W2/W3 resident in VMEM across steps.
# ----------------------------------------------------------------------------
@jax.jit
def grcu_gin_forward(params, A_stack, feat_stack, mask_stack):
    """A_stack: [T,N,N], feat_stack: [T,N,in_feats], mask_stack: [T,N,1].
    Returns stacked per-timestep embeddings [T, N, out_feats]."""
    T, N, _ = A_stack.shape
    fin = feat_stack.shape[-1]
    fout = params['GIN_W1'].shape[-1]

    # Pre-transpose once (neigh = A^T @ feat); bf16 is exact for 0/1 adjacency and halves
    # the dominant HBM traffic.  Masks become lane-dense [T, 1, N] rows.
    A_T = jnp.swapaxes(A_stack, 1, 2).astype(jnp.bfloat16)
    mask_row = jnp.swapaxes(mask_stack, 1, 2)
    c1, c2, c3 = params['cell1'], params['cell2'], params['cell3']

    grid_spec = pltpu.PrefetchScalarGridSpec(
        num_scalar_prefetch=0,
        grid=(T,),
        in_specs=[
            # per-timestep blocks (pipelined/double-buffered against compute)
            pl.BlockSpec((None, N, N), lambda t: (t, 0, 0)),        # A_T[t]  (bf16)
            pl.BlockSpec((None, N, fin), lambda t: (t, 0, 0)),      # feat[t]
            pl.BlockSpec((None, 1, N), lambda t: (t, 0, 0)),        # mask row[t]
            # constant blocks: fetched once (block index never changes)
            pl.BlockSpec((fin, fout), lambda t: (0, 0)),            # GIN_W1 init
            pl.BlockSpec((fout, fout), lambda t: (0, 0)),           # GIN_W2 init
            pl.BlockSpec((fout, fout), lambda t: (0, 0)),           # GIN_W3 init
            pl.BlockSpec((1, fin), lambda t: (0, 0)),               # cell1 scorer
            pl.BlockSpec((3 * fin, fin), lambda t: (0, 0)),         # cell1 W (stacked gates)
            pl.BlockSpec((3 * fin, fin), lambda t: (0, 0)),         # cell1 U
            pl.BlockSpec((3 * fin, fout), lambda t: (0, 0)),        # cell1 b
            pl.BlockSpec((1, fout), lambda t: (0, 0)),              # cell2 scorer
            pl.BlockSpec((3 * fout, fout), lambda t: (0, 0)),       # cell2 W
            pl.BlockSpec((3 * fout, fout), lambda t: (0, 0)),       # cell2 U
            pl.BlockSpec((3 * fout, fout), lambda t: (0, 0)),       # cell2 b
            pl.BlockSpec((1, fout), lambda t: (0, 0)),              # cell3 scorer
            pl.BlockSpec((3 * fout, fout), lambda t: (0, 0)),       # cell3 W
            pl.BlockSpec((3 * fout, fout), lambda t: (0, 0)),       # cell3 U
            pl.BlockSpec((3 * fout, fout), lambda t: (0, 0)),       # cell3 b
        ],
        out_specs=pl.BlockSpec((None, N, fout), lambda t: (t, 0, 0)),
        scratch_shapes=[
            pltpu.VMEM((fin, fout), jnp.float32),   # evolved W1 (carried across t)
            pltpu.VMEM((fout, fout), jnp.float32),  # evolved W2
            pltpu.VMEM((fout, fout), jnp.float32),  # evolved W3
            pltpu.VMEM((N, fin), jnp.float32),      # Z0 (for row gather)
            pltpu.VMEM((N, fout), jnp.float32),     # Z1
            pltpu.VMEM((N, fout), jnp.float32),     # Z2
        ],
    )

    return pl.pallas_call(
        _grcu_gin_kernel,
        out_shape=jax.ShapeDtypeStruct((T, N, fout), jnp.float32),
        grid_spec=grid_spec,
        compiler_params=pltpu.CompilerParams(
            dimension_semantics=("arbitrary",),            # W carries => sequential over T
            vmem_limit_bytes=48 * 1024 * 1024,             # above defaults, < v7x 64 MiB
        ),
        cost_estimate=_cost_estimate(T, N, fin, fout),
    )(A_T, feat_stack, mask_row,
      params['GIN_W1'], params['GIN_W2'], params['GIN_W3'],
      c1['scorer'], c1['W'], c1['U'], c1['b'],
      c2['scorer'], c2['W'], c2['U'], c2['b'],
      c3['scorer'], c3['W'], c3['U'], c3['b'])


# ----------------------------------------------------------------------------
# Deterministic parameter init (mirrors the PyTorch __init__ shapes; gates stacked).
# ----------------------------------------------------------------------------
def _uniform(key, shape, stdv):
    return jax.random.uniform(key, shape, jnp.float32, minval=-stdv, maxval=stdv)


def _init_cell(key, rows, cols):
    # 3 gates (update, reset, htilda) stacked along dim 0: W/U [3*rows, rows], b [3*rows, cols].
    keys = jax.random.split(key, 7)
    stdv = 1.0 / math.sqrt(rows)
    W = jnp.concatenate([_uniform(keys[i], (rows, rows), stdv) for i in range(3)], axis=0)
    U = jnp.concatenate([_uniform(keys[3 + i], (rows, rows), stdv) for i in range(3)], axis=0)
    b = jnp.zeros((3 * rows, cols), jnp.float32)
    scorer = _uniform(keys[6], (1, rows), 1.0 / math.sqrt(rows))   # lane-dense [1, rows]
    return dict(W=W, U=U, b=b, scorer=scorer)


def init_params(key, in_feats, out_feats):
    ks = jax.random.split(key, 9)
    return dict(
        cell1=_init_cell(ks[0], in_feats, out_feats),
        cell2=_init_cell(ks[1], out_feats, out_feats),
        cell3=_init_cell(ks[2], out_feats, out_feats),
        GIN_W1=_uniform(ks[3], (in_feats, out_feats), 1.0 / math.sqrt(out_feats)),
        W1_bias=_uniform(ks[4], (out_feats,), 1.0 / math.sqrt(out_feats)),   # unused in fwd (as in PyTorch)
        GIN_W2=_uniform(ks[5], (out_feats, out_feats), 1.0 / math.sqrt(out_feats)),
        W2_bias=_uniform(ks[6], (out_feats,), 1.0 / math.sqrt(out_feats)),
        GIN_W3=_uniform(ks[7], (out_feats, out_feats), 1.0 / math.sqrt(out_feats)),
        W3_bias=_uniform(ks[8], (out_feats,), 1.0 / math.sqrt(out_feats)),
    )


# ----------------------------------------------------------------------------
if __name__ == "__main__":
    key = jax.random.PRNGKey(0)
    N, in_feats, out_feats, T = 16, 16, 8, 3

    k_params, k_adj, k_feat = jax.random.split(key, 3)
    params = init_params(k_params, in_feats, out_feats)

    adj_keys = jax.random.split(k_adj, T)
    feat_keys = jax.random.split(k_feat, T)
    A_stack = jnp.stack(
        [(jax.random.uniform(adj_keys[t], (N, N)) < 0.3).astype(jnp.float32) for t in range(T)])
    Z_stack = jnp.stack(
        [jax.random.normal(feat_keys[t], (N, in_feats), dtype=jnp.float32) for t in range(T)])
    mask_stack = jnp.zeros((T, N, 1), jnp.float32)   # finite mask (no -inf / padding path)

    out_seq = jax.block_until_ready(grcu_gin_forward(params, A_stack, Z_stack, mask_stack))

    assert out_seq.shape == (T, N, out_feats)
    assert bool(jnp.all(jnp.isfinite(out_seq)))
    print("KERNEL_OK")
</pallas_src>

<mosaic_0001>
module attributes {stable_mosaic.version = 11 : i64} {
  func.func @_grcu_gin_kernel(%arg0: i32, %arg1: memref<1x16x16xbf16, #tpu.memory_space<vmem>>, %arg2: memref<1x16x16xf32, #tpu.memory_space<vmem>>, %arg3: memref<1x1x16xf32, #tpu.memory_space<vmem>>, %arg4: memref<16x8xf32, #tpu.memory_space<vmem>>, %arg5: memref<8x8xf32, #tpu.memory_space<vmem>>, %arg6: memref<8x8xf32, #tpu.memory_space<vmem>>, %arg7: memref<1x16xf32, #tpu.memory_space<vmem>>, %arg8: memref<48x16xf32, #tpu.memory_space<vmem>>, %arg9: memref<48x16xf32, #tpu.memory_space<vmem>>, %arg10: memref<48x8xf32, #tpu.memory_space<vmem>>, %arg11: memref<1x8xf32, #tpu.memory_space<vmem>>, %arg12: memref<24x8xf32, #tpu.memory_space<vmem>>, %arg13: memref<24x8xf32, #tpu.memory_space<vmem>>, %arg14: memref<24x8xf32, #tpu.memory_space<vmem>>, %arg15: memref<1x8xf32, #tpu.memory_space<vmem>>, %arg16: memref<24x8xf32, #tpu.memory_space<vmem>>, %arg17: memref<24x8xf32, #tpu.memory_space<vmem>>, %arg18: memref<24x8xf32, #tpu.memory_space<vmem>>, %arg19: memref<1x16x8xf32, #tpu.memory_space<vmem>>, %arg20: memref<16x8xf32, #tpu.memory_space<vmem>>, %arg21: memref<8x8xf32, #tpu.memory_space<vmem>>, %arg22: memref<8x8xf32, #tpu.memory_space<vmem>>, %arg23: memref<16x16xf32, #tpu.memory_space<vmem>>, %arg24: memref<16x8xf32, #tpu.memory_space<vmem>>, %arg25: memref<16x8xf32, #tpu.memory_space<vmem>>) attributes {dimension_semantics = [#tpu.dimension_semantics<arbitrary>], iteration_bounds = array<i64: 3>, scalar_prefetch = 0 : i64, scratch_operands = 6 : i64, tpu.core_type = #tpu.core_type<tc>, window_params = [{transform_indices = @transform_0, window_bounds = array<i64: 1, 16, 16>}, {transform_indices = @transform_1, window_bounds = array<i64: 1, 16, 16>}, {transform_indices = @transform_2, window_bounds = array<i64: 1, 1, 16>}, {pipeline_mode = #tpu.pipeline_mode<synchronous>, transform_indices = @transform_3, window_bounds = array<i64: 16, 8>}, {pipeline_mode = #tpu.pipeline_mode<synchronous>, transform_indices = @transform_4, window_bounds = array<i64: 8, 8>}, {pipeline_mode = #tpu.pipeline_mode<synchronous>, transform_indices = @transform_5, window_bounds = array<i64: 8, 8>}, {pipeline_mode = #tpu.pipeline_mode<synchronous>, transform_indices = @transform_6, window_bounds = array<i64: 1, 16>}, {pipeline_mode = #tpu.pipeline_mode<synchronous>, transform_indices = @transform_7, window_bounds = array<i64: 48, 16>}, {pipeline_mode = #tpu.pipeline_mode<synchronous>, transform_indices = @transform_8, window_bounds = array<i64: 48, 16>}, {pipeline_mode = #tpu.pipeline_mode<synchronous>, transform_indices = @transform_9, window_bounds = array<i64: 48, 8>}, {pipeline_mode = #tpu.pipeline_mode<synchronous>, transform_indices = @transform_10, window_bounds = array<i64: 1, 8>}, {pipeline_mode = #tpu.pipeline_mode<synchronous>, transform_indices = @transform_11, window_bounds = array<i64: 24, 8>}, {pipeline_mode = #tpu.pipeline_mode<synchronous>, transform_indices = @transform_12, window_bounds = array<i64: 24, 8>}, {pipeline_mode = #tpu.pipeline_mode<synchronous>, transform_indices = @transform_13, window_bounds = array<i64: 24, 8>}, {pipeline_mode = #tpu.pipeline_mode<synchronous>, transform_indices = @transform_14, window_bounds = array<i64: 1, 8>}, {pipeline_mode = #tpu.pipeline_mode<synchronous>, transform_indices = @transform_15, window_bounds = array<i64: 24, 8>}, {pipeline_mode = #tpu.pipeline_mode<synchronous>, transform_indices = @transform_16, window_bounds = array<i64: 24, 8>}, {pipeline_mode = #tpu.pipeline_mode<synchronous>, transform_indices = @transform_17, window_bounds = array<i64: 24, 8>}, {transform_indices = @transform_18, window_bounds = array<i64: 1, 16, 8>}]} {
    %c0_i32 = arith.constant 0 : i32
    %0 = arith.cmpi eq, %arg0, %c0_i32 : i32
    %1 = arith.extui %0 : i1 to i32
    %c0_i32_0 = arith.constant 0 : i32
    %2 = arith.cmpi ne, %1, %c0_i32_0 : i32
    scf.if %2 {
      %c0_200 = arith.constant 0 : index
      %c0_201 = arith.constant 0 : index
      %631 = vector.load %arg4[%c0_200, %c0_201] : memref<16x8xf32, #tpu.memory_space<vmem>>, vector<16x8xf32>
      %c0_202 = arith.constant 0 : index
      %c0_203 = arith.constant 0 : index
      %632 = vector.load %arg20[%c0_202, %c0_203] : memref<16x8xf32, #tpu.memory_space<vmem>>, vector<16x8xf32>
      tpu.vector_store %arg20[%c0_202, %c0_203], %631 {strides = array<i32>} : memref<16x8xf32, #tpu.memory_space<vmem>>, vector<16x8xf32>,
      %c0_204 = arith.constant 0 : index
      %c0_205 = arith.constant 0 : index
      %633 = vector.load %arg5[%c0_204, %c0_205] : memref<8x8xf32, #tpu.memory_space<vmem>>, vector<8x8xf32>
      %c0_206 = arith.constant 0 : index
      %c0_207 = arith.constant 0 : index
      %634 = vector.load %arg21[%c0_206, %c0_207] : memref<8x8xf32, #tpu.memory_space<vmem>>, vector<8x8xf32>
      tpu.vector_store %arg21[%c0_206, %c0_207], %633 {strides = array<i32>} : memref<8x8xf32, #tpu.memory_space<vmem>>, vector<8x8xf32>,
      %c0_208 = arith.constant 0 : index
      %c0_209 = arith.constant 0 : index
      %635 = vector.load %arg6[%c0_208, %c0_209] : memref<8x8xf32, #tpu.memory_space<vmem>>, vector<8x8xf32>
      %c0_210 = arith.constant 0 : index
      %c0_211 = arith.constant 0 : index
      %636 = vector.load %arg22[%c0_210, %c0_211] : memref<8x8xf32, #tpu.memory_space<vmem>>, vector<8x8xf32>
      tpu.vector_store %arg22[%c0_210, %c0_211], %635 {strides = array<i32>} : memref<8x8xf32, #tpu.memory_space<vmem>>, vector<8x8xf32>,
    } else {
    }
    %c0 = arith.constant 0 : index
    %c0_1 = arith.constant 0 : index
    %c0_2 = arith.constant 0 : index
    %3 = vector.load %arg3[%c0, %c0_1, %c0_2] : memref<1x1x16xf32, #tpu.memory_space<vmem>>, vector<1x1x16xf32>
    %4 = vector.shape_cast %3 : vector<1x1x16xf32> to vector<1x16xf32>
    %5 = tpu.iota {dimensions = array<i32: 1>} : vector<1x16xi32>
    %c0_3 = arith.constant 0 : index
    %c0_4 = arith.constant 0 : index
    %c0_5 = arith.constant 0 : index
    %6 = vector.load %arg2[%c0_3, %c0_4, %c0_5] : memref<1x16x16xf32, #tpu.memory_space<vmem>>, vector<1x16x16xf32>
    %7 = vector.shape_cast %6 : vector<1x16x16xf32> to vector<16x16xf32>
    %c0_6 = arith.constant 0 : index
    %c0_7 = arith.constant 0 : index
    %c0_8 = arith.constant 0 : index
    %8 = vector.load %arg1[%c0_6, %c0_7, %c0_8] : memref<1x16x16xbf16, #tpu.memory_space<vmem>>, vector<1x16x16xbf16>
    %9 = vector.shape_cast %8 : vector<1x16x16xbf16> to vector<16x16xbf16>
    %10 = arith.extf %9 : vector<16x16xbf16> to vector<16x16xf32>
    %cst = arith.constant dense<0.000000e+00> : vector<16x16xf32>
    %11 = tpu.matmul %10, %7, %cst {dimension_numbers = #tpu.dot_dimension_numbers<[1], [0], [0], [1], [0, 0, 1, 1], [], []>} : vector<16x16xf32>, vector<16x16xf32>, vector<16x16xf32> -> vector<16x16xf32>
    %12 = arith.addf %7, %11 : vector<16x16xf32>
    %c0_9 = arith.constant 0 : index
    %c0_10 = arith.constant 0 : index
    %13 = vector.load %arg23[%c0_9, %c0_10] : memref<16x16xf32, #tpu.memory_space<vmem>>, vector<16x16xf32>
    tpu.vector_store %arg23[%c0_9, %c0_10], %12 {strides = array<i32>} : memref<16x16xf32, #tpu.memory_space<vmem>>, vector<16x16xf32>,
    %c0_11 = arith.constant 0 : index
    %c0_12 = arith.constant 0 : index
    %14 = vector.load %arg7[%c0_11, %c0_12] : memref<1x16xf32, #tpu.memory_space<vmem>>, vector<1x16xf32>
    %15 = arith.mulf %14, %14 : vector<1x16xf32>
    %16 = vector.shape_cast %15 : vector<1x16xf32> to vector<1x1x16xf32>
    %cst_13 = arith.constant dense<0.000000e+00> : vector<1xf32>
    %17 = vector.multi_reduction <add>, %16, %cst_13 [1, 2] : vector<1x1x16xf32> to vector<1xf32>
    %18 = vector.shape_cast %17 : vector<1xf32> to vector<1x1x1xf32>
    %19 = vector.extract %18[0, 0, 0] : f32 from vector<1x1x1xf32>
    %20 = math.rsqrt %19 : f32
    %cst_14 = arith.constant dense<0.000000e+00> : vector<1x16xf32>
    %21 = tpu.matmul %14, %12, %cst_14 {dimension_numbers = #tpu.dot_dimension_numbers<[1], [1], [0], [0], [0, 0, 1, 0], [], []>} : vector<1x16xf32>, vector<16x16xf32>, vector<1x16xf32> -> vector<1x16xf32>
    %22 = vector.broadcast %20 : f32 to vector<1x16xf32>
    %23 = arith.mulf %21, %22 : vector<1x16xf32>
    %24 = arith.addf %23, %4 : vector<1x16xf32>
    %cst_15 = arith.constant dense<0xFF800000> : vector<1xf32>
    %25 = vector.multi_reduction <maximumf>, %24, %cst_15 [1] : vector<1x16xf32> to vector<1xf32>
    %26 = vector.shape_cast %25 : vector<1xf32> to vector<1x1xf32>
    %27 = vector.broadcast %26 : vector<1x1xf32> to vector<1x16xf32>
    %28 = arith.cmpf oeq, %24, %27 : vector<1x16xf32>
    %c16_i32 = arith.constant 16 : i32
    %29 = vector.broadcast %c16_i32 : i32 to vector<1x16xi32>
    %30 = arith.select %28, %5, %29 : vector<1x16xi1>, vector<1x16xi32>
    %31 = vector.shape_cast %30 : vector<1x16xi32> to vector<1x1x16xi32>
    %cst_16 = arith.constant dense<2147483647> : vector<1xi32>
    %32 = vector.multi_reduction <minsi>, %31, %cst_16 [1, 2] : vector<1x1x16xi32> to vector<1xi32>
    %33 = vector.shape_cast %32 : vector<1xi32> to vector<1x1x1xi32>
    %34 = vector.extract %33[0, 0, 0] : i32 from vector<1x1x1xi32>
    %35 = arith.index_cast %34 : i32 to index
    %c0_17 = arith.constant 0 : index
    %36 = vector.load %arg23[%35, %c0_17] : memref<16x16xf32, #tpu.memory_space<vmem>>, vector<1x16xf32>
    %37 = math.tanh %26 : vector<1x1xf32>
    %38 = vector.broadcast %37 : vector<1x1xf32> to vector<1x16xf32>
    %39 = arith.mulf %36, %38 : vector<1x16xf32>
    %40 = vector.broadcast %34 : i32 to vector<1x16xi32>
    %41 = arith.cmpi eq, %5, %40 : vector<1x16xi32>
    %cst_18 = arith.constant 0xFF800000 : f32
    %42 = vector.broadcast %cst_18 : f32 to vector<1x16xf32>
    %43 = arith.select %41, %42, %24 : vector<1x16xi1>, vector<1x16xf32>
    %cst_19 = arith.constant dense<0xFF800000> : vector<1xf32>
    %44 = vector.multi_reduction <maximumf>, %43, %cst_19 [1] : vector<1x16xf32> to vector<1xf32>
    %45 = vector.shape_cast %44 : vector<1xf32> to vector<1x1xf32>
    %46 = vector.broadcast %45 : vector<1x1xf32> to vector<1x16xf32>
    %47 = arith.cmpf oeq, %43, %46 : vector<1x16xf32>
    %c16_i32_20 = arith.constant 16 : i32
    %48 = vector.broadcast %c16_i32_20 : i32 to vector<1x16xi32>
    %49 = arith.select %47, %5, %48 : vector<1x16xi1>, vector<1x16xi32>
    %50 = vector.shape_cast %49 : vector<1x16xi32> to vector<1x1x16xi32>
    %cst_21 = arith.constant dense<2147483647> : vector<1xi32>
    %51 = vector.multi_reduction <minsi>, %50, %cst_21 [1, 2] : vector<1x1x16xi32> to vector<1xi32>
    %52 = vector.shape_cast %51 : vector<1xi32> to vector<1x1x1xi32>
    %53 = vector.extract %52[0, 0, 0] : i32 from vector<1x1x1xi32>
    %54 = arith.index_cast %53 : i32 to index
    %c0_22 = arith.constant 0 : index
    %55 = vector.load %arg23[%54, %c0_22] : memref<16x16xf32, #tpu.memory_space<vmem>>, vector<1x16xf32>
    %56 = math.tanh %45 : vector<1x1xf32>
    %57 = vector.broadcast %56 : vector<1x1xf32> to vector<1x16xf32>
    %58 = arith.mulf %55, %57 : vector<1x16xf32>
    %59 = vector.broadcast %53 : i32 to vector<1x16xi32>
    %60 = arith.cmpi eq, %5, %59 : vector<1x16xi32>
    %cst_23 = arith.constant 0xFF800000 : f32
    %61 = vector.broadcast %cst_23 : f32 to vector<1x16xf32>
    %62 = arith.select %60, %61, %43 : vector<1x16xi1>, vector<1x16xf32>
    %cst_24 = arith.constant dense<0xFF800000> : vector<1xf32>
    %63 = vector.multi_reduction <maximumf>, %62, %cst_24 [1] : vector<1x16xf32> to vector<1xf32>
    %64 = vector.shape_cast %63 : vector<1xf32> to vector<1x1xf32>
    %65 = vector.broadcast %64 : vector<1x1xf32> to vector<1x16xf32>
    %66 = arith.cmpf oeq, %62, %65 : vector<1x16xf32>
    %c16_i32_25 = arith.constant 16 : i32
    %67 = vector.broadcast %c16_i32_25 : i32 to vector<1x16xi32>
    %68 = arith.select %66, %5, %67 : vector<1x16xi1>, vector<1x16xi32>
    %69 = vector.shape_cast %68 : vector<1x16xi32> to vector<1x1x16xi32>
    %cst_26 = arith.constant dense<2147483647> : vector<1xi32>
    %70 = vector.multi_reduction <minsi>, %69, %cst_26 [1, 2] : vector<1x1x16xi32> to vector<1xi32>
    %71 = vector.shape_cast %70 : vector<1xi32> to vector<1x1x1xi32>
    %72 = vector.extract %71[0, 0, 0] : i32 from vector<1x1x1xi32>
    %73 = arith.index_cast %72 : i32 to index
    %c0_27 = arith.constant 0 : index
    %74 = vector.load %arg23[%73, %c0_27] : memref<16x16xf32, #tpu.memory_space<vmem>>, vector<1x16xf32>
    %75 = math.tanh %64 : vector<1x1xf32>
    %76 = vector.broadcast %75 : vector<1x1xf32> to vector<1x16xf32>
    %77 = arith.mulf %74, %76 : vector<1x16xf32>
    %78 = vector.broadcast %72 : i32 to vector<1x16xi32>
    %79 = arith.cmpi eq, %5, %78 : vector<1x16xi32>
    %cst_28 = arith.constant 0xFF800000 : f32
    %80 = vector.broadcast %cst_28 : f32 to vector<1x16xf32>
    %81 = arith.select %79, %80, %62 : vector<1x16xi1>, vector<1x16xf32>
    %cst_29 = arith.constant dense<0xFF800000> : vector<1xf32>
    %82 = vector.multi_reduction <maximumf>, %81, %cst_29 [1] : vector<1x16xf32> to vector<1xf32>
    %83 = vector.shape_cast %82 : vector<1xf32> to vector<1x1xf32>
    %84 = vector.broadcast %83 : vector<1x1xf32> to vector<1x16xf32>
    %85 = arith.cmpf oeq, %81, %84 : vector<1x16xf32>
    %c16_i32_30 = arith.constant 16 : i32
    %86 = vector.broadcast %c16_i32_30 : i32 to vector<1x16xi32>
    %87 = arith.select %85, %5, %86 : vector<1x16xi1>, vector<1x16xi32>
    %88 = vector.shape_cast %87 : vector<1x16xi32> to vector<1x1x16xi32>
    %cst_31 = arith.constant dense<2147483647> : vector<1xi32>
    %89 = vector.multi_reduction <minsi>, %88, %cst_31 [1, 2] : vector<1x1x16xi32> to vector<1xi32>
    %90 = vector.shape_cast %89 : vector<1xi32> to vector<1x1x1xi32>
    %91 = vector.extract %90[0, 0, 0] : i32 from vector<1x1x1xi32>
    %92 = arith.index_cast %91 : i32 to index
    %c0_32 = arith.constant 0 : index
    %93 = vector.load %arg23[%92, %c0_32] : memref<16x16xf32, #tpu.memory_space<vmem>>, vector<1x16xf32>
    %94 = math.tanh %83 : vector<1x1xf32>
    %95 = vector.broadcast %94 : vector<1x1xf32> to vector<1x16xf32>
    %96 = arith.mulf %93, %95 : vector<1x16xf32>
    %97 = vector.broadcast %91 : i32 to vector<1x16xi32>
    %98 = arith.cmpi eq, %5, %97 : vector<1x16xi32>
    %cst_33 = arith.constant 0xFF800000 : f32
    %99 = vector.broadcast %cst_33 : f32 to vector<1x16xf32>
    %100 = arith.select %98, %99, %81 : vector<1x16xi1>, vector<1x16xf32>
    %cst_34 = arith.constant dense<0xFF800000> : vector<1xf32>
    %101 = vector.multi_reduction <maximumf>, %100, %cst_34 [1] : vector<1x16xf32> to vector<1xf32>
    %102 = vector.shape_cast %101 : vector<1xf32> to vector<1x1xf32>
    %103 = vector.broadcast %102 : vector<1x1xf32> to vector<1x16xf32>
    %104 = arith.cmpf oeq, %100, %103 : vector<1x16xf32>
    %c16_i32_35 = arith.constant 16 : i32
    %105 = vector.broadcast %c16_i32_35 : i32 to vector<1x16xi32>
    %106 = arith.select %104, %5, %105 : vector<1x16xi1>, vector<1x16xi32>
    %107 = vector.shape_cast %106 : vector<1x16xi32> to vector<1x1x16xi32>
    %cst_36 = arith.constant dense<2147483647> : vector<1xi32>
    %108 = vector.multi_reduction <minsi>, %107, %cst_36 [1, 2] : vector<1x1x16xi32> to vector<1xi32>
    %109 = vector.shape_cast %108 : vector<1xi32> to vector<1x1x1xi32>
    %110 = vector.extract %109[0, 0, 0] : i32 from vector<1x1x1xi32>
    %111 = arith.index_cast %110 : i32 to index
    %c0_37 = arith.constant 0 : index
    %112 = vector.load %arg23[%111, %c0_37] : memref<16x16xf32, #tpu.memory_space<vmem>>, vector<1x16xf32>
    %113 = math.tanh %102 : vector<1x1xf32>
    %114 = vector.broadcast %113 : vector<1x1xf32> to vector<1x16xf32>
    %115 = arith.mulf %112, %114 : vector<1x16xf32>
    %116 = vector.broadcast %110 : i32 to vector<1x16xi32>
    %117 = arith.cmpi eq, %5, %116 : vector<1x16xi32>
    %cst_38 = arith.constant 0xFF800000 : f32
    %118 = vector.broadcast %cst_38 : f32 to vector<1x16xf32>
    %119 = arith.select %117, %118, %100 : vector<1x16xi1>, vector<1x16xf32>
    %cst_39 = arith.constant dense<0xFF800000> : vector<1xf32>
    %120 = vector.multi_reduction <maximumf>, %119, %cst_39 [1] : vector<1x16xf32> to vector<1xf32>
    %121 = vector.shape_cast %120 : vector<1xf32> to vector<1x1xf32>
    %122 = vector.broadcast %121 : vector<1x1xf32> to vector<1x16xf32>
    %123 = arith.cmpf oeq, %119, %122 : vector<1x16xf32>
    %c16_i32_40 = arith.constant 16 : i32
    %124 = vector.broadcast %c16_i32_40 : i32 to vector<1x16xi32>
    %125 = arith.select %123, %5, %124 : vector<1x16xi1>, vector<1x16xi32>
    %126 = vector.shape_cast %125 : vector<1x16xi32> to vector<1x1x16xi32>
    %cst_41 = arith.constant dense<2147483647> : vector<1xi32>
    %127 = vector.multi_reduction <minsi>, %126, %cst_41 [1, 2] : vector<1x1x16xi32> to vector<1xi32>
    %128 = vector.shape_cast %127 : vector<1xi32> to vector<1x1x1xi32>
    %129 = vector.extract %128[0, 0, 0] : i32 from vector<1x1x1xi32>
    %130 = arith.index_cast %129 : i32 to index
    %c0_42 = arith.constant 0 : index
    %131 = vector.load %arg23[%130, %c0_42] : memref<16x16xf32, #tpu.memory_space<vmem>>, vector<1x16xf32>
    %132 = math.tanh %121 : vector<1x1xf32>
    %133 = vector.broadcast %132 : vector<1x1xf32> to vector<1x16xf32>
    %134 = arith.mulf %131, %133 : vector<1x16xf32>
    %135 = vector.broadcast %129 : i32 to vector<1x16xi32>
    %136 = arith.cmpi eq, %5, %135 : vector<1x16xi32>
    %cst_43 = arith.constant 0xFF800000 : f32
    %137 = vector.broadcast %cst_43 : f32 to vector<1x16xf32>
    %138 = arith.select %136, %137, %119 : vector<1x16xi1>, vector<1x16xf32>
    %cst_44 = arith.constant dense<0xFF800000> : vector<1xf32>
    %139 = vector.multi_reduction <maximumf>, %138, %cst_44 [1] : vector<1x16xf32> to vector<1xf32>
    %140 = vector.shape_cast %139 : vector<1xf32> to vector<1x1xf32>
    %141 = vector.broadcast %140 : vector<1x1xf32> to vector<1x16xf32>
    %142 = arith.cmpf oeq, %138, %141 : vector<1x16xf32>
    %c16_i32_45 = arith.constant 16 : i32
    %143 = vector.broadcast %c16_i32_45 : i32 to vector<1x16xi32>
    %144 = arith.select %142, %5, %143 : vector<1x16xi1>, vector<1x16xi32>
    %145 = vector.shape_cast %144 : vector<1x16xi32> to vector<1x1x16xi32>
    %cst_46 = arith.constant dense<2147483647> : vector<1xi32>
    %146 = vector.multi_reduction <minsi>, %145, %cst_46 [1, 2] : vector<1x1x16xi32> to vector<1xi32>
    %147 = vector.shape_cast %146 : vector<1xi32> to vector<1x1x1xi32>
    %148 = vector.extract %147[0, 0, 0] : i32 from vector<1x1x1xi32>
    %149 = arith.index_cast %148 : i32 to index
    %c0_47 = arith.constant 0 : index
    %150 = vector.load %arg23[%149, %c0_47] : memref<16x16xf32, #tpu.memory_space<vmem>>, vector<1x16xf32>
    %151 = math.tanh %140 : vector<1x1xf32>
    %152 = vector.broadcast %151 : vector<1x1xf32> to vector<1x16xf32>
    %153 = arith.mulf %150, %152 : vector<1x16xf32>
    %154 = vector.broadcast %148 : i32 to vector<1x16xi32>
    %155 = arith.cmpi eq, %5, %154 : vector<1x16xi32>
    %cst_48 = arith.constant 0xFF800000 : f32
    %156 = vector.broadcast %cst_48 : f32 to vector<1x16xf32>
    %157 = arith.select %155, %156, %138 : vector<1x16xi1>, vector<1x16xf32>
    %cst_49 = arith.constant dense<0xFF800000> : vector<1xf32>
    %158 = vector.multi_reduction <maximumf>, %157, %cst_49 [1] : vector<1x16xf32> to vector<1xf32>
    %159 = vector.shape_cast %158 : vector<1xf32> to vector<1x1xf32>
    %160 = vector.broadcast %159 : vector<1x1xf32> to vector<1x16xf32>
    %161 = arith.cmpf oeq, %157, %160 : vector<1x16xf32>
    %c16_i32_50 = arith.constant 16 : i32
    %162 = vector.broadcast %c16_i32_50 : i32 to vector<1x16xi32>
    %163 = arith.select %161, %5, %162 : vector<1x16xi1>, vector<1x16xi32>
    %164 = vector.shape_cast %163 : vector<1x16xi32> to vector<1x1x16xi32>
    %cst_51 = arith.constant dense<2147483647> : vector<1xi32>
    %165 = vector.multi_reduction <minsi>, %164, %cst_51 [1, 2] : vector<1x1x16xi32> to vector<1xi32>
    %166 = vector.shape_cast %165 : vector<1xi32> to vector<1x1x1xi32>
    %167 = vector.extract %166[0, 0, 0] : i32 from vector<1x1x1xi32>
    %168 = arith.index_cast %167 : i32 to index
    %c0_52 = arith.constant 0 : index
    %169 = vector.load %arg23[%168, %c0_52] : memref<16x16xf32, #tpu.memory_space<vmem>>, vector<1x16xf32>
    %170 = math.tanh %159 : vector<1x1xf32>
    %171 = vector.broadcast %170 : vector<1x1xf32> to vector<1x16xf32>
    %172 = arith.mulf %169, %171 : vector<1x16xf32>
    %173 = tpu.concatenate %39, %58, %77, %96, %115, %134, %153, %172 in 0 : vector<1x16xf32>, vector<1x16xf32>, vector<1x16xf32>, vector<1x16xf32>, vector<1x16xf32>, vector<1x16xf32>, vector<1x16xf32>, vector<1x16xf32> -> vector<8x16xf32>
    %c0_53 = arith.constant 0 : index
    %c0_54 = arith.constant 0 : index
    %174 = vector.load %arg20[%c0_53, %c0_54] : memref<16x8xf32, #tpu.memory_space<vmem>>, vector<16x8xf32>
    %c0_55 = arith.constant 0 : index
    %c0_56 = arith.constant 0 : index
    %175 = vector.load %arg8[%c0_55, %c0_56] : memref<48x16xf32, #tpu.memory_space<vmem>>, vector<48x16xf32>
    %c0_57 = arith.constant 0 : index
    %c0_58 = arith.constant 0 : index
    %176 = vector.load %arg9[%c0_57, %c0_58] : memref<48x16xf32, #tpu.memory_space<vmem>>, vector<48x16xf32>
    %c0_59 = arith.constant 0 : index
    %c0_60 = arith.constant 0 : index
    %177 = vector.load %arg10[%c0_59, %c0_60] : memref<48x8xf32, #tpu.memory_space<vmem>>, vector<48x8xf32>
    %cst_61 = arith.constant dense<0.000000e+00> : vector<48x8xf32>
    %178 = tpu.matmul %175, %173, %cst_61 {dimension_numbers = #tpu.dot_dimension_numbers<[1], [1], [0], [0], [0, 0, 1, 0], [], []>} : vector<48x16xf32>, vector<8x16xf32>, vector<48x8xf32> -> vector<48x8xf32>
    %179 = vector.extract_strided_slice %176 {offsets = [0, 0], sizes = [32, 16], strides = [1, 1]} : vector<48x16xf32> to vector<32x16xf32>
    %cst_62 = arith.constant dense<0.000000e+00> : vector<32x8xf32>
    %180 = tpu.matmul %179, %174, %cst_62 {dimension_numbers = #tpu.dot_dimension_numbers<[1], [0], [0], [1], [0, 0, 1, 1], [], []>} : vector<32x16xf32>, vector<16x8xf32>, vector<32x8xf32> -> vector<32x8xf32>
    %181 = vector.extract_strided_slice %178 {offsets = [0, 0], sizes = [16, 8], strides = [1, 1]} : vector<48x8xf32> to vector<16x8xf32>
    %182 = vector.extract_strided_slice %180 {offsets = [0, 0], sizes = [16, 8], strides = [1, 1]} : vector<32x8xf32> to vector<16x8xf32>
    %183 = arith.addf %181, %182 : vector<16x8xf32>
    %184 = vector.extract_strided_slice %177 {offsets = [0, 0], sizes = [16, 8], strides = [1, 1]} : vector<48x8xf32> to vector<16x8xf32>
    %185 = arith.addf %183, %184 : vector<16x8xf32>
    %186 = arith.negf %185 : vector<16x8xf32>
    %187 = math.exp %186 : vector<16x8xf32>
    %cst_63 = arith.constant 1.000000e+00 : f32
    %188 = vector.broadcast %cst_63 : f32 to vector<16x8xf32>
    %189 = arith.addf %188, %187 : vector<16x8xf32>
    %190 = arith.divf %188, %189 : vector<16x8xf32>
    %191 = vector.extract_strided_slice %178 {offsets = [16, 0], sizes = [16, 8], strides = [1, 1]} : vector<48x8xf32> to vector<16x8xf32>
    %192 = vector.extract_strided_slice %180 {offsets = [16, 0], sizes = [16, 8], strides = [1, 1]} : vector<32x8xf32> to vector<16x8xf32>
    %193 = arith.addf %191, %192 : vector<16x8xf32>
    %194 = vector.extract_strided_slice %177 {offsets = [16, 0], sizes = [16, 8], strides = [1, 1]} : vector<48x8xf32> to vector<16x8xf32>
    %195 = arith.addf %193, %194 : vector<16x8xf32>
    %196 = arith.negf %195 : vector<16x8xf32>
    %197 = math.exp %196 : vector<16x8xf32>
    %cst_64 = arith.constant 1.000000e+00 : f32
    %198 = vector.broadcast %cst_64 : f32 to vector<16x8xf32>
    %199 = arith.addf %198, %197 : vector<16x8xf32>
    %200 = arith.divf %198, %199 : vector<16x8xf32>
    %201 = vector.extract_strided_slice %178 {offsets = [32, 0], sizes = [16, 8], strides = [1, 1]} : vector<48x8xf32> to vector<16x8xf32>
    %202 = vector.extract_strided_slice %176 {offsets = [32, 0], sizes = [16, 16], strides = [1, 1]} : vector<48x16xf32> to vector<16x16xf32>
    %203 = arith.mulf %200, %174 : vector<16x8xf32>
    %cst_65 = arith.constant dense<0.000000e+00> : vector<16x8xf32>
    %204 = tpu.matmul %202, %203, %cst_65 {dimension_numbers = #tpu.dot_dimension_numbers<[1], [0], [0], [1], [0, 0, 1, 1], [], []>} : vector<16x16xf32>, vector<16x8xf32>, vector<16x8xf32> -> vector<16x8xf32>
    %205 = arith.addf %201, %204 : vector<16x8xf32>
    %206 = vector.extract_strided_slice %177 {offsets = [32, 0], sizes = [16, 8], strides = [1, 1]} : vector<48x8xf32> to vector<16x8xf32>
    %207 = arith.addf %205, %206 : vector<16x8xf32>
    %208 = math.tanh %207 : vector<16x8xf32>
    %cst_66 = arith.constant 1.000000e+00 : f32
    %209 = vector.broadcast %cst_66 : f32 to vector<16x8xf32>
    %210 = arith.subf %209, %190 : vector<16x8xf32>
    %211 = arith.mulf %210, %174 : vector<16x8xf32>
    %212 = arith.mulf %190, %208 : vector<16x8xf32>
    %213 = arith.addf %211, %212 : vector<16x8xf32>
    %c0_67 = arith.constant 0 : index
    %c0_68 = arith.constant 0 : index
    %214 = vector.load %arg20[%c0_67, %c0_68] : memref<16x8xf32, #tpu.memory_space<vmem>>, vector<16x8xf32>
    tpu.vector_store %arg20[%c0_67, %c0_68], %213 {strides = array<i32>} : memref<16x8xf32, #tpu.memory_space<vmem>>, vector<16x8xf32>,
    %cst_69 = arith.constant dense<0.000000e+00> : vector<16x8xf32>
    %215 = tpu.matmul %12, %213, %cst_69 {dimension_numbers = #tpu.dot_dimension_numbers<[1], [0], [0], [1], [0, 0, 1, 1], [], []>} : vector<16x16xf32>, vector<16x8xf32>, vector<16x8xf32> -> vector<16x8xf32>
    %cst_70 = arith.constant 0.000000e+00 : f32
    %216 = vector.broadcast %cst_70 : f32 to vector<16x8xf32>
    %217 = arith.maximumf %215, %216 : vector<16x8xf32>
    %c0_71 = arith.constant 0 : index
    %c0_72 = arith.constant 0 : index
    %218 = vector.load %arg24[%c0_71, %c0_72] : memref<16x8xf32, #tpu.memory_space<vmem>>, vector<16x8xf32>
    tpu.vector_store %arg24[%c0_71, %c0_72], %217 {strides = array<i32>} : memref<16x8xf32, #tpu.memory_space<vmem>>, vector<16x8xf32>,
    %c0_73 = arith.constant 0 : index
    %c0_74 = arith.constant 0 : index
    %219 = vector.load %arg11[%c0_73, %c0_74] : memref<1x8xf32, #tpu.memory_space<vmem>>, vector<1x8xf32>
    %220 = arith.mulf %219, %219 : vector<1x8xf32>
    %221 = vector.shape_cast %220 : vector<1x8xf32> to vector<1x1x8xf32>
    %cst_75 = arith.constant dense<0.000000e+00> : vector<1xf32>
    %222 = vector.multi_reduction <add>, %221, %cst_75 [1, 2] : vector<1x1x8xf32> to vector<1xf32>
    %223 = vector.shape_cast %222 : vector<1xf32> to vector<1x1x1xf32>
    %224 = vector.extract %223[0, 0, 0] : f32 from vector<1x1x1xf32>
    %225 = math.rsqrt %224 : f32
    %cst_76 = arith.constant dense<0.000000e+00> : vector<1x16xf32>
    %226 = tpu.matmul %219, %217, %cst_76 {dimension_numbers = #tpu.dot_dimension_numbers<[1], [1], [0], [0], [0, 0, 1, 0], [], []>} : vector<1x8xf32>, vector<16x8xf32>, vector<1x16xf32> -> vector<1x16xf32>
    %227 = vector.broadcast %225 : f32 to vector<1x16xf32>
    %228 = arith.mulf %226, %227 : vector<1x16xf32>
    %229 = arith.addf %228, %4 : vector<1x16xf32>
    %cst_77 = arith.constant dense<0xFF800000> : vector<1xf32>
    %230 = vector.multi_reduction <maximumf>, %229, %cst_77 [1] : vector<1x16xf32> to vector<1xf32>
    %231 = vector.shape_cast %230 : vector<1xf32> to vector<1x1xf32>
    %232 = vector.broadcast %231 : vector<1x1xf32> to vector<1x16xf32>
    %233 = arith.cmpf oeq, %229, %232 : vector<1x16xf32>
    %c16_i32_78 = arith.constant 16 : i32
    %234 = vector.broadcast %c16_i32_78 : i32 to vector<1x16xi32>
    %235 = arith.select %233, %5, %234 : vector<1x16xi1>, vector<1x16xi32>
    %236 = vector.shape_cast %235 : vector<1x16xi32> to vector<1x1x16xi32>
    %cst_79 = arith.constant dense<2147483647> : vector<1xi32>
    %237 = vector.multi_reduction <minsi>, %236, %cst_79 [1, 2] : vector<1x1x16xi32> to vector<1xi32>
    %238 = vector.shape_cast %237 : vector<1xi32> to vector<1x1x1xi32>
    %239 = vector.extract %238[0, 0, 0] : i32 from vector<1x1x1xi32>
    %240 = arith.index_cast %239 : i32 to index
    %c0_80 = arith.constant 0 : index
    %241 = vector.load %arg24[%240, %c0_80] : memref<16x8xf32, #tpu.memory_space<vmem>>, vector<1x8xf32>
    %242 = math.tanh %231 : vector<1x1xf32>
    %243 = vector.broadcast %242 : vector<1x1xf32> to vector<1x8xf32>
    %244 = arith.mulf %241, %243 : vector<1x8xf32>
    %245 = vector.broadcast %239 : i32 to vector<1x16xi32>
    %246 = arith.cmpi eq, %5, %245 : vector<1x16xi32>
    %cst_81 = arith.constant 0xFF800000 : f32
    %247 = vector.broadcast %cst_81 : f32 to vector<1x16xf32>
    %248 = arith.select %246, %247, %229 : vector<1x16xi1>, vector<1x16xf32>
    %cst_82 = arith.constant dense<0xFF800000> : vector<1xf32>
    %249 = vector.multi_reduction <maximumf>, %248, %cst_82 [1] : vector<1x16xf32> to vector<1xf32>
    %250 = vector.shape_cast %249 : vector<1xf32> to vector<1x1xf32>
    %251 = vector.broadcast %250 : vector<1x1xf32> to vector<1x16xf32>
    %252 = arith.cmpf oeq, %248, %251 : vector<1x16xf32>
    %c16_i32_83 = arith.constant 16 : i32
    %253 = vector.broadcast %c16_i32_83 : i32 to vector<1x16xi32>
    %254 = arith.select %252, %5, %253 : vector<1x16xi1>, vector<1x16xi32>
    %255 = vector.shape_cast %254 : vector<1x16xi32> to vector<1x1x16xi32>
    %cst_84 = arith.constant dense<2147483647> : vector<1xi32>
    %256 = vector.multi_reduction <minsi>, %255, %cst_84 [1, 2] : vector<1x1x16xi32> to vector<1xi32>
    %257 = vector.shape_cast %256 : vector<1xi32> to vector<1x1x1xi32>
    %258 = vector.extract %257[0, 0, 0] : i32 from vector<1x1x1xi32>
    %259 = arith.index_cast %258 : i32 to index
    %c0_85 = arith.constant 0 : index
    %260 = vector.load %arg24[%259, %c0_85] : memref<16x8xf32, #tpu.memory_space<vmem>>, vector<1x8xf32>
    %261 = math.tanh %250 : vector<1x1xf32>
    %262 = vector.broadcast %261 : vector<1x1xf32> to vector<1x8xf32>
    %263 = arith.mulf %260, %262 : vector<1x8xf32>
    %264 = vector.broadcast %258 : i32 to vector<1x16xi32>
    %265 = arith.cmpi eq, %5, %264 : vector<1x16xi32>
    %cst_86 = arith.constant 0xFF800000 : f32
    %266 = vector.broadcast %cst_86 : f32 to vector<1x16xf32>
    %267 = arith.select %265, %266, %248 : vector<1x16xi1>, vector<1x16xf32>
    %cst_87 = arith.constant dense<0xFF800000> : vector<1xf32>
    %268 = vector.multi_reduction <maximumf>, %267, %cst_87 [1] : vector<1x16xf32> to vector<1xf32>
    %269 = vector.shape_cast %268 : vector<1xf32> to vector<1x1xf32>
    %270 = vector.broadcast %269 : vector<1x1xf32> to vector<1x16xf32>
    %271 = arith.cmpf oeq, %267, %270 : vector<1x16xf32>
    %c16_i32_88 = arith.constant 16 : i32
    %272 = vector.broadcast %c16_i32_88 : i32 to vector<1x16xi32>
    %273 = arith.select %271, %5, %272 : vector<1x16xi1>, vector<1x16xi32>
    %274 = vector.shape_cast %273 : vector<1x16xi32> to vector<1x1x16xi32>
    %cst_89 = arith.constant dense<2147483647> : vector<1xi32>
    %275 = vector.multi_reduction <minsi>, %274, %cst_89 [1, 2] : vector<1x1x16xi32> to vector<1xi32>
    %276 = vector.shape_cast %275 : vector<1xi32> to vector<1x1x1xi32>
    %277 = vector.extract %276[0, 0, 0] : i32 from vector<1x1x1xi32>
    %278 = arith.index_cast %277 : i32 to index
    %c0_90 = arith.constant 0 : index
    %279 = vector.load %arg24[%278, %c0_90] : memref<16x8xf32, #tpu.memory_space<vmem>>, vector<1x8xf32>
    %280 = math.tanh %269 : vector<1x1xf32>
    %281 = vector.broadcast %280 : vector<1x1xf32> to vector<1x8xf32>
    %282 = arith.mulf %279, %281 : vector<1x8xf32>
    %283 = vector.broadcast %277 : i32 to vector<1x16xi32>
    %284 = arith.cmpi eq, %5, %283 : vector<1x16xi32>
    %cst_91 = arith.constant 0xFF800000 : f32
    %285 = vector.broadcast %cst_91 : f32 to vector<1x16xf32>
    %286 = arith.select %284, %285, %267 : vector<1x16xi1>, vector<1x16xf32>
    %cst_92 = arith.constant dense<0xFF800000> : vector<1xf32>
    %287 = vector.multi_reduction <maximumf>, %286, %cst_92 [1] : vector<1x16xf32> to vector<1xf32>
    %288 = vector.shape_cast %287 : vector<1xf32> to vector<1x1xf32>
    %289 = vector.broadcast %288 : vector<1x1xf32> to vector<1x16xf32>
    %290 = arith.cmpf oeq, %286, %289 : vector<1x16xf32>
    %c16_i32_93 = arith.constant 16 : i32
    %291 = vector.broadcast %c16_i32_93 : i32 to vector<1x16xi32>
    %292 = arith.select %290, %5, %291 : vector<1x16xi1>, vector<1x16xi32>
    %293 = vector.shape_cast %292 : vector<1x16xi32> to vector<1x1x16xi32>
    %cst_94 = arith.constant dense<2147483647> : vector<1xi32>
    %294 = vector.multi_reduction <minsi>, %293, %cst_94 [1, 2] : vector<1x1x16xi32> to vector<1xi32>
    %295 = vector.shape_cast %294 : vector<1xi32> to vector<1x1x1xi32>
    %296 = vector.extract %295[0, 0, 0] : i32 from vector<1x1x1xi32>
    %297 = arith.index_cast %296 : i32 to index
    %c0_95 = arith.constant 0 : index
    %298 = vector.load %arg24[%297, %c0_95] : memref<16x8xf32, #tpu.memory_space<vmem>>, vector<1x8xf32>
    %299 = math.tanh %288 : vector<1x1xf32>
    %300 = vector.broadcast %299 : vector<1x1xf32> to vector<1x8xf32>
    %301 = arith.mulf %298, %300 : vector<1x8xf32>
    %302 = vector.broadcast %296 : i32 to vector<1x16xi32>
    %303 = arith.cmpi eq, %5, %302 : vector<1x16xi32>
    %cst_96 = arith.constant 0xFF800000 : f32
    %304 = vector.broadcast %cst_96 : f32 to vector<1x16xf32>
    %305 = arith.select %303, %304, %286 : vector<1x16xi1>, vector<1x16xf32>
    %cst_97 = arith.constant dense<0xFF800000> : vector<1xf32>
    %306 = vector.multi_reduction <maximumf>, %305, %cst_97 [1] : vector<1x16xf32> to vector<1xf32>
    %307 = vector.shape_cast %306 : vector<1xf32> to vector<1x1xf32>
    %308 = vector.broadcast %307 : vector<1x1xf32> to vector<1x16xf32>
    %309 = arith.cmpf oeq, %305, %308 : vector<1x16xf32>
    %c16_i32_98 = arith.constant 16 : i32
    %310 = vector.broadcast %c16_i32_98 : i32 to vector<1x16xi32>
    %311 = arith.select %309, %5, %310 : vector<1x16xi1>, vector<1x16xi32>
    %312 = vector.shape_cast %311 : vector<1x16xi32> to vector<1x1x16xi32>
    %cst_99 = arith.constant dense<2147483647> : vector<1xi32>
    %313 = vector.multi_reduction <minsi>, %312, %cst_99 [1, 2] : vector<1x1x16xi32> to vector<1xi32>
    %314 = vector.shape_cast %313 : vector<1xi32> to vector<1x1x1xi32>
    %315 = vector.extract %314[0, 0, 0] : i32 from vector<1x1x1xi32>
    %316 = arith.index_cast %315 : i32 to index
    %c0_100 = arith.constant 0 : index
    %317 = vector.load %arg24[%316, %c0_100] : memref<16x8xf32, #tpu.memory_space<vmem>>, vector<1x8xf32>
    %318 = math.tanh %307 : vector<1x1xf32>
    %319 = vector.broadcast %318 : vector<1x1xf32> to vector<1x8xf32>
    %320 = arith.mulf %317, %319 : vector<1x8xf32>
    %321 = vector.broadcast %315 : i32 to vector<1x16xi32>
    %322 = arith.cmpi eq, %5, %321 : vector<1x16xi32>
    %cst_101 = arith.constant 0xFF800000 : f32
    %323 = vector.broadcast %cst_101 : f32 to vector<1x16xf32>
    %324 = arith.select %322, %323, %305 : vector<1x16xi1>, vector<1x16xf32>
    %cst_102 = arith.constant dense<0xFF800000> : vector<1xf32>
    %325 = vector.multi_reduction <maximumf>, %324, %cst_102 [1] : vector<1x16xf32> to vector<1xf32>
    %326 = vector.shape_cast %325 : vector<1xf32> to vector<1x1xf32>
    %327 = vector.broadcast %326 : vector<1x1xf32> to vector<1x16xf32>
    %328 = arith.cmpf oeq, %324, %327 : vector<1x16xf32>
    %c16_i32_103 = arith.constant 16 : i32
    %329 = vector.broadcast %c16_i32_103 : i32 to vector<1x16xi32>
    %330 = arith.select %328, %5, %329 : vector<1x16xi1>, vector<1x16xi32>
    %331 = vector.shape_cast %330 : vector<1x16xi32> to vector<1x1x16xi32>
    %cst_104 = arith.constant dense<2147483647> : vector<1xi32>
    %332 = vector.multi_reduction <minsi>, %331, %cst_104 [1, 2] : vector<1x1x16xi32> to vector<1xi32>
    %333 = vector.shape_cast %332 : vector<1xi32> to vector<1x1x1xi32>
    %334 = vector.extract %333[0, 0, 0] : i32 from vector<1x1x1xi32>
    %335 = arith.index_cast %334 : i32 to index
    %c0_105 = arith.constant 0 : index
    %336 = vector.load %arg24[%335, %c0_105] : memref<16x8xf32, #tpu.memory_space<vmem>>, vector<1x8xf32>
    %337 = math.tanh %326 : vector<1x1xf32>
    %338 = vector.broadcast %337 : vector<1x1xf32> to vector<1x8xf32>
    %339 = arith.mulf %336, %338 : vector<1x8xf32>
    %340 = vector.broadcast %334 : i32 to vector<1x16xi32>
    %341 = arith.cmpi eq, %5, %340 : vector<1x16xi32>
    %cst_106 = arith.constant 0xFF800000 : f32
    %342 = vector.broadcast %cst_106 : f32 to vector<1x16xf32>
    %343 = arith.select %341, %342, %324 : vector<1x16xi1>, vector<1x16xf32>
    %cst_107 = arith.constant dense<0xFF800000> : vector<1xf32>
    %344 = vector.multi_reduction <maximumf>, %343, %cst_107 [1] : vector<1x16xf32> to vector<1xf32>
    %345 = vector.shape_cast %344 : vector<1xf32> to vector<1x1xf32>
    %346 = vector.broadcast %345 : vector<1x1xf32> to vector<1x16xf32>
    %347 = arith.cmpf oeq, %343, %346 : vector<1x16xf32>
    %c16_i32_108 = arith.constant 16 : i32
    %348 = vector.broadcast %c16_i32_108 : i32 to vector<1x16xi32>
    %349 = arith.select %347, %5, %348 : vector<1x16xi1>, vector<1x16xi32>
    %350 = vector.shape_cast %349 : vector<1x16xi32> to vector<1x1x16xi32>
    %cst_109 = arith.constant dense<2147483647> : vector<1xi32>
    %351 = vector.multi_reduction <minsi>, %350, %cst_109 [1, 2] : vector<1x1x16xi32> to vector<1xi32>
    %352 = vector.shape_cast %351 : vector<1xi32> to vector<1x1x1xi32>
    %353 = vector.extract %352[0, 0, 0] : i32 from vector<1x1x1xi32>
    %354 = arith.index_cast %353 : i32 to index
    %c0_110 = arith.constant 0 : index
    %355 = vector.load %arg24[%354, %c0_110] : memref<16x8xf32, #tpu.memory_space<vmem>>, vector<1x8xf32>
    %356 = math.tanh %345 : vector<1x1xf32>
    %357 = vector.broadcast %356 : vector<1x1xf32> to vector<1x8xf32>
    %358 = arith.mulf %355, %357 : vector<1x8xf32>
    %359 = vector.broadcast %353 : i32 to vector<1x16xi32>
    %360 = arith.cmpi eq, %5, %359 : vector<1x16xi32>
    %cst_111 = arith.constant 0xFF800000 : f32
    %361 = vector.broadcast %cst_111 : f32 to vector<1x16xf32>
    %362 = arith.select %360, %361, %343 : vector<1x16xi1>, vector<1x16xf32>
    %cst_112 = arith.constant dense<0xFF800000> : vector<1xf32>
    %363 = vector.multi_reduction <maximumf>, %362, %cst_112 [1] : vector<1x16xf32> to vector<1xf32>
    %364 = vector.shape_cast %363 : vector<1xf32> to vector<1x1xf32>
    %365 = vector.broadcast %364 : vector<1x1xf32> to vector<1x16xf32>
    %366 = arith.cmpf oeq, %362, %365 : vector<1x16xf32>
    %c16_i32_113 = arith.constant 16 : i32
    %367 = vector.broadcast %c16_i32_113 : i32 to vector<1x16xi32>
    %368 = arith.select %366, %5, %367 : vector<1x16xi1>, vector<1x16xi32>
    %369 = vector.shape_cast %368 : vector<1x16xi32> to vector<1x1x16xi32>
    %cst_114 = arith.constant dense<2147483647> : vector<1xi32>
    %370 = vector.multi_reduction <minsi>, %369, %cst_114 [1, 2] : vector<1x1x16xi32> to vector<1xi32>
    %371 = vector.shape_cast %370 : vector<1xi32> to vector<1x1x1xi32>
    %372 = vector.extract %371[0, 0, 0] : i32 from vector<1x1x1xi32>
    %373 = arith.index_cast %372 : i32 to index
    %c0_115 = arith.constant 0 : index
    %374 = vector.load %arg24[%373, %c0_115] : memref<16x8xf32, #tpu.memory_space<vmem>>, vector<1x8xf32>
    %375 = math.tanh %364 : vector<1x1xf32>
    %376 = vector.broadcast %375 : vector<1x1xf32> to vector<1x8xf32>
    %377 = arith.mulf %374, %376 : vector<1x8xf32>
    %378 = tpu.concatenate %244, %263, %282, %301, %320, %339, %358, %377 in 0 : vector<1x8xf32>, vector<1x8xf32>, vector<1x8xf32>, vector<1x8xf32>, vector<1x8xf32>, vector<1x8xf32>, vector<1x8xf32>, vector<1x8xf32> -> vector<8x8xf32>
    %c0_116 = arith.constant 0 : index
    %c0_117 = arith.constant 0 : index
    %379 = vector.load %arg21[%c0_116, %c0_117] : memref<8x8xf32, #tpu.memory_space<vmem>>, vector<8x8xf32>
    %c0_118 = arith.constant 0 : index
    %c0_119 = arith.constant 0 : index
    %380 = vector.load %arg12[%c0_118, %c0_119] : memref<24x8xf32, #tpu.memory_space<vmem>>, vector<24x8xf32>
    %c0_120 = arith.constant 0 : index
    %c0_121 = arith.constant 0 : index
    %381 = vector.load %arg13[%c0_120, %c0_121] : memref<24x8xf32, #tpu.memory_space<vmem>>, vector<24x8xf32>
    %c0_122 = arith.constant 0 : index
    %c0_123 = arith.constant 0 : index
    %382 = vector.load %arg14[%c0_122, %c0_123] : memref<24x8xf32, #tpu.memory_space<vmem>>, vector<24x8xf32>
    %cst_124 = arith.constant dense<0.000000e+00> : vector<24x8xf32>
    %383 = tpu.matmul %380, %378, %cst_124 {dimension_numbers = #tpu.dot_dimension_numbers<[1], [1], [0], [0], [0, 0, 1, 0], [], []>} : vector<24x8xf32>, vector<8x8xf32>, vector<24x8xf32> -> vector<24x8xf32>
    %384 = vector.extract_strided_slice %381 {offsets = [0, 0], sizes = [16, 8], strides = [1, 1]} : vector<24x8xf32> to vector<16x8xf32>
    %cst_125 = arith.constant dense<0.000000e+00> : vector<16x8xf32>
    %385 = tpu.matmul %384, %379, %cst_125 {dimension_numbers = #tpu.dot_dimension_numbers<[1], [0], [0], [1], [0, 0, 1, 1], [], []>} : vector<16x8xf32>, vector<8x8xf32>, vector<16x8xf32> -> vector<16x8xf32>
    %386 = vector.extract_strided_slice %383 {offsets = [0, 0], sizes = [8, 8], strides = [1, 1]} : vector<24x8xf32> to vector<8x8xf32>
    %387 = vector.extract_strided_slice %385 {offsets = [0, 0], sizes = [8, 8], strides = [1, 1]} : vector<16x8xf32> to vector<8x8xf32>
    %388 = arith.addf %386, %387 : vector<8x8xf32>
    %389 = vector.extract_strided_slice %382 {offsets = [0, 0], sizes = [8, 8], strides = [1, 1]} : vector<24x8xf32> to vector<8x8xf32>
    %390 = arith.addf %388, %389 : vector<8x8xf32>
    %391 = arith.negf %390 : vector<8x8xf32>
    %392 = math.exp %391 : vector<8x8xf32>
    %cst_126 = arith.constant 1.000000e+00 : f32
    %393 = vector.broadcast %cst_126 : f32 to vector<8x8xf32>
    %394 = arith.addf %393, %392 : vector<8x8xf32>
    %395 = arith.divf %393, %394 : vector<8x8xf32>
    %396 = vector.extract_strided_slice %383 {offsets = [8, 0], sizes = [8, 8], strides = [1, 1]} : vector<24x8xf32> to vector<8x8xf32>
    %397 = vector.extract_strided_slice %385 {offsets = [8, 0], sizes = [8, 8], strides = [1, 1]} : vector<16x8xf32> to vector<8x8xf32>
    %398 = arith.addf %396, %397 : vector<8x8xf32>
    %399 = vector.extract_strided_slice %382 {offsets = [8, 0], sizes = [8, 8], strides = [1, 1]} : vector<24x8xf32> to vector<8x8xf32>
    %400 = arith.addf %398, %399 : vector<8x8xf32>
    %401 = arith.negf %400 : vector<8x8xf32>
    %402 = math.exp %401 : vector<8x8xf32>
    %cst_127 = arith.constant 1.000000e+00 : f32
    %403 = vector.broadcast %cst_127 : f32 to vector<8x8xf32>
    %404 = arith.addf %403, %402 : vector<8x8xf32>
    %405 = arith.divf %403, %404 : vector<8x8xf32>
    %406 = vector.extract_strided_slice %383 {offsets = [16, 0], sizes = [8, 8], strides = [1, 1]} : vector<24x8xf32> to vector<8x8xf32>
    %407 = vector.extract_strided_slice %381 {offsets = [16, 0], sizes = [8, 8], strides = [1, 1]} : vector<24x8xf32> to vector<8x8xf32>
    %408 = arith.mulf %405, %379 : vector<8x8xf32>
    %cst_128 = arith.constant dense<0.000000e+00> : vector<8x8xf32>
    %409 = tpu.matmul %407, %408, %cst_128 {dimension_numbers = #tpu.dot_dimension_numbers<[1], [0], [0], [1], [0, 0, 1, 1], [], []>} : vector<8x8xf32>, vector<8x8xf32>, vector<8x8xf32> -> vector<8x8xf32>
    %410 = arith.addf %406, %409 : vector<8x8xf32>
    %411 = vector.extract_strided_slice %382 {offsets = [16, 0], sizes = [8, 8], strides = [1, 1]} : vector<24x8xf32> to vector<8x8xf32>
    %412 = arith.addf %410, %411 : vector<8x8xf32>
    %413 = math.tanh %412 : vector<8x8xf32>
    %cst_129 = arith.constant 1.000000e+00 : f32
    %414 = vector.broadcast %cst_129 : f32 to vector<8x8xf32>
    %415 = arith.subf %414, %395 : vector<8x8xf32>
    %416 = arith.mulf %415, %379 : vector<8x8xf32>
    %417 = arith.mulf %395, %413 : vector<8x8xf32>
    %418 = arith.addf %416, %417 : vector<8x8xf32>
    %c0_130 = arith.constant 0 : index
    %c0_131 = arith.constant 0 : index
    %419 = vector.load %arg21[%c0_130, %c0_131] : memref<8x8xf32, #tpu.memory_space<vmem>>, vector<8x8xf32>
    tpu.vector_store %arg21[%c0_130, %c0_131], %418 {strides = array<i32>} : memref<8x8xf32, #tpu.memory_space<vmem>>, vector<8x8xf32>,
    %cst_132 = arith.constant dense<0.000000e+00> : vector<16x8xf32>
    %420 = tpu.matmul %217, %418, %cst_132 {dimension_numbers = #tpu.dot_dimension_numbers<[1], [0], [0], [1], [0, 0, 1, 1], [], []>} : vector<16x8xf32>, vector<8x8xf32>, vector<16x8xf32> -> vector<16x8xf32>
    %cst_133 = arith.constant 0.000000e+00 : f32
    %421 = vector.broadcast %cst_133 : f32 to vector<16x8xf32>
    %422 = arith.maximumf %420, %421 : vector<16x8xf32>
    %c0_134 = arith.constant 0 : index
    %c0_135 = arith.constant 0 : index
    %423 = vector.load %arg25[%c0_134, %c0_135] : memref<16x8xf32, #tpu.memory_space<vmem>>, vector<16x8xf32>
    tpu.vector_store %arg25[%c0_134, %c0_135], %422 {strides = array<i32>} : memref<16x8xf32, #tpu.memory_space<vmem>>, vector<16x8xf32>,
    %c0_136 = arith.constant 0 : index
    %c0_137 = arith.constant 0 : index
    %424 = vector.load %arg15[%c0_136, %c0_137] : memref<1x8xf32, #tpu.memory_space<vmem>>, vector<1x8xf32>
    %425 = arith.mulf %424, %424 : vector<1x8xf32>
    %426 = vector.shape_cast %425 : vector<1x8xf32> to vector<1x1x8xf32>
    %cst_138 = arith.constant dense<0.000000e+00> : vector<1xf32>
    %427 = vector.multi_reduction <add>, %426, %cst_138 [1, 2] : vector<1x1x8xf32> to vector<1xf32>
    %428 = vector.shape_cast %427 : vector<1xf32> to vector<1x1x1xf32>
    %429 = vector.extract %428[0, 0, 0] : f32 from vector<1x1x1xf32>
    %430 = math.rsqrt %429 : f32
    %cst_139 = arith.constant dense<0.000000e+00> : vector<1x16xf32>
    %431 = tpu.matmul %424, %422, %cst_139 {dimension_numbers = #tpu.dot_dimension_numbers<[1], [1], [0], [0], [0, 0, 1, 0], [], []>} : vector<1x8xf32>, vector<16x8xf32>, vector<1x16xf32> -> vector<1x16xf32>
    %432 = vector.broadcast %430 : f32 to vector<1x16xf32>
    %433 = arith.mulf %431, %432 : vector<1x16xf32>
    %434 = arith.addf %433, %4 : vector<1x16xf32>
    %cst_140 = arith.constant dense<0xFF800000> : vector<1xf32>
    %435 = vector.multi_reduction <maximumf>, %434, %cst_140 [1] : vector<1x16xf32> to vector<1xf32>
    %436 = vector.shape_cast %435 : vector<1xf32> to vector<1x1xf32>
    %437 = vector.broadcast %436 : vector<1x1xf32> to vector<1x16xf32>
    %438 = arith.cmpf oeq, %434, %437 : vector<1x16xf32>
    %c16_i32_141 = arith.constant 16 : i32
    %439 = vector.broadcast %c16_i32_141 : i32 to vector<1x16xi32>
    %440 = arith.select %438, %5, %439 : vector<1x16xi1>, vector<1x16xi32>
    %441 = vector.shape_cast %440 : vector<1x16xi32> to vector<1x1x16xi32>
    %cst_142 = arith.constant dense<2147483647> : vector<1xi32>
    %442 = vector.multi_reduction <minsi>, %441, %cst_142 [1, 2] : vector<1x1x16xi32> to vector<1xi32>
    %443 = vector.shape_cast %442 : vector<1xi32> to vector<1x1x1xi32>
    %444 = vector.extract %443[0, 0, 0] : i32 from vector<1x1x1xi32>
    %445 = arith.index_cast %444 : i32 to index
    %c0_143 = arith.constant 0 : index
    %446 = vector.load %arg25[%445, %c0_143] : memref<16x8xf32, #tpu.memory_space<vmem>>, vector<1x8xf32>
    %447 = math.tanh %436 : vector<1x1xf32>
    %448 = vector.broadcast %447 : vector<1x1xf32> to vector<1x8xf32>
    %449 = arith.mulf %446, %448 : vector<1x8xf32>
    %450 = vector.broadcast %444 : i32 to vector<1x16xi32>
    %451 = arith.cmpi eq, %5, %450 : vector<1x16xi32>
    %cst_144 = arith.constant 0xFF800000 : f32
    %452 = vector.broadcast %cst_144 : f32 to vector<1x16xf32>
    %453 = arith.select %451, %452, %434 : vector<1x16xi1>, vector<1x16xf32>
    %cst_145 = arith.constant dense<0xFF800000> : vector<1xf32>
    %454 = vector.multi_reduction <maximumf>, %453, %cst_145 [1] : vector<1x16xf32> to vector<1xf32>
    %455 = vector.shape_cast %454 : vector<1xf32> to vector<1x1xf32>
    %456 = vector.broadcast %455 : vector<1x1xf32> to vector<1x16xf32>
    %457 = arith.cmpf oeq, %453, %456 : vector<1x16xf32>
    %c16_i32_146 = arith.constant 16 : i32
    %458 = vector.broadcast %c16_i32_146 : i32 to vector<1x16xi32>
    %459 = arith.select %457, %5, %458 : vector<1x16xi1>, vector<1x16xi32>
    %460 = vector.shape_cast %459 : vector<1x16xi32> to vector<1x1x16xi32>
    %cst_147 = arith.constant dense<2147483647> : vector<1xi32>
    %461 = vector.multi_reduction <minsi>, %460, %cst_147 [1, 2] : vector<1x1x16xi32> to vector<1xi32>
    %462 = vector.shape_cast %461 : vector<1xi32> to vector<1x1x1xi32>
    %463 = vector.extract %462[0, 0, 0] : i32 from vector<1x1x1xi32>
    %464 = arith.index_cast %463 : i32 to index
    %c0_148 = arith.constant 0 : index
    %465 = vector.load %arg25[%464, %c0_148] : memref<16x8xf32, #tpu.memory_space<vmem>>, vector<1x8xf32>
    %466 = math.tanh %455 : vector<1x1xf32>
    %467 = vector.broadcast %466 : vector<1x1xf32> to vector<1x8xf32>
    %468 = arith.mulf %465, %467 : vector<1x8xf32>
    %469 = vector.broadcast %463 : i32 to vector<1x16xi32>
    %470 = arith.cmpi eq, %5, %469 : vector<1x16xi32>
    %cst_149 = arith.constant 0xFF800000 : f32
    %471 = vector.broadcast %cst_149 : f32 to vector<1x16xf32>
    %472 = arith.select %470, %471, %453 : vector<1x16xi1>, vector<1x16xf32>
    %cst_150 = arith.constant dense<0xFF800000> : vector<1xf32>
    %473 = vector.multi_reduction <maximumf>, %472, %cst_150 [1] : vector<1x16xf32> to vector<1xf32>
    %474 = vector.shape_cast %473 : vector<1xf32> to vector<1x1xf32>
    %475 = vector.broadcast %474 : vector<1x1xf32> to vector<1x16xf32>
    %476 = arith.cmpf oeq, %472, %475 : vector<1x16xf32>
    %c16_i32_151 = arith.constant 16 : i32
    %477 = vector.broadcast %c16_i32_151 : i32 to vector<1x16xi32>
    %478 = arith.select %476, %5, %477 : vector<1x16xi1>, vector<1x16xi32>
    %479 = vector.shape_cast %478 : vector<1x16xi32> to vector<1x1x16xi32>
    %cst_152 = arith.constant dense<2147483647> : vector<1xi32>
    %480 = vector.multi_reduction <minsi>, %479, %cst_152 [1, 2] : vector<1x1x16xi32> to vector<1xi32>
    %481 = vector.shape_cast %480 : vector<1xi32> to vector<1x1x1xi32>
    %482 = vector.extract %481[0, 0, 0] : i32 from vector<1x1x1xi32>
    %483 = arith.index_cast %482 : i32 to index
    %c0_153 = arith.constant 0 : index
    %484 = vector.load %arg25[%483, %c0_153] : memref<16x8xf32, #tpu.memory_space<vmem>>, vector<1x8xf32>
    %485 = math.tanh %474 : vector<1x1xf32>
    %486 = vector.broadcast %485 : vector<1x1xf32> to vector<1x8xf32>
    %487 = arith.mulf %484, %486 : vector<1x8xf32>
    %488 = vector.broadcast %482 : i32 to vector<1x16xi32>
    %489 = arith.cmpi eq, %5, %488 : vector<1x16xi32>
    %cst_154 = arith.constant 0xFF800000 : f32
    %490 = vector.broadcast %cst_154 : f32 to vector<1x16xf32>
    %491 = arith.select %489, %490, %472 : vector<1x16xi1>, vector<1x16xf32>
    %cst_155 = arith.constant dense<0xFF800000> : vector<1xf32>
    %492 = vector.multi_reduction <maximumf>, %491, %cst_155 [1] : vector<1x16xf32> to vector<1xf32>
    %493 = vector.shape_cast %492 : vector<1xf32> to vector<1x1xf32>
    %494 = vector.broadcast %493 : vector<1x1xf32> to vector<1x16xf32>
    %495 = arith.cmpf oeq, %491, %494 : vector<1x16xf32>
    %c16_i32_156 = arith.constant 16 : i32
    %496 = vector.broadcast %c16_i32_156 : i32 to vector<1x16xi32>
    %497 = arith.select %495, %5, %496 : vector<1x16xi1>, vector<1x16xi32>
    %498 = vector.shape_cast %497 : vector<1x16xi32> to vector<1x1x16xi32>
    %cst_157 = arith.constant dense<2147483647> : vector<1xi32>
    %499 = vector.multi_reduction <minsi>, %498, %cst_157 [1, 2] : vector<1x1x16xi32> to vector<1xi32>
    %500 = vector.shape_cast %499 : vector<1xi32> to vector<1x1x1xi32>
    %501 = vector.extract %500[0, 0, 0] : i32 from vector<1x1x1xi32>
    %502 = arith.index_cast %501 : i32 to index
    %c0_158 = arith.constant 0 : index
    %503 = vector.load %arg25[%502, %c0_158] : memref<16x8xf32, #tpu.memory_space<vmem>>, vector<1x8xf32>
    %504 = math.tanh %493 : vector<1x1xf32>
    %505 = vector.broadcast %504 : vector<1x1xf32> to vector<1x8xf32>
    %506 = arith.mulf %503, %505 : vector<1x8xf32>
    %507 = vector.broadcast %501 : i32 to vector<1x16xi32>
    %508 = arith.cmpi eq, %5, %507 : vector<1x16xi32>
    %cst_159 = arith.constant 0xFF800000 : f32
    %509 = vector.broadcast %cst_159 : f32 to vector<1x16xf32>
    %510 = arith.select %508, %509, %491 : vector<1x16xi1>, vector<1x16xf32>
    %cst_160 = arith.constant dense<0xFF800000> : vector<1xf32>
    %511 = vector.multi_reduction <maximumf>, %510, %cst_160 [1] : vector<1x16xf32> to vector<1xf32>
    %512 = vector.shape_cast %511 : vector<1xf32> to vector<1x1xf32>
    %513 = vector.broadcast %512 : vector<1x1xf32> to vector<1x16xf32>
    %514 = arith.cmpf oeq, %510, %513 : vector<1x16xf32>
    %c16_i32_161 = arith.constant 16 : i32
    %515 = vector.broadcast %c16_i32_161 : i32 to vector<1x16xi32>
    %516 = arith.select %514, %5, %515 : vector<1x16xi1>, vector<1x16xi32>
    %517 = vector.shape_cast %516 : vector<1x16xi32> to vector<1x1x16xi32>
    %cst_162 = arith.constant dense<2147483647> : vector<1xi32>
    %518 = vector.multi_reduction <minsi>, %517, %cst_162 [1, 2] : vector<1x1x16xi32> to vector<1xi32>
    %519 = vector.shape_cast %518 : vector<1xi32> to vector<1x1x1xi32>
    %520 = vector.extract %519[0, 0, 0] : i32 from vector<1x1x1xi32>
    %521 = arith.index_cast %520 : i32 to index
    %c0_163 = arith.constant 0 : index
    %522 = vector.load %arg25[%521, %c0_163] : memref<16x8xf32, #tpu.memory_space<vmem>>, vector<1x8xf32>
    %523 = math.tanh %512 : vector<1x1xf32>
    %524 = vector.broadcast %523 : vector<1x1xf32> to vector<1x8xf32>
    %525 = arith.mulf %522, %524 : vector<1x8xf32>
    %526 = vector.broadcast %520 : i32 to vector<1x16xi32>
    %527 = arith.cmpi eq, %5, %526 : vector<1x16xi32>
    %cst_164 = arith.constant 0xFF800000 : f32
    %528 = vector.broadcast %cst_164 : f32 to vector<1x16xf32>
    %529 = arith.select %527, %528, %510 : vector<1x16xi1>, vector<1x16xf32>
    %cst_165 = arith.constant dense<0xFF800000> : vector<1xf32>
    %530 = vector.multi_reduction <maximumf>, %529, %cst_165 [1] : vector<1x16xf32> to vector<1xf32>
    %531 = vector.shape_cast %530 : vector<1xf32> to vector<1x1xf32>
    %532 = vector.broadcast %531 : vector<1x1xf32> to vector<1x16xf32>
    %533 = arith.cmpf oeq, %529, %532 : vector<1x16xf32>
    %c16_i32_166 = arith.constant 16 : i32
    %534 = vector.broadcast %c16_i32_166 : i32 to vector<1x16xi32>
    %535 = arith.select %533, %5, %534 : vector<1x16xi1>, vector<1x16xi32>
    %536 = vector.shape_cast %535 : vector<1x16xi32> to vector<1x1x16xi32>
    %cst_167 = arith.constant dense<2147483647> : vector<1xi32>
    %537 = vector.multi_reduction <minsi>, %536, %cst_167 [1, 2] : vector<1x1x16xi32> to vector<1xi32>
    %538 = vector.shape_cast %537 : vector<1xi32> to vector<1x1x1xi32>
    %539 = vector.extract %538[0, 0, 0] : i32 from vector<1x1x1xi32>
    %540 = arith.index_cast %539 : i32 to index
    %c0_168 = arith.constant 0 : index
    %541 = vector.load %arg25[%540, %c0_168] : memref<16x8xf32, #tpu.memory_space<vmem>>, vector<1x8xf32>
    %542 = math.tanh %531 : vector<1x1xf32>
    %543 = vector.broadcast %542 : vector<1x1xf32> to vector<1x8xf32>
    %544 = arith.mulf %541, %543 : vector<1x8xf32>
    %545 = vector.broadcast %539 : i32 to vector<1x16xi32>
    %546 = arith.cmpi eq, %5, %545 : vector<1x16xi32>
    %cst_169 = arith.constant 0xFF800000 : f32
    %547 = vector.broadcast %cst_169 : f32 to vector<1x16xf32>
    %548 = arith.select %546, %547, %529 : vector<1x16xi1>, vector<1x16xf32>
    %cst_170 = arith.constant dense<0xFF800000> : vector<1xf32>
    %549 = vector.multi_reduction <maximumf>, %548, %cst_170 [1] : vector<1x16xf32> to vector<1xf32>
    %550 = vector.shape_cast %549 : vector<1xf32> to vector<1x1xf32>
    %551 = vector.broadcast %550 : vector<1x1xf32> to vector<1x16xf32>
    %552 = arith.cmpf oeq, %548, %551 : vector<1x16xf32>
    %c16_i32_171 = arith.constant 16 : i32
    %553 = vector.broadcast %c16_i32_171 : i32 to vector<1x16xi32>
    %554 = arith.select %552, %5, %553 : vector<1x16xi1>, vector<1x16xi32>
    %555 = vector.shape_cast %554 : vector<1x16xi32> to vector<1x1x16xi32>
    %cst_172 = arith.constant dense<2147483647> : vector<1xi32>
    %556 = vector.multi_reduction <minsi>, %555, %cst_172 [1, 2] : vector<1x1x16xi32> to vector<1xi32>
    %557 = vector.shape_cast %556 : vector<1xi32> to vector<1x1x1xi32>
    %558 = vector.extract %557[0, 0, 0] : i32 from vector<1x1x1xi32>
    %559 = arith.index_cast %558 : i32 to index
    %c0_173 = arith.constant 0 : index
    %560 = vector.load %arg25[%559, %c0_173] : memref<16x8xf32, #tpu.memory_space<vmem>>, vector<1x8xf32>
    %561 = math.tanh %550 : vector<1x1xf32>
    %562 = vector.broadcast %561 : vector<1x1xf32> to vector<1x8xf32>
    %563 = arith.mulf %560, %562 : vector<1x8xf32>
    %564 = vector.broadcast %558 : i32 to vector<1x16xi32>
    %565 = arith.cmpi eq, %5, %564 : vector<1x16xi32>
    %cst_174 = arith.constant 0xFF800000 : f32
    %566 = vector.broadcast %cst_174 : f32 to vector<1x16xf32>
    %567 = arith.select %565, %566, %548 : vector<1x16xi1>, vector<1x16xf32>
    %cst_175 = arith.constant dense<0xFF800000> : vector<1xf32>
    %568 = vector.multi_reduction <maximumf>, %567, %cst_175 [1] : vector<1x16xf32> to vector<1xf32>
    %569 = vector.shape_cast %568 : vector<1xf32> to vector<1x1xf32>
    %570 = vector.broadcast %569 : vector<1x1xf32> to vector<1x16xf32>
    %571 = arith.cmpf oeq, %567, %570 : vector<1x16xf32>
    %c16_i32_176 = arith.constant 16 : i32
    %572 = vector.broadcast %c16_i32_176 : i32 to vector<1x16xi32>
    %573 = arith.select %571, %5, %572 : vector<1x16xi1>, vector<1x16xi32>
    %574 = vector.shape_cast %573 : vector<1x16xi32> to vector<1x1x16xi32>
    %cst_177 = arith.constant dense<2147483647> : vector<1xi32>
    %575 = vector.multi_reduction <minsi>, %574, %cst_177 [1, 2] : vector<1x1x16xi32> to vector<1xi32>
    %576 = vector.shape_cast %575 : vector<1xi32> to vector<1x1x1xi32>
    %577 = vector.extract %576[0, 0, 0] : i32 from vector<1x1x1xi32>
    %578 = arith.index_cast %577 : i32 to index
    %c0_178 = arith.constant 0 : index
    %579 = vector.load %arg25[%578, %c0_178] : memref<16x8xf32, #tpu.memory_space<vmem>>, vector<1x8xf32>
    %580 = math.tanh %569 : vector<1x1xf32>
    %581 = vector.broadcast %580 : vector<1x1xf32> to vector<1x8xf32>
    %582 = arith.mulf %579, %581 : vector<1x8xf32>
    %583 = tpu.concatenate %449, %468, %487, %506, %525, %544, %563, %582 in 0 : vector<1x8xf32>, vector<1x8xf32>, vector<1x8xf32>, vector<1x8xf32>, vector<1x8xf32>, vector<1x8xf32>, vector<1x8xf32>, vector<1x8xf32> -> vector<8x8xf32>
    %c0_179 = arith.constant 0 : index
    %c0_180 = arith.constant 0 : index
    %584 = vector.load %arg22[%c0_179, %c0_180] : memref<8x8xf32, #tpu.memory_space<vmem>>, vector<8x8xf32>
    %c0_181 = arith.constant 0 : index
    %c0_182 = arith.constant 0 : index
    %585 = vector.load %arg16[%c0_181, %c0_182] : memref<24x8xf32, #tpu.memory_space<vmem>>, vector<24x8xf32>
    %c0_183 = arith.constant 0 : index
    %c0_184 = arith.constant 0 : index
    %586 = vector.load %arg17[%c0_183, %c0_184] : memref<24x8xf32, #tpu.memory_space<vmem>>, vector<24x8xf32>
    %c0_185 = arith.constant 0 : index
    %c0_186 = arith.constant 0 : index
    %587 = vector.load %arg18[%c0_185, %c0_186] : memref<24x8xf32, #tpu.memory_space<vmem>>, vector<24x8xf32>
    %cst_187 = arith.constant dense<0.000000e+00> : vector<24x8xf32>
    %588 = tpu.matmul %585, %583, %cst_187 {dimension_numbers = #tpu.dot_dimension_numbers<[1], [1], [0], [0], [0, 0, 1, 0], [], []>} : vector<24x8xf32>, vector<8x8xf32>, vector<24x8xf32> -> vector<24x8xf32>
    %589 = vector.extract_strided_slice %586 {offsets = [0, 0], sizes = [16, 8], strides = [1, 1]} : vector<24x8xf32> to vector<16x8xf32>
    %cst_188 = arith.constant dense<0.000000e+00> : vector<16x8xf32>
    %590 = tpu.matmul %589, %584, %cst_188 {dimension_numbers = #tpu.dot_dimension_numbers<[1], [0], [0], [1], [0, 0, 1, 1], [], []>} : vector<16x8xf32>, vector<8x8xf32>, vector<16x8xf32> -> vector<16x8xf32>
    %591 = vector.extract_strided_slice %588 {offsets = [0, 0], sizes = [8, 8], strides = [1, 1]} : vector<24x8xf32> to vector<8x8xf32>
    %592 = vector.extract_strided_slice %590 {offsets = [0, 0], sizes = [8, 8], strides = [1, 1]} : vector<16x8xf32> to vector<8x8xf32>
    %593 = arith.addf %591, %592 : vector<8x8xf32>
    %594 = vector.extract_strided_slice %587 {offsets = [0, 0], sizes = [8, 8], strides = [1, 1]} : vector<24x8xf32> to vector<8x8xf32>
    %595 = arith.addf %593, %594 : vector<8x8xf32>
    %596 = arith.negf %595 : vector<8x8xf32>
    %597 = math.exp %596 : vector<8x8xf32>
    %cst_189 = arith.constant 1.000000e+00 : f32
    %598 = vector.broadcast %cst_189 : f32 to vector<8x8xf32>
    %599 = arith.addf %598, %597 : vector<8x8xf32>
    %600 = arith.divf %598, %599 : vector<8x8xf32>
    %601 = vector.extract_strided_slice %588 {offsets = [8, 0], sizes = [8, 8], strides = [1, 1]} : vector<24x8xf32> to vector<8x8xf32>
    %602 = vector.extract_strided_slice %590 {offsets = [8, 0], sizes = [8, 8], strides = [1, 1]} : vector<16x8xf32> to vector<8x8xf32>
    %603 = arith.addf %601, %602 : vector<8x8xf32>
    %604 = vector.extract_strided_slice %587 {offsets = [8, 0], sizes = [8, 8], strides = [1, 1]} : vector<24x8xf32> to vector<8x8xf32>
    %605 = arith.addf %603, %604 : vector<8x8xf32>
    %606 = arith.negf %605 : vector<8x8xf32>
    %607 = math.exp %606 : vector<8x8xf32>
    %cst_190 = arith.constant 1.000000e+00 : f32
    %608 = vector.broadcast %cst_190 : f32 to vector<8x8xf32>
    %609 = arith.addf %608, %607 : vector<8x8xf32>
    %610 = arith.divf %608, %609 : vector<8x8xf32>
    %611 = vector.extract_strided_slice %588 {offsets = [16, 0], sizes = [8, 8], strides = [1, 1]} : vector<24x8xf32> to vector<8x8xf32>
    %612 = vector.extract_strided_slice %586 {offsets = [16, 0], sizes = [8, 8], strides = [1, 1]} : vector<24x8xf32> to vector<8x8xf32>
    %613 = arith.mulf %610, %584 : vector<8x8xf32>
    %cst_191 = arith.constant dense<0.000000e+00> : vector<8x8xf32>
    %614 = tpu.matmul %612, %613, %cst_191 {dimension_numbers = #tpu.dot_dimension_numbers<[1], [0], [0], [1], [0, 0, 1, 1], [], []>} : vector<8x8xf32>, vector<8x8xf32>, vector<8x8xf32> -> vector<8x8xf32>
    %615 = arith.addf %611, %614 : vector<8x8xf32>
    %616 = vector.extract_strided_slice %587 {offsets = [16, 0], sizes = [8, 8], strides = [1, 1]} : vector<24x8xf32> to vector<8x8xf32>
    %617 = arith.addf %615, %616 : vector<8x8xf32>
    %618 = math.tanh %617 : vector<8x8xf32>
    %cst_192 = arith.constant 1.000000e+00 : f32
    %619 = vector.broadcast %cst_192 : f32 to vector<8x8xf32>
    %620 = arith.subf %619, %600 : vector<8x8xf32>
    %621 = arith.mulf %620, %584 : vector<8x8xf32>
    %622 = arith.mulf %600, %618 : vector<8x8xf32>
    %623 = arith.addf %621, %622 : vector<8x8xf32>
    %c0_193 = arith.constant 0 : index
    %c0_194 = arith.constant 0 : index
    %624 = vector.load %arg22[%c0_193, %c0_194] : memref<8x8xf32, #tpu.memory_space<vmem>>, vector<8x8xf32>
    tpu.vector_store %arg22[%c0_193, %c0_194], %623 {strides = array<i32>} : memref<8x8xf32, #tpu.memory_space<vmem>>, vector<8x8xf32>,
    %cst_195 = arith.constant dense<0.000000e+00> : vector<16x8xf32>
    %625 = tpu.matmul %422, %623, %cst_195 {dimension_numbers = #tpu.dot_dimension_numbers<[1], [0], [0], [1], [0, 0, 1, 1], [], []>} : vector<16x8xf32>, vector<8x8xf32>, vector<16x8xf32> -> vector<16x8xf32>
    %cst_196 = arith.constant 0.000000e+00 : f32
    %626 = vector.broadcast %cst_196 : f32 to vector<16x8xf32>
    %627 = arith.maximumf %625, %626 : vector<16x8xf32>
    %c0_197 = arith.constant 0 : index
    %c0_198 = arith.constant 0 : index
    %c0_199 = arith.constant 0 : index
    %628 = vector.load %arg19[%c0_197, %c0_198, %c0_199] : memref<1x16x8xf32, #tpu.memory_space<vmem>>, vector<1x16x8xf32>
    %629 = vector.shape_cast %628 : vector<1x16x8xf32> to vector<16x8xf32>
    %630 = vector.shape_cast %627 : vector<16x8xf32> to vector<1x16x8xf32>
    tpu.vector_store %arg19[%c0_197, %c0_198, %c0_199], %630 {strides = array<i32>} : memref<1x16x8xf32, #tpu.memory_space<vmem>>, vector<1x16x8xf32>,
    return
  }
  func.func @transform_0(%arg0: i32) -> (i32, i32, i32) {
    %c0_i32 = arith.constant 0 : i32
    %c0_i32_0 = arith.constant 0 : i32
    %c0_i32_1 = arith.constant 0 : i32
    return %arg0, %c0_i32, %c0_i32_0 : i32, i32, i32
  }
  func.func @transform_1(%arg0: i32) -> (i32, i32, i32) {
    %c0_i32 = arith.constant 0 : i32
    %c0_i32_0 = arith.constant 0 : i32
    %c0_i32_1 = arith.constant 0 : i32
    return %arg0, %c0_i32, %c0_i32_0 : i32, i32, i32
  }
  func.func @transform_2(%arg0: i32) -> (i32, i32, i32) {
    %c0_i32 = arith.constant 0 : i32
    %c0_i32_0 = arith.constant 0 : i32
    %c0_i32_1 = arith.constant 0 : i32
    return %arg0, %c0_i32, %c0_i32_0 : i32, i32, i32
  }
  func.func @transform_3(%arg0: i32) -> (i32, i32) {
    %c0_i32 = arith.constant 0 : i32
    %c0_i32_0 = arith.constant 0 : i32
    %c0_i32_1 = arith.constant 0 : i32
    return %c0_i32, %c0_i32_0 : i32, i32
  }
  func.func @transform_4(%arg0: i32) -> (i32, i32) {
    %c0_i32 = arith.constant 0 : i32
    %c0_i32_0 = arith.constant 0 : i32
    %c0_i32_1 = arith.constant 0 : i32
    return %c0_i32, %c0_i32_0 : i32, i32
  }
  func.func @transform_5(%arg0: i32) -> (i32, i32) {
    %c0_i32 = arith.constant 0 : i32
    %c0_i32_0 = arith.constant 0 : i32
    %c0_i32_1 = arith.constant 0 : i32
    return %c0_i32, %c0_i32_0 : i32, i32
  }
  func.func @transform_6(%arg0: i32) -> (i32, i32) {
    %c0_i32 = arith.constant 0 : i32
    %c0_i32_0 = arith.constant 0 : i32
    %c0_i32_1 = arith.constant 0 : i32
    return %c0_i32, %c0_i32_0 : i32, i32
  }
  func.func @transform_7(%arg0: i32) -> (i32, i32) {
    %c0_i32 = arith.constant 0 : i32
    %c0_i32_0 = arith.constant 0 : i32
    %c0_i32_1 = arith.constant 0 : i32
    return %c0_i32, %c0_i32_0 : i32, i32
  }
  func.func @transform_8(%arg0: i32) -> (i32, i32) {
    %c0_i32 = arith.constant 0 : i32
    %c0_i32_0 = arith.constant 0 : i32
    %c0_i32_1 = arith.constant 0 : i32
    return %c0_i32, %c0_i32_0 : i32, i32
  }
  func.func @transform_9(%arg0: i32) -> (i32, i32) {
    %c0_i32 = arith.constant 0 : i32
    %c0_i32_0 = arith.constant 0 : i32
    %c0_i32_1 = arith.constant 0 : i32
    return %c0_i32, %c0_i32_0 : i32, i32
  }
  func.func @transform_10(%arg0: i32) -> (i32, i32) {
    %c0_i32 = arith.constant 0 : i32
    %c0_i32_0 = arith.constant 0 : i32
    %c0_i32_1 = arith.constant 0 : i32
    return %c0_i32, %c0_i32_0 : i32, i32
  }
  func.func @transform_11(%arg0: i32) -> (i32, i32) {
    %c0_i32 = arith.constant 0 : i32
    %c0_i32_0 = arith.constant 0 : i32
    %c0_i32_1 = arith.constant 0 : i32
    return %c0_i32, %c0_i32_0 : i32, i32
  }
  func.func @transform_12(%arg0: i32) -> (i32, i32) {
    %c0_i32 = arith.constant 0 : i32
    %c0_i32_0 = arith.constant 0 : i32
    %c0_i32_1 = arith.constant 0 : i32
    return %c0_i32, %c0_i32_0 : i32, i32
  }
  func.func @transform_13(%arg0: i32) -> (i32, i32) {
    %c0_i32 = arith.constant 0 : i32
    %c0_i32_0 = arith.constant 0 : i32
    %c0_i32_1 = arith.constant 0 : i32
    return %c0_i32, %c0_i32_0 : i32, i32
  }
  func.func @transform_14(%arg0: i32) -> (i32, i32) {
    %c0_i32 = arith.constant 0 : i32
    %c0_i32_0 = arith.constant 0 : i32
    %c0_i32_1 = arith.constant 0 : i32
    return %c0_i32, %c0_i32_0 : i32, i32
  }
  func.func @transform_15(%arg0: i32) -> (i32, i32) {
    %c0_i32 = arith.constant 0 : i32
    %c0_i32_0 = arith.constant 0 : i32
    %c0_i32_1 = arith.constant 0 : i32
    return %c0_i32, %c0_i32_0 : i32, i32
  }
  func.func @transform_16(%arg0: i32) -> (i32, i32) {
    %c0_i32 = arith.constant 0 : i32
    %c0_i32_0 = arith.constant 0 : i32
    %c0_i32_1 = arith.constant 0 : i32
    return %c0_i32, %c0_i32_0 : i32, i32
  }
  func.func @transform_17(%arg0: i32) -> (i32, i32) {
    %c0_i32 = arith.constant 0 : i32
    %c0_i32_0 = arith.constant 0 : i32
    %c0_i32_1 = arith.constant 0 : i32
    return %c0_i32, %c0_i32_0 : i32, i32
  }
  func.func @transform_18(%arg0: i32) -> (i32, i32, i32) {
    %c0_i32 = arith.constant 0 : i32
    %c0_i32_0 = arith.constant 0 : i32
    %c0_i32_1 = arith.constant 0 : i32
    return %arg0, %c0_i32, %c0_i32_0 : i32, i32, i32
  }
}

</mosaic_0001>

<llo_original>
// kernel: grcu_gin_forward.1
$region0: #{grcu_gin_forward.1}
  #allocation0 [shape = 'u32[]', space=smem, size = 0x4, offset = 0x4, fixed_abs, tag = 'smem constant byte address 0x4 - core index']
  #allocation1 [shape = 'u32[72,128]{1,0:T(1,128)}', space=vmem, size = 0x9000, scoped, tag = 'internal scratch']
  #allocation2 [shape = 'f32[16,8]{1,0:T(8,128)}', space=vmem, size = 0x2000, scoped, tag = 'scratch operand']
  #allocation3 [shape = 'f32[8,8]{1,0:T(8,128)}', space=vmem, size = 0x1000, scoped, tag = 'scratch operand']
  #allocation4 [shape = 'f32[8,8]{1,0:T(8,128)}', space=vmem, size = 0x1000, scoped, tag = 'scratch operand']
  #allocation5 [shape = 'f32[16,16]{1,0:T(8,128)}', space=vmem, size = 0x2000, scoped, tag = 'scratch operand']
  #allocation6 [shape = 'f32[16,8]{1,0:T(8,128)}', space=vmem, size = 0x2000, scoped, tag = 'scratch operand']
  #allocation7 [shape = 'f32[16,8]{1,0:T(8,128)}', space=vmem, size = 0x2000, scoped, tag = 'scratch operand']
  %s0 = inlined_call_operand.vmem [shape: bf16[3,16,16], index: 0, kind: input, shape index: {}]
  %s1 = inlined_call_operand.vmem [shape: f32[3,16,16], index: 1, kind: input, shape index: {}]
  %s2 = inlined_call_operand.vmem [shape: f32[3,1,16], index: 2, kind: input, shape index: {}]
  %s3 = inlined_call_operand.vmem [shape: f32[16,8], index: 3, kind: input, shape index: {}]
  %s4 = inlined_call_operand.vmem [shape: f32[8,8], index: 4, kind: input, shape index: {}]
  %s5 = inlined_call_operand.vmem [shape: f32[8,8], index: 5, kind: input, shape index: {}]
  %s6 = inlined_call_operand.vmem [shape: f32[1,16], index: 6, kind: input, shape index: {}]
  %s7 = inlined_call_operand.vmem [shape: f32[48,16], index: 7, kind: input, shape index: {}]
  %s8 = inlined_call_operand.vmem [shape: f32[48,16], index: 8, kind: input, shape index: {}]
  %s9 = inlined_call_operand.vmem [shape: f32[48,8], index: 9, kind: input, shape index: {}]
  %s10 = inlined_call_operand.vmem [shape: f32[1,8], index: 10, kind: input, shape index: {}]
  %s11 = inlined_call_operand.vmem [shape: f32[24,8], index: 11, kind: input, shape index: {}]
  %s12 = inlined_call_operand.vmem [shape: f32[24,8], index: 12, kind: input, shape index: {}]
  %s13 = inlined_call_operand.vmem [shape: f32[24,8], index: 13, kind: input, shape index: {}]
  %s14 = inlined_call_operand.vmem [shape: f32[1,8], index: 14, kind: input, shape index: {}]
  %s15 = inlined_call_operand.vmem [shape: f32[24,8], index: 15, kind: input, shape index: {}]
  %s16 = inlined_call_operand.vmem [shape: f32[24,8], index: 16, kind: input, shape index: {}]
  %s17 = inlined_call_operand.vmem [shape: f32[24,8], index: 17, kind: input, shape index: {}]
  %s18 = inlined_call_operand.vmem [shape: f32[3,16,8], index: 18, kind: output, shape index: {}]
  %s19 = sld [smem:[#allocation0]]
  $region109: #{grcu_gin_forward.1} parent=0
    _
  %s21 = ssub.s32 1, %s19
  %s22 = scalar_select 0, %s21, %s19
  loop: start=0, step=1, limit=5
  $region2: #{grcu_gin_forward.1} parent=0 // loop_pre_header
    _
  $region3: #{grcu_gin_forward.1} parent=0 // loop_header
    %s24 = sphi 0, %s28
    %p25 = scmp.ge.s32.totalorder %s24, 5
    %s34 = sphi 0, %s36
    %s37 = sphi 0, %s34
    %s38 = sphi 0, %s37
    %s54 = sphi 0, %s38
    %s60 = sphi 0, %s62
    %s63 = sphi 0, %s60
    %s64 = sphi 0, %s63
    %s80 = sphi 0, %s64
    %s86 = sphi 0, %s88
    %s89 = sphi 0, %s86
    %s90 = sphi 0, %s89
    %s106 = sphi 0, %s90
    %s110 = sphi 0, %s110
    %s112 = sphi 0, %s110
    %s113 = sphi 0, %s112
    %s127 = sphi 0, %s113
    %s131 = sphi 0, %s131
    %s133 = sphi 0, %s131
    %s134 = sphi 0, %s133
    %s148 = sphi 0, %s134
    %s152 = sphi 0, %s152
    %s154 = sphi 0, %s152
    %s155 = sphi 0, %s154
    %s169 = sphi 0, %s155
    %s173 = sphi 0, %s173
    %s175 = sphi 0, %s173
    %s176 = sphi 0, %s175
    %s190 = sphi 0, %s176
    %s194 = sphi 0, %s194
    %s196 = sphi 0, %s194
    %s197 = sphi 0, %s196
    %s211 = sphi 0, %s197
    %s215 = sphi 0, %s215
    %s217 = sphi 0, %s215
    %s218 = sphi 0, %s217
    %s232 = sphi 0, %s218
    %s236 = sphi 0, %s236
    %s238 = sphi 0, %s236
    %s239 = sphi 0, %s238
    %s253 = sphi 0, %s239
    %s257 = sphi 0, %s257
    %s259 = sphi 0, %s257
    %s260 = sphi 0, %s259
    %s274 = sphi 0, %s260
    %s278 = sphi 0, %s278
    %s280 = sphi 0, %s278
    %s281 = sphi 0, %s280
    %s295 = sphi 0, %s281
    %s299 = sphi 0, %s299
    %s301 = sphi 0, %s299
    %s302 = sphi 0, %s301
    %s316 = sphi 0, %s302
    %s320 = sphi 0, %s320
    %s322 = sphi 0, %s320
    %s323 = sphi 0, %s322
    %s337 = sphi 0, %s323
    %s341 = sphi 0, %s341
    %s343 = sphi 0, %s341
    %s344 = sphi 0, %s343
    %s358 = sphi 0, %s344
    %s362 = sphi 0, %s362
    %s364 = sphi 0, %s362
    %s365 = sphi 0, %s364
    %s379 = sphi 0, %s365
    %s383 = sphi 0, %s383
    %s385 = sphi 0, %s383
    %s386 = sphi 0, %s385
    %s400 = sphi 0, %s386
    %s404 = sphi 0, %s404
    %s406 = sphi 0, %s404
    %s407 = sphi 0, %s406
    %s421 = sphi 0, %s407
    %s427 = sphi 0, %s429
    %s430 = sphi 0, %s427
    %s431 = sphi 0, %s430
    %s447 = sphi 0, %s431
  $region4: #{grcu_gin_forward.1} parent=0 // loop_header_branch
    %27 = sbr.rel (%p25) target = $region8
  $region5: #{grcu_gin_forward.1} parent=0 // loop_body
    %s29 = ssub.s32 %s24, 1
    %s30 = ssub.s32 %s24, 2
    %s31 = sadd.s32 %s24, 1
    %s32 = ssub.s32 %s24, %s31
    %p33 = scmp.eq.s32.totalorder %s32, 0
    %s35 = sadd.s32 %s34, 1
    %s36 = scalar_select %p33, %s34, %s35
    %p39 = pneg %p33
    %p40 = scmp.eq.s32.totalorder %s24, 2
    %p41 = por %p39, %p40
    %p42 = scmp.ne.s32.totalorder %s34, %s37
    %p43 = scmp.eq.s32.totalorder %s24, 0
    %p44 = por %p42, %p43
    %p45 = scmp.ne.s32.totalorder %s34, %s37
    %p46 = scmp.eq.s32.totalorder %s29, 2
    %p47 = por %p45, %p46
    %p48 = scmp.ne.s32.totalorder %s37, %s38
    %p49 = scmp.eq.s32.totalorder %s29, 0
    %p50 = por %p48, %p49
    %p51 = scmp.ne.s32.totalorder %s37, %s38
    %p52 = scmp.eq.s32.totalorder %s30, 2
    %p53 = por %p51, %p52
    %p55 = scmp.ne.s32.totalorder %s38, %s54
    %p56 = scmp.eq.s32.totalorder %s30, 0
    %p57 = por %p55, %p56
    %s58 = ssub.s32 %s24, %s31
    %p59 = scmp.eq.s32.totalorder %s58, 0
    %s61 = sadd.s32 %s60, 1
    %s62 = scalar_select %p59, %s60, %s61
    %p65 = pneg %p59
    %p66 = scmp.eq.s32.totalorder %s24, 2
    %p67 = por %p65, %p66
    %p68 = scmp.ne.s32.totalorder %s60, %s63
    %p69 = scmp.eq.s32.totalorder %s24, 0
    %p70 = por %p68, %p69
    %p71 = scmp.ne.s32.totalorder %s60, %s63
    %p72 = scmp.eq.s32.totalorder %s29, 2
    %p73 = por %p71, %p72
    %p74 = scmp.ne.s32.totalorder %s63, %s64
    %p75 = scmp.eq.s32.totalorder %s29, 0
    %p76 = por %p74, %p75
    %p77 = scmp.ne.s32.totalorder %s63, %s64
    %p78 = scmp.eq.s32.totalorder %s30, 2
    %p79 = por %p77, %p78
    %p81 = scmp.ne.s32.totalorder %s64, %s80
    %p82 = scmp.eq.s32.totalorder %s30, 0
    %p83 = por %p81, %p82
    %s84 = ssub.s32 %s24, %s31
    %p85 = scmp.eq.s32.totalorder %s84, 0
    %s87 = sadd.s32 %s86, 1
    %s88 = scalar_select %p85, %s86, %s87
    %p91 = pneg %p85
    %p92 = scmp.eq.s32.totalorder %s24, 2
    %p93 = por %p91, %p92
    %p94 = scmp.ne.s32.totalorder %s86, %s89
    %p95 = scmp.eq.s32.totalorder %s24, 0
    %p96 = por %p94, %p95
    %p97 = scmp.ne.s32.totalorder %s86, %s89
    %p98 = scmp.eq.s32.totalorder %s29, 2
    %p99 = por %p97, %p98
    %p100 = scmp.ne.s32.totalorder %s89, %s90
    %p101 = scmp.eq.s32.totalorder %s29, 0
    %p102 = por %p100, %p101
    %p103 = scmp.ne.s32.totalorder %s89, %s90
    %p104 = scmp.eq.s32.totalorder %s30, 2
    %p105 = por %p103, %p104
    %p107 = scmp.ne.s32.totalorder %s90, %s106
    %p108 = scmp.eq.s32.totalorder %s30, 0
    %p109 = por %p107, %p108
    %s111 = sadd.s32 %s110, 1
    %p114 = scmp.eq.s32.totalorder %s24, 2
    %p115 = scmp.ne.s32.totalorder %s110, %s112
    %p116 = scmp.eq.s32.totalorder %s24, 0
    %p117 = por %p115, %p116
    %p118 = scmp.ne.s32.totalorder %s110, %s112
    %p119 = scmp.eq.s32.totalorder %s29, 2
    %p120 = por %p118, %p119
    %p121 = scmp.ne.s32.totalorder %s112, %s113
    %p122 = scmp.eq.s32.totalorder %s29, 0
    %p123 = por %p121, %p122
    %p124 = scmp.ne.s32.totalorder %s112, %s113
    %p125 = scmp.eq.s32.totalorder %s30, 2
    %p126 = por %p124, %p125
    %p128 = scmp.ne.s32.totalorder %s113, %s127
    %p129 = scmp.eq.s32.totalorder %s30, 0
    %p130 = por %p128, %p129
    %s132 = sadd.s32 %s131, 1
    %p135 = scmp.eq.s32.totalorder %s24, 2
    %p136 = scmp.ne.s32.totalorder %s131, %s133
    %p137 = scmp.eq.s32.totalorder %s24, 0
    %p138 = por %p136, %p137
    %p139 = scmp.ne.s32.totalorder %s131, %s133
    %p140 = scmp.eq.s32.totalorder %s29, 2
    %p141 = por %p139, %p140
    %p142 = scmp.ne.s32.totalorder %s133, %s134
    %p143 = scmp.eq.s32.totalorder %s29, 0
    %p144 = por %p142, %p143
    %p145 = scmp.ne.s32.totalorder %s133, %s134
    %p146 = scmp.eq.s32.totalorder %s30, 2
    %p147 = por %p145, %p146
    %p149 = scmp.ne.s32.totalorder %s134, %s148
    %p150 = scmp.eq.s32.totalorder %s30, 0
    %p151 = por %p149, %p150
    %s153 = sadd.s32 %s152, 1
    %p156 = scmp.eq.s32.totalorder %s24, 2
    %p157 = scmp.ne.s32.totalorder %s152, %s154
    %p158 = scmp.eq.s32.totalorder %s24, 0
    %p159 = por %p157, %p158
    %p160 = scmp.ne.s32.totalorder %s152, %s154
    %p161 = scmp.eq.s32.totalorder %s29, 2
    %p162 = por %p160, %p161
    %p163 = scmp.ne.s32.totalorder %s154, %s155
    %p164 = scmp.eq.s32.totalorder %s29, 0
    %p165 = por %p163, %p164
    %p166 = scmp.ne.s32.totalorder %s154, %s155
    %p167 = scmp.eq.s32.totalorder %s30, 2
    %p168 = por %p166, %p167
    %p170 = scmp.ne.s32.totalorder %s155, %s169
    %p171 = scmp.eq.s32.totalorder %s30, 0
    %p172 = por %p170, %p171
    %s174 = sadd.s32 %s173, 1
    %p177 = scmp.eq.s32.totalorder %s24, 2
    %p178 = scmp.ne.s32.totalorder %s173, %s175
    %p179 = scmp.eq.s32.totalorder %s24, 0
    %p180 = por %p178, %p179
    %p181 = scmp.ne.s32.totalorder %s173, %s175
    %p182 = scmp.eq.s32.totalorder %s29, 2
    %p183 = por %p181, %p182
    %p184 = scmp.ne.s32.totalorder %s175, %s176
    %p185 = scmp.eq.s32.totalorder %s29, 0
    %p186 = por %p184, %p185
    %p187 = scmp.ne.s32.totalorder %s175, %s176
    %p188 = scmp.eq.s32.totalorder %s30, 2
    %p189 = por %p187, %p188
    %p191 = scmp.ne.s32.totalorder %s176, %s190
    %p192 = scmp.eq.s32.totalorder %s30, 0
    %p193 = por %p191, %p192
    %s195 = sadd.s32 %s194, 1
    %p198 = scmp.eq.s32.totalorder %s24, 2
    %p199 = scmp.ne.s32.totalorder %s194, %s196
    %p200 = scmp.eq.s32.totalorder %s24, 0
    %p201 = por %p199, %p200
    %p202 = scmp.ne.s32.totalorder %s194, %s196
    %p203 = scmp.eq.s32.totalorder %s29, 2
    %p204 = por %p202, %p203
    %p205 = scmp.ne.s32.totalorder %s196, %s197
    %p206 = scmp.eq.s32.totalorder %s29, 0
    %p207 = por %p205, %p206
    %p208 = scmp.ne.s32.totalorder %s196, %s197
    %p209 = scmp.eq.s32.totalorder %s30, 2
    %p210 = por %p208, %p209
    %p212 = scmp.ne.s32.totalorder %s197, %s211
    %p213 = scmp.eq.s32.totalorder %s30, 0
    %p214 = por %p212, %p213
    %s216 = sadd.s32 %s215, 1
    %p219 = scmp.eq.s32.totalorder %s24, 2
    %p220 = scmp.ne.s32.totalorder %s215, %s217
    %p221 = scmp.eq.s32.totalorder %s24, 0
    %p222 = por %p220, %p221
    %p223 = scmp.ne.s32.totalorder %s215, %s217
    %p224 = scmp.eq.s32.totalorder %s29, 2
    %p225 = por %p223, %p224
    %p226 = scmp.ne.s32.totalorder %s217, %s218
    %p227 = scmp.eq.s32.totalorder %s29, 0
    %p228 = por %p226, %p227
    %p229 = scmp.ne.s32.totalorder %s217, %s218
    %p230 = scmp.eq.s32.totalorder %s30, 2
    %p231 = por %p229, %p230
    %p233 = scmp.ne.s32.totalorder %s218, %s232
    %p234 = scmp.eq.s32.totalorder %s30, 0
    %p235 = por %p233, %p234
    %s237 = sadd.s32 %s236, 1
    %p240 = scmp.eq.s32.totalorder %s24, 2
    %p241 = scmp.ne.s32.totalorder %s236, %s238
    %p242 = scmp.eq.s32.totalorder %s24, 0
    %p243 = por %p241, %p242
    %p244 = scmp.ne.s32.totalorder %s236, %s238
    %p245 = scmp.eq.s32.totalorder %s29, 2
    %p246 = por %p244, %p245
    %p247 = scmp.ne.s32.totalorder %s238, %s239
    %p248 = scmp.eq.s32.totalorder %s29, 0
    %p249 = por %p247, %p248
    %p250 = scmp.ne.s32.totalorder %s238, %s239
    %p251 = scmp.eq.s32.totalorder %s30, 2
    %p252 = por %p250, %p251
    %p254 = scmp.ne.s32.totalorder %s239, %s253
    %p255 = scmp.eq.s32.totalorder %s30, 0
    %p256 = por %p254, %p255
    %s258 = sadd.s32 %s257, 1
    %p261 = scmp.eq.s32.totalorder %s24, 2
    %p262 = scmp.ne.s32.totalorder %s257, %s259
    %p263 = scmp.eq.s32.totalorder %s24, 0
    %p264 = por %p262, %p263
    %p265 = scmp.ne.s32.totalorder %s257, %s259
    %p266 = scmp.eq.s32.totalorder %s29, 2
    %p267 = por %p265, %p266
    %p268 = scmp.ne.s32.totalorder %s259, %s260
    %p269 = scmp.eq.s32.totalorder %s29, 0
    %p270 = por %p268, %p269
    %p271 = scmp.ne.s32.totalorder %s259, %s260
    %p272 = scmp.eq.s32.totalorder %s30, 2
    %p273 = por %p271, %p272
    %p275 = scmp.ne.s32.totalorder %s260, %s274
    %p276 = scmp.eq.s32.totalorder %s30, 0
    %p277 = por %p275, %p276
    %s279 = sadd.s32 %s278, 1
    %p282 = scmp.eq.s32.totalorder %s24, 2
    %p283 = scmp.ne.s32.totalorder %s278, %s280
    %p284 = scmp.eq.s32.totalorder %s24, 0
    %p285 = por %p283, %p284
    %p286 = scmp.ne.s32.totalorder %s278, %s280
    %p287 = scmp.eq.s32.totalorder %s29, 2
    %p288 = por %p286, %p287
    %p289 = scmp.ne.s32.totalorder %s280, %s281
    %p290 = scmp.eq.s32.totalorder %s29, 0
    %p291 = por %p289, %p290
    %p292 = scmp.ne.s32.totalorder %s280, %s281
    %p293 = scmp.eq.s32.totalorder %s30, 2
    %p294 = por %p292, %p293
    %p296 = scmp.ne.s32.totalorder %s281, %s295
    %p297 = scmp.eq.s32.totalorder %s30, 0
    %p298 = por %p296, %p297
    %s300 = sadd.s32 %s299, 1
    %p303 = scmp.eq.s32.totalorder %s24, 2
    %p304 = scmp.ne.s32.totalorder %s299, %s301
    %p305 = scmp.eq.s32.totalorder %s24, 0
    %p306 = por %p304, %p305
    %p307 = scmp.ne.s32.totalorder %s299, %s301
    %p308 = scmp.eq.s32.totalorder %s29, 2
    %p309 = por %p307, %p308
    %p310 = scmp.ne.s32.totalorder %s301, %s302
    %p311 = scmp.eq.s32.totalorder %s29, 0
    %p312 = por %p310, %p311
    %p313 = scmp.ne.s32.totalorder %s301, %s302
    %p314 = scmp.eq.s32.totalorder %s30, 2
    %p315 = por %p313, %p314
    %p317 = scmp.ne.s32.totalorder %s302, %s316
    %p318 = scmp.eq.s32.totalorder %s30, 0
    %p319 = por %p317, %p318
    %s321 = sadd.s32 %s320, 1
    %p324 = scmp.eq.s32.totalorder %s24, 2
    %p325 = scmp.ne.s32.totalorder %s320, %s322
    %p326 = scmp.eq.s32.totalorder %s24, 0
    %p327 = por %p325, %p326
    %p328 = scmp.ne.s32.totalorder %s320, %s322
    %p329 = scmp.eq.s32.totalorder %s29, 2
    %p330 = por %p328, %p329
    %p331 = scmp.ne.s32.totalorder %s322, %s323
    %p332 = scmp.eq.s32.totalorder %s29, 0
    %p333 = por %p331, %p332
    %p334 = scmp.ne.s32.totalorder %s322, %s323
    %p335 = scmp.eq.s32.totalorder %s30, 2
    %p336 = por %p334, %p335
    %p338 = scmp.ne.s32.totalorder %s323, %s337
    %p339 = scmp.eq.s32.totalorder %s30, 0
    %p340 = por %p338, %p339
    %s342 = sadd.s32 %s341, 1
    %p345 = scmp.eq.s32.totalorder %s24, 2
    %p346 = scmp.ne.s32.totalorder %s341, %s343
    %p347 = scmp.eq.s32.totalorder %s24, 0
    %p348 = por %p346, %p347
    %p349 = scmp.ne.s32.totalorder %s341, %s343
    %p350 = scmp.eq.s32.totalorder %s29, 2
    %p351 = por %p349, %p350
    %p352 = scmp.ne.s32.totalorder %s343, %s344
    %p353 = scmp.eq.s32.totalorder %s29, 0
    %p354 = por %p352, %p353
    %p355 = scmp.ne.s32.totalorder %s343, %s344
    %p356 = scmp.eq.s32.totalorder %s30, 2
    %p357 = por %p355, %p356
    %p359 = scmp.ne.s32.totalorder %s344, %s358
    %p360 = scmp.eq.s32.totalorder %s30, 0
    %p361 = por %p359, %p360
    %s363 = sadd.s32 %s362, 1
    %p366 = scmp.eq.s32.totalorder %s24, 2
    %p367 = scmp.ne.s32.totalorder %s362, %s364
    %p368 = scmp.eq.s32.totalorder %s24, 0
    %p369 = por %p367, %p368
    %p370 = scmp.ne.s32.totalorder %s362, %s364
    %p371 = scmp.eq.s32.totalorder %s29, 2
    %p372 = por %p370, %p371
    %p373 = scmp.ne.s32.totalorder %s364, %s365
    %p374 = scmp.eq.s32.totalorder %s29, 0
    %p375 = por %p373, %p374
    %p376 = scmp.ne.s32.totalorder %s364, %s365
    %p377 = scmp.eq.s32.totalorder %s30, 2
    %p378 = por %p376, %p377
    %p380 = scmp.ne.s32.totalorder %s365, %s379
    %p381 = scmp.eq.s32.totalorder %s30, 0
    %p382 = por %p380, %p381
    %s384 = sadd.s32 %s383, 1
    %p387 = scmp.eq.s32.totalorder %s24, 2
    %p388 = scmp.ne.s32.totalorder %s383, %s385
    %p389 = scmp.eq.s32.totalorder %s24, 0
    %p390 = por %p388, %p389
    %p391 = scmp.ne.s32.totalorder %s383, %s385
    %p392 = scmp.eq.s32.totalorder %s29, 2
    %p393 = por %p391, %p392
    %p394 = scmp.ne.s32.totalorder %s385, %s386
    %p395 = scmp.eq.s32.totalorder %s29, 0
    %p396 = por %p394, %p395
    %p397 = scmp.ne.s32.totalorder %s385, %s386
    %p398 = scmp.eq.s32.totalorder %s30, 2
    %p399 = por %p397, %p398
    %p401 = scmp.ne.s32.totalorder %s386, %s400
    %p402 = scmp.eq.s32.totalorder %s30, 0
    %p403 = por %p401, %p402
    %s405 = sadd.s32 %s404, 1
    %p408 = scmp.eq.s32.totalorder %s24, 2
    %p409 = scmp.ne.s32.totalorder %s404, %s406
    %p410 = scmp.eq.s32.totalorder %s24, 0
    %p411 = por %p409, %p410
    %p412 = scmp.ne.s32.totalorder %s404, %s406
    %p413 = scmp.eq.s32.totalorder %s29, 2
    %p414 = por %p412, %p413
    %p415 = scmp.ne.s32.totalorder %s406, %s407
    %p416 = scmp.eq.s32.totalorder %s29, 0
    %p417 = por %p415, %p416
    %p418 = scmp.ne.s32.totalorder %s406, %s407
    %p419 = scmp.eq.s32.totalorder %s30, 2
    %p420 = por %p418, %p419
    %p422 = scmp.ne.s32.totalorder %s407, %s421
    %p423 = scmp.eq.s32.totalorder %s30, 0
    %p424 = por %p422, %p423
    %s425 = ssub.s32 %s24, %s31
    %p426 = scmp.eq.s32.totalorder %s425, 0
    %s428 = sadd.s32 %s427, 1
    %s429 = scalar_select %p426, %s427, %s428
    %p432 = pneg %p426
    %p433 = scmp.eq.s32.totalorder %s24, 2
    %p434 = por %p432, %p433
    %p435 = scmp.ne.s32.totalorder %s427, %s430
    %p436 = scmp.eq.s32.totalorder %s24, 0
    %p437 = por %p435, %p436
    %p438 = scmp.ne.s32.totalorder %s427, %s430
    %p439 = scmp.eq.s32.totalorder %s29, 2
    %p440 = por %p438, %p439
    %p441 = scmp.ne.s32.totalorder %s430, %s431
    %p442 = scmp.eq.s32.totalorder %s29, 0
    %p443 = por %p441, %p442
    %p444 = scmp.ne.s32.totalorder %s430, %s431
    %p445 = scmp.eq.s32.totalorder %s30, 2
    %p446 = por %p444, %p445
    %p448 = scmp.ne.s32.totalorder %s431, %s447
    %p449 = scmp.eq.s32.totalorder %s30, 0
    %p450 = por %p448, %p449
    %p451 = scmp.le.s32.totalorder 1, %s24
    %p452 = scmp.lt.s32.totalorder %s24, 4
    %p453 = pnand %p451, %p452
    %p454 = pneg %p453
    // Predicated region
    $region9: #{grcu_gin_forward.1} parent=5 // pred_check
      _
    $region10: #{grcu_gin_forward.1} parent=5 // pred_check_branch
      %456 = sbr.rel (%p453) target = $region12
    $region11: #{grcu_gin_forward.1} parent=5 // pred_region
      %s457 = ssub.s32 %s24, 1
      // Predicated region
      $region13: #{grcu_gin_forward.1} parent=11 // pred_check
        %p458 = pneg %p123
      $region14: #{grcu_gin_forward.1} parent=11 // pred_check_branch
        %460 = sbr.rel (%p458) target = $region16
      $region15: #{grcu_gin_forward.1} parent=11 // pred_region
        _
      $region16: #{grcu_gin_forward.1} parent=11 // pred_fallthru
        _
      // Predicated region
      $region17: #{grcu_gin_forward.1} parent=11 // pred_check
        %p461 = pneg %p144
      $region18: #{grcu_gin_forward.1} parent=11 // pred_check_branch
        %463 = sbr.rel (%p461) target = $region20
      $region19: #{grcu_gin_forward.1} parent=11 // pred_region
        _
      $region20: #{grcu_gin_forward.1} parent=11 // pred_fallthru
        _
      // Predicated region
      $region21: #{grcu_gin_forward.1} parent=11 // pred_check
        %p464 = pneg %p165
      $region22: #{grcu_gin_forward.1} parent=11 // pred_check_branch
        %466 = sbr.rel (%p464) target = $region24
      $region23: #{grcu_gin_forward.1} parent=11 // pred_region
        _
      $region24: #{grcu_gin_forward.1} parent=11 // pred_fallthru
        _
      // Predicated region
      $region25: #{grcu_gin_forward.1} parent=11 // pred_check
        %p467 = pneg %p186
      $region26: #{grcu_gin_forward.1} parent=11 // pred_check_branch
        %469 = sbr.rel (%p467) target = $region28
      $region27: #{grcu_gin_forward.1} parent=11 // pred_region
        _
      $region28: #{grcu_gin_forward.1} parent=11 // pred_fallthru
        _
      // Predicated region
      $region29: #{grcu_gin_forward.1} parent=11 // pred_check
        %p470 = pneg %p207
      $region30: #{grcu_gin_forward.1} parent=11 // pred_check_branch
        %472 = sbr.rel (%p470) target = $region32
      $region31: #{grcu_gin_forward.1} parent=11 // pred_region
        _
      $region32: #{grcu_gin_forward.1} parent=11 // pred_fallthru
        _
      // Predicated region
      $region33: #{grcu_gin_forward.1} parent=11 // pred_check
        %p473 = pneg %p228
      $region34: #{grcu_gin_forward.1} parent=11 // pred_check_branch
        %475 = sbr.rel (%p473) target = $region36
      $region35: #{grcu_gin_forward.1} parent=11 // pred_region
        _
      $region36: #{grcu_gin_forward.1} parent=11 // pred_fallthru
        _
      // Predicated region
      $region37: #{grcu_gin_forward.1} parent=11 // pred_check
        %p476 = pneg %p249
      $region38: #{grcu_gin_forward.1} parent=11 // pred_check_branch
        %478 = sbr.rel (%p476) target = $region40
      $region39: #{grcu_gin_forward.1} parent=11 // pred_region
        _
      $region40: #{grcu_gin_forward.1} parent=11 // pred_fallthru
        _
      // Predicated region
      $region41: #{grcu_gin_forward.1} parent=11 // pred_check
        %p479 = pneg %p270
      $region42: #{grcu_gin_forward.1} parent=11 // pred_check_branch
        %481 = sbr.rel (%p479) target = $region44
      $region43: #{grcu_gin_forward.1} parent=11 // pred_region
        _
      $region44: #{grcu_gin_forward.1} parent=11 // pred_fallthru
        _
      // Predicated region
      $region45: #{grcu_gin_forward.1} parent=11 // pred_check
        %p482 = pneg %p291
      $region46: #{grcu_gin_forward.1} parent=11 // pred_check_branch
        %484 = sbr.rel (%p482) target = $region48
      $region47: #{grcu_gin_forward.1} parent=11 // pred_region
        _
      $region48: #{grcu_gin_forward.1} parent=11 // pred_fallthru
        _
      // Predicated region
      $region49: #{grcu_gin_forward.1} parent=11 // pred_check
        %p485 = pneg %p312
      $region50: #{grcu_gin_forward.1} parent=11 // pred_check_branch
        %487 = sbr.rel (%p485) target = $region52
      $region51: #{grcu_gin_forward.1} parent=11 // pred_region
        _
      $region52: #{grcu_gin_forward.1} parent=11 // pred_fallthru
        _
      // Predicated region
      $region53: #{grcu_gin_forward.1} parent=11 // pred_check
        %p488 = pneg %p333
      $region54: #{grcu_gin_forward.1} parent=11 // pred_check_branch
        %490 = sbr.rel (%p488) target = $region56
      $region55: #{grcu_gin_forward.1} parent=11 // pred_region
        _
      $region56: #{grcu_gin_forward.1} parent=11 // pred_fallthru
        _
      // Predicated region
      $region57: #{grcu_gin_forward.1} parent=11 // pred_check
        %p491 = pneg %p354
      $region58: #{grcu_gin_forward.1} parent=11 // pred_check_branch
        %493 = sbr.rel (%p491) target = $region60
      $region59: #{grcu_gin_forward.1} parent=11 // pred_region
        _
      $region60: #{grcu_gin_forward.1} parent=11 // pred_fallthru
        _
      // Predicated region
      $region61: #{grcu_gin_forward.1} parent=11 // pred_check
        %p494 = pneg %p375
      $region62: #{grcu_gin_forward.1} parent=11 // pred_check_branch
        %496 = sbr.rel (%p494) target = $region64
      $region63: #{grcu_gin_forward.1} parent=11 // pred_region
        _
      $region64: #{grcu_gin_forward.1} parent=11 // pred_fallthru
        _
      // Predicated region
      $region65: #{grcu_gin_forward.1} parent=11 // pred_check
        %p497 = pneg %p396
      $region66: #{grcu_gin_forward.1} parent=11 // pred_check_branch
        %499 = sbr.rel (%p497) target = $region68
      $region67: #{grcu_gin_forward.1} parent=11 // pred_region
        _
      $region68: #{grcu_gin_forward.1} parent=11 // pred_fallthru
        _
      // Predicated region
      $region69: #{grcu_gin_forward.1} parent=11 // pred_check
        %p500 = pneg %p417
      $region70: #{grcu_gin_forward.1} parent=11 // pred_check_branch
        %502 = sbr.rel (%p500) target = $region72
      $region71: #{grcu_gin_forward.1} parent=11 // pred_region
        _
      $region72: #{grcu_gin_forward.1} parent=11 // pred_fallthru
        _
    $region12: #{grcu_gin_forward.1} parent=5 // pred_fallthru
      _
    %p503 = scmp.lt.s32.totalorder %s24, 3
    // Predicated region
    $region73: #{grcu_gin_forward.1} parent=5 // pred_check
      %p504 = pneg %p503
    $region74: #{grcu_gin_forward.1} parent=5 // pred_check_branch
      %506 = sbr.rel (%p504) target = $region76
    $region75: #{grcu_gin_forward.1} parent=5 // pred_region
      // Predicated region
      $region77: #{grcu_gin_forward.1} parent=75 // pred_check
        %p507 = pneg %p44
      $region78: #{grcu_gin_forward.1} parent=75 // pred_check_branch
        %509 = sbr.rel (%p507) target = $region80
      $region79: #{grcu_gin_forward.1} parent=75 // pred_region
        %p510 = scmp.lt.s32.totalorder %s24, 2
        %s511 = scalar_select %p510, %s24, 2
        %s512 = smul.addr %s511, 2
        %s513 = smul.addr %s512, 4
        %s514 = scalar_lea.vmem %s0, %s513
      $region80: #{grcu_gin_forward.1} parent=75 // pred_fallthru
        _
      // Predicated region
      $region81: #{grcu_gin_forward.1} parent=75 // pred_check
        %p515 = pneg %p70
      $region82: #{grcu_gin_forward.1} parent=75 // pred_check_branch
        %517 = sbr.rel (%p515) target = $region84
      $region83: #{grcu_gin_forward.1} parent=75 // pred_region
        %p518 = scmp.lt.s32.totalorder %s24, 2
        %s519 = scalar_select %p518, %s24, 2
        %s520 = smul.addr %s519, 2
        %s521 = smul.addr %s520, 8
        %s522 = scalar_lea.vmem %s1, %s521
      $region84: #{grcu_gin_forward.1} parent=75 // pred_fallthru
        _
      // Predicated region
      $region85: #{grcu_gin_forward.1} parent=75 // pred_check
        %p523 = pneg %p96
      $region86: #{grcu_gin_forward.1} parent=75 // pred_check_branch
        %525 = sbr.rel (%p523) target = $region88
      $region87: #{grcu_gin_forward.1} parent=75 // pred_region
        %p526 = scmp.lt.s32.totalorder %s24, 2
        %s527 = scalar_select %p526, %s24, 2
        %s528 = scalar_lea.vmem %s2, %s527
      $region88: #{grcu_gin_forward.1} parent=75 // pred_fallthru
        _
    $region76: #{grcu_gin_forward.1} parent=5 // pred_fallthru
      _
    %p529 = scmp.le.s32.totalorder 1, %s24
    %p530 = scmp.lt.s32.totalorder %s24, 4
    %p531 = pnand %p529, %p530
    %p532 = pneg %p531
    // Predicated region
    $region89: #{grcu_gin_forward.1} parent=5 // pred_check
      _
    $region90: #{grcu_gin_forward.1} parent=5 // pred_check_branch
      %534 = sbr.rel (%p531) target = $region92
    $region91: #{grcu_gin_forward.1} parent=5 // pred_region
      %s535 = ssub.s32 %s24, 1
      %p536 = scmp.lt.s32.totalorder %s29, 2
      %s537 = scalar_select %p536, %s29, 2
      %s538 = smul.addr %s537, 2
      %s539 = smul.addr %s538, 4
      %s540 = scalar_lea.vmem %s0, %s539
      %p541 = pneg %p50
      %p542 = pneg %p47
      %p543 = scmp.lt.s32.totalorder %s29, 2
      %s544 = scalar_select %p543, %s29, 2
      %s545 = smul.addr %s544, 2
      %s546 = smul.addr %s545, 8
      %s547 = scalar_lea.vmem %s1, %s546
      %p548 = pneg %p76
      %p549 = pneg %p73
      %p550 = scmp.lt.s32.totalorder %s29, 2
      %s551 = scalar_select %p550, %s29, 2
      %s552 = scalar_lea.vmem %s2, %s551
      %p553 = pneg %p102
      %p554 = pneg %p99
      %p555 = pneg %p123
      %p556 = pneg %p120
      %p557 = pneg %p144
      %p558 = pneg %p141
      %p559 = pneg %p165
      %p560 = pneg %p162
      %p561 = pneg %p186
      %p562 = pneg %p183
      %p563 = pneg %p207
      %p564 = pneg %p204
      %p565 = pneg %p228
      %p566 = pneg %p225
      %p567 = pneg %p249
      %p568 = pneg %p246
      %p569 = pneg %p270
      %p570 = pneg %p267
      %p571 = pneg %p291
      %p572 = pneg %p288
      %p573 = pneg %p312
      %p574 = pneg %p309
      %p575 = pneg %p333
      %p576 = pneg %p330
      %p577 = pneg %p354
      %p578 = pneg %p351
      %p579 = pneg %p375
      %p580 = pneg %p372
      %p581 = pneg %p396
      %p582 = pneg %p393
      %p583 = pneg %p417
      %p584 = pneg %p414
      %p585 = pneg %p443
      %p586 = pneg %p440
      %p587 = scmp.lt.s32.totalorder %s29, 2
      %s588 = scalar_select %p587, %s29, 2
      %s589 = smul.addr %s588, 2
      %s590 = smul.addr %s589, 8
      %s591 = scalar_lea.vmem %s18, %s590
      %p592 = scmp.lt.s32.totalorder %s29, 2
      %s593 = scalar_select %p592, %s29, 2
      %s594 = smul.addr %s593, 2
      %s595 = smul.addr %s594, 4
      %s596 = scalar_lea.vmem %s0, %s595
      %p597 = scmp.lt.s32.totalorder %s29, 2
      %s598 = scalar_select %p597, %s29, 2
      %s599 = smul.addr %s598, 2
      %s600 = smul.addr %s599, 8
      %s601 = scalar_lea.vmem %s1, %s600
      %p602 = scmp.lt.s32.totalorder %s29, 2
      %s603 = scalar_select %p602, %s29, 2
      %s604 = scalar_lea.vmem %s2, %s603
      %p605 = scmp.lt.s32.totalorder %s29, 2
      %s606 = scalar_select %p605, %s29, 2
      %s607 = smul.addr %s606, 2
      %s608 = smul.addr %s607, 8
      %s609 = scalar_lea.vmem %s18, %s608
      %p610 = scmp.eq.s32.totalorder %s29, 0
      // Predicated region
      $region93: #{grcu_gin_forward.1} parent=91 // pred_check
        %p611 = pneg %p610
      $region94: #{grcu_gin_forward.1} parent=91 // pred_check_branch
        %613 = sbr.rel (%p611) target = $region96
      $region95: #{grcu_gin_forward.1} parent=91 // pred_region
        %v614 = vld [vmem:[%s3] sm:$0xff]
        %v615 = vld [vmem:[%s3 + $0x8] sm:$0xff]
        %vm616 = vcmask 64512
        %617 = vst.msk [vmem:[#allocation2] sm:$0xff] %vm616, %v614
        %618 = vst.msk [vmem:[#allocation2 + $0x8] sm:$0xff] %vm616, %v615
        %v619 = vld [vmem:[%s4] sm:$0xff]
        %620 = vst.msk [vmem:[#allocation3] sm:$0xff] %vm616, %v619
        %v621 = vld [vmem:[%s5] sm:$0xff]
        %622 = vst.msk [vmem:[#allocation4] sm:$0xff] %vm616, %v621
      $region96: #{grcu_gin_forward.1} parent=91 // pred_fallthru
        _
      %v623 = vld [vmem:[%s604] sm:$0x1]
      %v624 = vlaneseq
      %v625 = vand.u32 %v624, 127
      %v626 = vld [vmem:[%s601] sm:$0xff]
      %v627 = vld [vmem:[%s601 + $0x8] sm:$0xff]
      %v628 = vld [vmem:[%s596] sm:$0xf]
      %v629 = vld [vmem:[%s596 + $0x4] sm:$0xf]
      %v630 = vunpack.c.l.bf16 %v628
      %v631 = vunpack.c.l.bf16 %v629
      %vm632 = vcmask 130048
      %v634 = vsel %vm632, %v630, 0
      %v637 = vsel %vm632, %v631, 0
      %639 = vmatpush.msra.mxu0 0.0
      %640 = vmatpush.msra.mxu0 0.0
      %641 = vmatpush.msra.mxu0 0.0
      %642 = vmatpush.msra.mxu0 0.0
      %643 = vmatpush.msra.mxu0 0.0
      %644 = vmatpush.msra.mxu0 0.0
      %645 = vmatpush.msra.mxu0 0.0
      %646 = vmatpush.msra.mxu0 0.0
      %647 = vmatpush.msra.mxu0 0.0
      %648 = vmatpush.msra.mxu0 0.0
      %649 = vmatpush.msra.mxu0 0.0
      %650 = vmatpush.msra.mxu0 0.0
      %651 = vmatpush.msra.mxu0 0.0
      %652 = vmatpush.msra.mxu0 0.0
      %653 = vmatpush.msra.mxu0 %v627
      %654 = vmatpush.msra.mxu0 %v626
      %655 = vmatmul.f32.gmra.mxu0 %v634
      %v656 = vpop.f32.mrf.mxu0
      %v657 = vadd.f32 0.0, %v656
      %658 = vmatmul.f32.gmra.mxu0 %v637
      %v659 = vpop.f32.mrf.mxu0
      %v660 = vadd.f32 0.0, %v659
      %661 = vdwg.mxu0
      %v662 = vadd.f32 %v626, %v657
      %v663 = vadd.f32 %v627, %v660
      %664 = vst.msk [vmem:[#allocation5] sm:$0xff] %vm632, %v662
      %665 = vst.msk [vmem:[#allocation5 + $0x8] sm:$0xff] %vm632, %v663
      %v666 = vld [vmem:[%s6] sm:$0x1]
      %v667 = vmul.f32 %v666, %v666
      %vm668 = vcmask 122880
      %v669 = vsel %vm668, %v667, 0.0
      %670 = vadd.xlane.f32.xlu0 %v669
      %v671 = vpop.xlane.xlu0 %670
      %v672 = vrot.slane %v671, 4
      %v673 = vadd.f32 %v671, %v672
      %v674 = vrot.slane %v673, 2
      %v675 = vadd.f32 %v673, %v674
      %v676 = vrot.slane %v675, 1
      %v677 = vadd.f32 %v675, %v676
      %s678 = vtos %v677
      %v679 = vstv %s678
      %v680 = vrsqrt.pop %v679
      %v681 = vmul.f32 %v680, %v679
      %v682 = vmul.f32 %v681, %v680
      %v683 = vmul.f32 0.5, %v682
      %v684 = vsub.f32 1.5, %v683
      %v685 = vmul.f32 %v680, %v684
      %vm686 = vweird.f32 %v679
      %vm687 = vweird.f32 %v680
      %vm688 = vmor %vm686, %vm687
      %v689 = vsel %vm688, %v680, %v685
      %s690 = vtos %v689
      %v692 = vsel %vm632, %v666, 0
      %v695 = vsel %vm632, %v662, 0
      %v698 = vsel %vm632, %v663, 0
      %700 = vmatpush.xpose.msra.mxu0 0.0
      %701 = vmatpush.xpose.msra.mxu0 0.0
      %702 = vmatpush.xpose.msra.mxu0 0.0
      %703 = vmatpush.xpose.msra.mxu0 0.0
      %704 = vmatpush.xpose.msra.mxu0 0.0
      %705 = vmatpush.xpose.msra.mxu0 0.0
      %706 = vmatpush.xpose.msra.mxu0 0.0
      %707 = vmatpush.xpose.msra.mxu0 0.0
      %708 = vmatpush.xpose.msra.mxu0 0.0
      %709 = vmatpush.xpose.msra.mxu0 0.0
      %710 = vmatpush.xpose.msra.mxu0 0.0
      %711 = vmatpush.xpose.msra.mxu0 0.0
      %712 = vmatpush.xpose.msra.mxu0 0.0
      %713 = vmatpush.xpose.msra.mxu0 0.0
      %714 = vmatpush.xpose.msra.mxu0 %v698
      %715 = vmatpush.xpose.msra.mxu0 %v695
      %716 = vmatmul.f32.gmra.mxu0 %v692
      %v717 = vpop.f32.mrf.mxu0
      %v718 = vadd.f32 0.0, %v717
      %719 = vdwg.mxu0
      %v720 = vstv %s690
      %v721 = vmul.f32 %v718, %v720
      %v722 = vadd.f32 %v721, %v623
      %v723 = vsel %vm668, %v722, -inf
      %724 = vmax.xlane.f32.xlu0 %v723
      %v725 = vpop.xlane.xlu0 %724
      %vm726 = vcmp.eq.f32.partialorder %v722, %v725
      %v727 = vsel %vm726, %v625, 16
      %v728 = vsel %vm668, %v727, 2147483647
      %v729 = vand.u32 %v728, 65535
      %v730 = vshra.s32 %v728, 16
      %v731 = vcvt.s32.f32 %v729
      %v732 = vcvt.s32.f32 %v730
      %733 = vmin.xlane.f32.xlu0 %v732
      %v734 = vpop.xlane.xlu0 %733
      %vm735 = vcmp.eq.f32.partialorder %v732, %v734
      %v736 = vsel %vm735, %v731, inf
      %737 = vmin.xlane.f32.xlu0 %v736
      %v738 = vpop.xlane.xlu0 %737
      %v739 = vcvt.f32.s32 %v738
      %v740 = vcvt.f32.s32 %v734
      %v741 = vshll.u32 %v740, 16
      %v742 = vadd.s32 %v741, %v739
      %v743 = vrot.slane %v742, 4
      %vm744 = vcmp.lt.s32.totalorder %v742, %v743
      %v745 = vsel %vm744, %v742, %v743
      %v746 = vrot.slane %v745, 2
      %vm747 = vcmp.lt.s32.totalorder %v745, %v746
      %v748 = vsel %vm747, %v745, %v746
      %v749 = vrot.slane %v748, 1
      %vm750 = vcmp.lt.s32.totalorder %v748, %v749
      %v751 = vsel %vm750, %v748, %v749
      %s752 = vtos %v751
      %s753 = scalar_lea.vmem [#allocation5], %s752
      %v754 = vld [vmem:[%s753] sm:$0x1]
      %v755 = vtanh.pop %v725
      %v756 = vmul.f32 %v754, %v755
      %v757 = vstv %s752
      %vm758 = vcmp.eq.s32.totalorder %v625, %v757
      %v759 = vsel %vm758, -inf, %v722
      %v760 = vsel %vm668, %v759, -inf
      %761 = vmax.xlane.f32.xlu0 %v760
      %v762 = vpop.xlane.xlu0 %761
      %vm763 = vcmp.eq.f32.partialorder %v759, %v762
      %v764 = vsel %vm763, %v625, 16
      %v765 = vsel %vm668, %v764, 2147483647
      %v766 = vand.u32 %v765, 65535
      %v767 = vshra.s32 %v765, 16
      %v768 = vcvt.s32.f32 %v766
      %v769 = vcvt.s32.f32 %v767
      %770 = vmin.xlane.f32.xlu0 %v769
      %v771 = vpop.xlane.xlu0 %770
      %vm772 = vcmp.eq.f32.partialorder %v769, %v771
      %v773 = vsel %vm772, %v768, inf
      %774 = vmin.xlane.f32.xlu0 %v773
      %v775 = vpop.xlane.xlu0 %774
      %v776 = vcvt.f32.s32 %v775
      %v777 = vcvt.f32.s32 %v771
      %v778 = vshll.u32 %v777, 16
      %v779 = vadd.s32 %v778, %v776
      %v780 = vrot.slane %v779, 4
      %vm781 = vcmp.lt.s32.totalorder %v779, %v780
      %v782 = vsel %vm781, %v779, %v780
      %v783 = vrot.slane %v782, 2
      %vm784 = vcmp.lt.s32.totalorder %v782, %v783
      %v785 = vsel %vm784, %v782, %v783
      %v786 = vrot.slane %v785, 1
      %vm787 = vcmp.lt.s32.totalorder %v785, %v786
      %v788 = vsel %vm787, %v785, %v786
      %s789 = vtos %v788
      %s790 = scalar_lea.vmem [#allocation5], %s789
      %v791 = vld [vmem:[%s790] sm:$0x1]
      %v792 = vtanh.pop %v762
      %v793 = vmul.f32 %v791, %v792
      %v794 = vstv %s789
      %vm795 = vcmp.eq.s32.totalorder %v625, %v794
      %v796 = vsel %vm795, -inf, %v759
      %v797 = vsel %vm668, %v796, -inf
      %798 = vmax.xlane.f32.xlu0 %v797
      %v799 = vpop.xlane.xlu0 %798
      %vm800 = vcmp.eq.f32.partialorder %v796, %v799
      %v801 = vsel %vm800, %v625, 16
      %v802 = vsel %vm668, %v801, 2147483647
      %v803 = vand.u32 %v802, 65535
      %v804 = vshra.s32 %v802, 16
      %v805 = vcvt.s32.f32 %v803
      %v806 = vcvt.s32.f32 %v804
      %807 = vmin.xlane.f32.xlu0 %v806
      %v808 = vpop.xlane.xlu0 %807
      %vm809 = vcmp.eq.f32.partialorder %v806, %v808
      %v810 = vsel %vm809, %v805, inf
      %811 = vmin.xlane.f32.xlu0 %v810
      %v812 = vpop.xlane.xlu0 %811
      %v813 = vcvt.f32.s32 %v812
      %v814 = vcvt.f32.s32 %v808
      %v815 = vshll.u32 %v814, 16
      %v816 = vadd.s32 %v815, %v813
      %v817 = vrot.slane %v816, 4
      %vm818 = vcmp.lt.s32.totalorder %v816, %v817
      %v819 = vsel %vm818, %v816, %v817
      %v820 = vrot.slane %v819, 2
      %vm821 = vcmp.lt.s32.totalorder %v819, %v820
      %v822 = vsel %vm821, %v819, %v820
      %v823 = vrot.slane %v822, 1
      %vm824 = vcmp.lt.s32.totalorder %v822, %v823
      %v825 = vsel %vm824, %v822, %v823
      %s826 = vtos %v825
      %s827 = scalar_lea.vmem [#allocation5], %s826
      %v828 = vld [vmem:[%s827] sm:$0x1]
      %v829 = vtanh.pop %v799
      %v830 = vmul.f32 %v828, %v829
      %v831 = vstv %s826
      %vm832 = vcmp.eq.s32.totalorder %v625, %v831
      %v833 = vsel %vm832, -inf, %v796
      %v834 = vsel %vm668, %v833, -inf
      %835 = vmax.xlane.f32.xlu0 %v834
      %v836 = vpop.xlane.xlu0 %835
      %vm837 = vcmp.eq.f32.partialorder %v833, %v836
      %v838 = vsel %vm837, %v625, 16
      %v839 = vsel %vm668, %v838, 2147483647
      %v840 = vand.u32 %v839, 65535
      %v841 = vshra.s32 %v839, 16
      %v842 = vcvt.s32.f32 %v840
      %v843 = vcvt.s32.f32 %v841
      %844 = vmin.xlane.f32.xlu0 %v843
      %v845 = vpop.xlane.xlu0 %844
      %vm846 = vcmp.eq.f32.partialorder %v843, %v845
      %v847 = vsel %vm846, %v842, inf
      %848 = vmin.xlane.f32.xlu0 %v847
      %v849 = vpop.xlane.xlu0 %848
      %v850 = vcvt.f32.s32 %v849
      %v851 = vcvt.f32.s32 %v845
      %v852 = vshll.u32 %v851, 16
      %v853 = vadd.s32 %v852, %v850
      %v854 = vrot.slane %v853, 4
      %vm855 = vcmp.lt.s32.totalorder %v853, %v854
      %v856 = vsel %vm855, %v853, %v854
      %v857 = vrot.slane %v856, 2
      %vm858 = vcmp.lt.s32.totalorder %v856, %v857
      %v859 = vsel %vm858, %v856, %v857
      %v860 = vrot.slane %v859, 1
      %vm861 = vcmp.lt.s32.totalorder %v859, %v860
      %v862 = vsel %vm861, %v859, %v860
      %s863 = vtos %v862
      %s864 = scalar_lea.vmem [#allocation5], %s863
      %v865 = vld [vmem:[%s864] sm:$0x1]
      %v866 = vtanh.pop %v836
      %v867 = vmul.f32 %v865, %v866
      %v868 = vstv %s863
      %vm869 = vcmp.eq.s32.totalorder %v625, %v868
      %v870 = vsel %vm869, -inf, %v833
      %v871 = vsel %vm668, %v870, -inf
      %872 = vmax.xlane.f32.xlu0 %v871
      %v873 = vpop.xlane.xlu0 %872
      %vm874 = vcmp.eq.f32.partialorder %v870, %v873
      %v875 = vsel %vm874, %v625, 16
      %v876 = vsel %vm668, %v875, 2147483647
      %v877 = vand.u32 %v876, 65535
      %v878 = vshra.s32 %v876, 16
      %v879 = vcvt.s32.f32 %v877
      %v880 = vcvt.s32.f32 %v878
      %881 = vmin.xlane.f32.xlu0 %v880
      %v882 = vpop.xlane.xlu0 %881
      %vm883 = vcmp.eq.f32.partialorder %v880, %v882
      %v884 = vsel %vm883, %v879, inf
      %885 = vmin.xlane.f32.xlu0 %v884
      %v886 = vpop.xlane.xlu0 %885
      %v887 = vcvt.f32.s32 %v886
      %v888 = vcvt.f32.s32 %v882
      %v889 = vshll.u32 %v888, 16
      %v890 = vadd.s32 %v889, %v887
      %v891 = vrot.slane %v890, 4
      %vm892 = vcmp.lt.s32.totalorder %v890, %v891
      %v893 = vsel %vm892, %v890, %v891
      %v894 = vrot.slane %v893, 2
      %vm895 = vcmp.lt.s32.totalorder %v893, %v894
      %v896 = vsel %vm895, %v893, %v894
      %v897 = vrot.slane %v896, 1
      %vm898 = vcmp.lt.s32.totalorder %v896, %v897
      %v899 = vsel %vm898, %v896, %v897
      %s900 = vtos %v899
      %s901 = scalar_lea.vmem [#allocation5], %s900
      %v902 = vld [vmem:[%s901] sm:$0x1]
      %v903 = vtanh.pop %v873
      %v904 = vmul.f32 %v902, %v903
      %v905 = vstv %s900
      %vm906 = vcmp.eq.s32.totalorder %v625, %v905
      %v907 = vsel %vm906, -inf, %v870
      %v908 = vsel %vm668, %v907, -inf
      %909 = vmax.xlane.f32.xlu0 %v908
      %v910 = vpop.xlane.xlu0 %909
      %vm911 = vcmp.eq.f32.partialorder %v907, %v910
      %v912 = vsel %vm911, %v625, 16
      %v913 = vsel %vm668, %v912, 2147483647
      %v914 = vand.u32 %v913, 65535
      %v915 = vshra.s32 %v913, 16
      %v916 = vcvt.s32.f32 %v914
      %v917 = vcvt.s32.f32 %v915
      %918 = vmin.xlane.f32.xlu0 %v917
      %v919 = vpop.xlane.xlu0 %918
      %vm920 = vcmp.eq.f32.partialorder %v917, %v919
      %v921 = vsel %vm920, %v916, inf
      %922 = vmin.xlane.f32.xlu0 %v921
      %v923 = vpop.xlane.xlu0 %922
      %v924 = vcvt.f32.s32 %v923
      %v925 = vcvt.f32.s32 %v919
      %v926 = vshll.u32 %v925, 16
      %v927 = vadd.s32 %v926, %v924
      %v928 = vrot.slane %v927, 4
      %vm929 = vcmp.lt.s32.totalorder %v927, %v928
      %v930 = vsel %vm929, %v927, %v928
      %v931 = vrot.slane %v930, 2
      %vm932 = vcmp.lt.s32.totalorder %v930, %v931
      %v933 = vsel %vm932, %v930, %v931
      %v934 = vrot.slane %v933, 1
      %vm935 = vcmp.lt.s32.totalorder %v933, %v934
      %v936 = vsel %vm935, %v933, %v934
      %s937 = vtos %v936
      %s938 = scalar_lea.vmem [#allocation5], %s937
      %v939 = vld [vmem:[%s938] sm:$0x1]
      %v940 = vtanh.pop %v910
      %v941 = vmul.f32 %v939, %v940
      %v942 = vstv %s937
      %vm943 = vcmp.eq.s32.totalorder %v625, %v942
      %v944 = vsel %vm943, -inf, %v907
      %v945 = vsel %vm668, %v944, -inf
      %946 = vmax.xlane.f32.xlu0 %v945
      %v947 = vpop.xlane.xlu0 %946
      %vm948 = vcmp.eq.f32.partialorder %v944, %v947
      %v949 = vsel %vm948, %v625, 16
      %v950 = vsel %vm668, %v949, 2147483647
      %v951 = vand.u32 %v950, 65535
      %v952 = vshra.s32 %v950, 16
      %v953 = vcvt.s32.f32 %v951
      %v954 = vcvt.s32.f32 %v952
      %955 = vmin.xlane.f32.xlu0 %v954
      %v956 = vpop.xlane.xlu0 %955
      %vm957 = vcmp.eq.f32.partialorder %v954, %v956
      %v958 = vsel %vm957, %v953, inf
      %959 = vmin.xlane.f32.xlu0 %v958
      %v960 = vpop.xlane.xlu0 %959
      %v961 = vcvt.f32.s32 %v960
      %v962 = vcvt.f32.s32 %v956
      %v963 = vshll.u32 %v962, 16
      %v964 = vadd.s32 %v963, %v961
      %v965 = vrot.slane %v964, 4
      %vm966 = vcmp.lt.s32.totalorder %v964, %v965
      %v967 = vsel %vm966, %v964, %v965
      %v968 = vrot.slane %v967, 2
      %vm969 = vcmp.lt.s32.totalorder %v967, %v968
      %v970 = vsel %vm969, %v967, %v968
      %v971 = vrot.slane %v970, 1
      %vm972 = vcmp.lt.s32.totalorder %v970, %v971
      %v973 = vsel %vm972, %v970, %v971
      %s974 = vtos %v973
      %s975 = scalar_lea.vmem [#allocation5], %s974
      %v976 = vld [vmem:[%s975] sm:$0x1]
      %v977 = vtanh.pop %v947
      %v978 = vmul.f32 %v976, %v977
      %v979 = vstv %s974
      %vm980 = vcmp.eq.s32.totalorder %v625, %v979
      %v981 = vsel %vm980, -inf, %v944
      %v982 = vsel %vm668, %v981, -inf
      %983 = vmax.xlane.f32.xlu0 %v982
      %v984 = vpop.xlane.xlu0 %983
      %vm985 = vcmp.eq.f32.partialorder %v981, %v984
      %v986 = vsel %vm985, %v625, 16
      %v987 = vsel %vm668, %v986, 2147483647
      %v988 = vand.u32 %v987, 65535
      %v989 = vshra.s32 %v987, 16
      %v990 = vcvt.s32.f32 %v988
      %v991 = vcvt.s32.f32 %v989
      %992 = vmin.xlane.f32.xlu0 %v991
      %v993 = vpop.xlane.xlu0 %992
      %vm994 = vcmp.eq.f32.partialorder %v991, %v993
      %v995 = vsel %vm994, %v990, inf
      %996 = vmin.xlane.f32.xlu0 %v995
      %v997 = vpop.xlane.xlu0 %996
      %v998 = vcvt.f32.s32 %v997
      %v999 = vcvt.f32.s32 %v993
      %v1000 = vshll.u32 %v999, 16
      %v1001 = vadd.s32 %v1000, %v998
      %v1002 = vrot.slane %v1001, 4
      %vm1003 = vcmp.lt.s32.totalorder %v1001, %v1002
      %v1004 = vsel %vm1003, %v1001, %v1002
      %v1005 = vrot.slane %v1004, 2
      %vm1006 = vcmp.lt.s32.totalorder %v1004, %v1005
      %v1007 = vsel %vm1006, %v1004, %v1005
      %v1008 = vrot.slane %v1007, 1
      %vm1009 = vcmp.lt.s32.totalorder %v1007, %v1008
      %v1010 = vsel %vm1009, %v1007, %v1008
      %s1011 = vtos %v1010
      %s1012 = scalar_lea.vmem [#allocation5], %s1011
      %v1013 = vld [vmem:[%s1012] sm:$0x1]
      %v1014 = vtanh.pop %v984
      %v1015 = vmul.f32 %v1013, %v1014
      %v1017 = vrot.slane %v793, 7
      %v1020 = vrot.slane %v830, 6
      %v1023 = vrot.slane %v867, 5
      %v1026 = vrot.slane %v904, 4
      %v1029 = vrot.slane %v941, 3
      %v1032 = vrot.slane %v978, 2
      %v1035 = vrot.slane %v1015, 1
      %vm1037 = vcmask 1040384
      %v1038 = vsel %vm1037, %v756, %v1017
      %vm1039 = vcmask 1041408
      %v1040 = vsel %vm1039, %v1038, %v1020
      %vm1041 = vcmask 1042432
      %v1042 = vsel %vm1041, %v1040, %v1023
      %vm1043 = vcmask 1043456
      %v1044 = vsel %vm1043, %v1042, %v1026
      %vm1045 = vcmask 1044480
      %v1046 = vsel %vm1045, %v1044, %v1029
      %vm1047 = vcmask 1045504
      %v1048 = vsel %vm1047, %v1046, %v1032
      %vm1049 = vcmask 1046528
      %v1050 = vsel %vm1049, %v1048, %v1035
      %v1051 = vld [vmem:[#allocation2] sm:$0xff]
      %v1052 = vld [vmem:[#allocation2 + $0x8] sm:$0xff]
      %v1053 = vld [vmem:[%s7] sm:$0xff]
      %v1054 = vld [vmem:[%s7 + $0x8] sm:$0xff]
      %v1055 = vld [vmem:[%s7 + $0x10] sm:$0xff]
      %v1056 = vld [vmem:[%s7 + $0x18] sm:$0xff]
      %v1057 = vld [vmem:[%s7 + $0x20] sm:$0xff]
      %v1058 = vld [vmem:[%s7 + $0x28] sm:$0xff]
      %v1059 = vld [vmem:[%s8] sm:$0xff]
      %v1060 = vld [vmem:[%s8 + $0x8] sm:$0xff]
      %v1061 = vld [vmem:[%s8 + $0x10] sm:$0xff]
      %v1062 = vld [vmem:[%s8 + $0x18] sm:$0xff]
      %v1063 = vld [vmem:[%s8 + $0x20] sm:$0xff]
      %v1064 = vld [vmem:[%s8 + $0x28] sm:$0xff]
      %v1065 = vld [vmem:[%s9] sm:$0xff]
      %v1066 = vld [vmem:[%s9 + $0x8] sm:$0xff]
      %v1067 = vld [vmem:[%s9 + $0x10] sm:$0xff]
      %v1068 = vld [vmem:[%s9 + $0x18] sm:$0xff]
      %v1069 = vld [vmem:[%s9 + $0x20] sm:$0xff]
      %v1070 = vld [vmem:[%s9 + $0x28] sm:$0xff]
      %v1072 = vsel %vm632, %v1053, 0
      %v1075 = vsel %vm632, %v1054, 0
      %v1078 = vsel %vm632, %v1055, 0
      %v1081 = vsel %vm632, %v1056, 0
      %v1084 = vsel %vm632, %v1057, 0
      %v1087 = vsel %vm632, %v1058, 0
      %v1090 = vsel %vm632, %v1050, 0
      %1092 = vmatpush.xpose.msra.mxu0 0.0
      %1093 = vmatpush.xpose.msra.mxu0 0.0
      %1094 = vmatpush.xpose.msra.mxu0 0.0
      %1095 = vmatpush.xpose.msra.mxu0 0.0
      %1096 = vmatpush.xpose.msra.mxu0 0.0
      %1097 = vmatpush.xpose.msra.mxu0 0.0
      %1098 = vmatpush.xpose.msra.mxu0 0.0
      %1099 = vmatpush.xpose.msra.mxu0 0.0
      %1100 = vmatpush.xpose.msra.mxu0 0.0
      %1101 = vmatpush.xpose.msra.mxu0 0.0
      %1102 = vmatpush.xpose.msra.mxu0 0.0
      %1103 = vmatpush.xpose.msra.mxu0 0.0
      %1104 = vmatpush.xpose.msra.mxu0 0.0
      %1105 = vmatpush.xpose.msra.mxu0 0.0
      %1106 = vmatpush.xpose.msra.mxu0 0.0
      %1107 = vmatpush.xpose.msra.mxu0 %v1090
      %1108 = vmatmul.f32.gmra.mxu0 %v1072
      %v1109 = vpop.f32.mrf.mxu0
      %v1110 = vadd.f32 0.0, %v1109
      %1111 = vmatmul.f32.gmra.mxu0 %v1075
      %v1112 = vpop.f32.mrf.mxu0
      %v1113 = vadd.f32 0.0, %v1112
      %1114 = vmatmul.f32.gmra.mxu0 %v1078
      %v1115 = vpop.f32.mrf.mxu0
      %v1116 = vadd.f32 0.0, %v1115
      %1117 = vmatmul.f32.gmra.mxu0 %v1081
      %v1118 = vpop.f32.mrf.mxu0
      %v1119 = vadd.f32 0.0, %v1118
      %1120 = vmatmul.f32.gmra.mxu0 %v1084
      %v1121 = vpop.f32.mrf.mxu0
      %v1122 = vadd.f32 0.0, %v1121
      %1123 = vmatmul.f32.gmra.mxu0 %v1087
      %v1124 = vpop.f32.mrf.mxu0
      %v1125 = vadd.f32 0.0, %v1124
      %1126 = vdwg.mxu0
      %v1128 = vsel %vm632, %v1059, 0
      %v1131 = vsel %vm632, %v1060, 0
      %v1134 = vsel %vm632, %v1061, 0
      %v1137 = vsel %vm632, %v1062, 0
      %1139 = vmatpush.msra.mxu0 0.0
      %1140 = vmatpush.msra.mxu0 0.0
      %1141 = vmatpush.msra.mxu0 0.0
      %1142 = vmatpush.msra.mxu0 0.0
      %1143 = vmatpush.msra.mxu0 0.0
      %1144 = vmatpush.msra.mxu0 0.0
      %1145 = vmatpush.msra.mxu0 0.0
      %1146 = vmatpush.msra.mxu0 0.0
      %1147 = vmatpush.msra.mxu0 0.0
      %1148 = vmatpush.msra.mxu0 0.0
      %1149 = vmatpush.msra.mxu0 0.0
      %1150 = vmatpush.msra.mxu0 0.0
      %1151 = vmatpush.msra.mxu0 0.0
      %1152 = vmatpush.msra.mxu0 0.0
      %1153 = vmatpush.msra.mxu0 %v1052
      %1154 = vmatpush.msra.mxu0 %v1051
      %1155 = vmatmul.f32.gmra.mxu0 %v1128
      %v1156 = vpop.f32.mrf.mxu0
      %v1157 = vadd.f32 0.0, %v1156
      %1158 = vmatmul.f32.gmra.mxu0 %v1131
      %v1159 = vpop.f32.mrf.mxu0
      %v1160 = vadd.f32 0.0, %v1159
      %1161 = vmatmul.f32.gmra.mxu0 %v1134
      %v1162 = vpop.f32.mrf.mxu0
      %v1163 = vadd.f32 0.0, %v1162
      %1164 = vmatmul.f32.gmra.mxu0 %v1137
      %v1165 = vpop.f32.mrf.mxu0
      %v1166 = vadd.f32 0.0, %v1165
      %1167 = vdwg.mxu0
      %v1168 = vadd.f32 %v1110, %v1157
      %v1169 = vadd.f32 %v1113, %v1160
      %v1170 = vadd.f32 %v1168, %v1065
      %v1171 = vadd.f32 %v1169, %v1066
      %v1172 = vxor.u32 %v1170, 2147483648
      %v1173 = vxor.u32 %v1171, 2147483648
      %v1174 = vmul.f32 %v1172, 1.442695
      %v1175 = vpow.pop %v1174
      %v1176 = vmul.f32 %v1173, 1.442695
      %v1177 = vpow.pop %v1176
      %v1178 = vadd.f32 %v1175, 1.0
      %v1179 = vadd.f32 %v1177, 1.0
      %v1180 = vrcp.pop %v1178
      %v1181 = vmul.f32 %v1178, %v1180
      %v1182 = vsub.f32 1.0, %v1181
      %v1183 = vmul.f32 %v1180, %v1182
      %v1184 = vadd.f32 %v1180, %v1183
      %vm1185 = vweird.f32 %v1178
      %vm1186 = vweird.f32 %v1180
      %vm1187 = vmor %vm1185, %vm1186
      %v1188 = vsel %vm1187, %v1180, %v1184
      %v1189 = vand.u32 2147483647, %v1178
      %vm1190 = vcmp.eq.f32.partialorder %v1189, 8.507059e+37
      %v1191 = vand.u32 %v1178, 2147483648
      %v1192 = vor.u32 1.1754944e-38, %v1191
      %v1193 = vsel %vm1190, %v1192, %v1188
      %v1194 = vmul.f32 1.0, %v1193
      %v1195 = vrcp.pop %v1179
      %v1196 = vmul.f32 %v1179, %v1195
      %v1197 = vsub.f32 1.0, %v1196
      %v1198 = vmul.f32 %v1195, %v1197
      %v1199 = vadd.f32 %v1195, %v1198
      %vm1200 = vweird.f32 %v1179
      %vm1201 = vweird.f32 %v1195
      %vm1202 = vmor %vm1200, %vm1201
      %v1203 = vsel %vm1202, %v1195, %v1199
      %v1204 = vand.u32 2147483647, %v1179
      %vm1205 = vcmp.eq.f32.partialorder %v1204, 8.507059e+37
      %v1206 = vand.u32 %v1179, 2147483648
      %v1207 = vor.u32 1.1754944e-38, %v1206
      %v1208 = vsel %vm1205, %v1207, %v1203
      %v1209 = vmul.f32 1.0, %v1208
      %v1210 = vadd.f32 %v1116, %v1163
      %v1211 = vadd.f32 %v1119, %v1166
      %v1212 = vadd.f32 %v1210, %v1067
      %v1213 = vadd.f32 %v1211, %v1068
      %v1214 = vxor.u32 %v1212, 2147483648
      %v1215 = vxor.u32 %v1213, 2147483648
      %v1216 = vmul.f32 %v1214, 1.442695
      %v1217 = vpow.pop %v1216
      %v1218 = vmul.f32 %v1215, 1.442695
      %v1219 = vpow.pop %v1218
      %v1220 = vadd.f32 %v1217, 1.0
      %v1221 = vadd.f32 %v1219, 1.0
      %v1222 = vrcp.pop %v1220
      %v1223 = vmul.f32 %v1220, %v1222
      %v1224 = vsub.f32 1.0, %v1223
      %v1225 = vmul.f32 %v1222, %v1224
      %v1226 = vadd.f32 %v1222, %v1225
      %vm1227 = vweird.f32 %v1220
      %vm1228 = vweird.f32 %v1222
      %vm1229 = vmor %vm1227, %vm1228
      %v1230 = vsel %vm1229, %v1222, %v1226
      %v1231 = vand.u32 2147483647, %v1220
      %vm1232 = vcmp.eq.f32.partialorder %v1231, 8.507059e+37
      %v1233 = vand.u32 %v1220, 2147483648
      %v1234 = vor.u32 1.1754944e-38, %v1233
      %v1235 = vsel %vm1232, %v1234, %v1230
      %v1236 = vmul.f32 1.0, %v1235
      %v1237 = vrcp.pop %v1221
      %v1238 = vmul.f32 %v1221, %v1237
      %v1239 = vsub.f32 1.0, %v1238
      %v1240 = vmul.f32 %v1237, %v1239
      %v1241 = vadd.f32 %v1237, %v1240
      %vm1242 = vweird.f32 %v1221
      %vm1243 = vweird.f32 %v1237
      %vm1244 = vmor %vm1242, %vm1243
      %v1245 = vsel %vm1244, %v1237, %v1241
      %v1246 = vand.u32 2147483647, %v1221
      %vm1247 = vcmp.eq.f32.partialorder %v1246, 8.507059e+37
      %v1248 = vand.u32 %v1221, 2147483648
      %v1249 = vor.u32 1.1754944e-38, %v1248
      %v1250 = vsel %vm1247, %v1249, %v1245
      %v1251 = vmul.f32 1.0, %v1250
      %v1252 = vmul.f32 %v1236, %v1051
      %v1253 = vmul.f32 %v1251, %v1052
      %v1255 = vsel %vm632, %v1063, 0
      %v1258 = vsel %vm632, %v1064, 0
      %1260 = vmatpush.msra.mxu0 0.0
      %1261 = vmatpush.msra.mxu0 0.0
      %1262 = vmatpush.msra.mxu0 0.0
      %1263 = vmatpush.msra.mxu0 0.0
      %1264 = vmatpush.msra.mxu0 0.0
      %1265 = vmatpush.msra.mxu0 0.0
      %1266 = vmatpush.msra.mxu0 0.0
      %1267 = vmatpush.msra.mxu0 0.0
      %1268 = vmatpush.msra.mxu0 0.0
      %1269 = vmatpush.msra.mxu0 0.0
      %1270 = vmatpush.msra.mxu0 0.0
      %1271 = vmatpush.msra.mxu0 0.0
      %1272 = vmatpush.msra.mxu0 0.0
      %1273 = vmatpush.msra.mxu0 0.0
      %1274 = vmatpush.msra.mxu0 %v1253
      %1275 = vmatpush.msra.mxu0 %v1252
      %1276 = vmatmul.f32.gmra.mxu0 %v1255
      %v1277 = vpop.f32.mrf.mxu0
      %v1278 = vadd.f32 0.0, %v1277
      %1279 = vmatmul.f32.gmra.mxu0 %v1258
      %v1280 = vpop.f32.mrf.mxu0
      %v1281 = vadd.f32 0.0, %v1280
      %1282 = vdwg.mxu0
      %v1283 = vadd.f32 %v1122, %v1278
      %v1284 = vadd.f32 %v1125, %v1281
      %v1285 = vadd.f32 %v1283, %v1069
      %v1286 = vadd.f32 %v1284, %v1070
      %v1287 = vtanh.pop %v1285
      %v1288 = vtanh.pop %v1286
      %v1289 = vsub.f32 1.0, %v1194
      %v1290 = vsub.f32 1.0, %v1209
      %v1291 = vmul.f32 %v1289, %v1051
      %v1292 = vmul.f32 %v1290, %v1052
      %v1293 = vmul.f32 %v1194, %v1287
      %v1294 = vmul.f32 %v1209, %v1288
      %v1295 = vadd.f32 %v1291, %v1293
      %v1296 = vadd.f32 %v1292, %v1294
      %vm1297 = vcmask 64512
      %1298 = vst.msk [vmem:[#allocation2] sm:$0xff] %vm1297, %v1295
      %1299 = vst.msk [vmem:[#allocation2 + $0x8] sm:$0xff] %vm1297, %v1296
      %1300 = vmatpush.msra.mxu0 0.0
      %1301 = vmatpush.msra.mxu0 0.0
      %1302 = vmatpush.msra.mxu0 0.0
      %1303 = vmatpush.msra.mxu0 0.0
      %1304 = vmatpush.msra.mxu0 0.0
      %1305 = vmatpush.msra.mxu0 0.0
      %1306 = vmatpush.msra.mxu0 0.0
      %1307 = vmatpush.msra.mxu0 0.0
      %1308 = vmatpush.msra.mxu0 0.0
      %1309 = vmatpush.msra.mxu0 0.0
      %1310 = vmatpush.msra.mxu0 0.0
      %1311 = vmatpush.msra.mxu0 0.0
      %1312 = vmatpush.msra.mxu0 0.0
      %1313 = vmatpush.msra.mxu0 0.0
      %1314 = vmatpush.msra.mxu0 %v1296
      %1315 = vmatpush.msra.mxu0 %v1295
      %1316 = vmatmul.f32.gmra.mxu0 %v695
      %v1317 = vpop.f32.mrf.mxu0
      %v1318 = vadd.f32 0.0, %v1317
      %1319 = vmatmul.f32.gmra.mxu0 %v698
      %v1320 = vpop.f32.mrf.mxu0
      %v1321 = vadd.f32 0.0, %v1320
      %1322 = vdwg.mxu0
      %v1323 = vmax.f32 %v1318, 0.0
      %v1324 = vmax.f32 %v1321, 0.0
      %1325 = vst.msk [vmem:[#allocation6] sm:$0xff] %vm1297, %v1323
      %1326 = vst.msk [vmem:[#allocation6 + $0x8] sm:$0xff] %vm1297, %v1324
      %v1327 = vld [vmem:[%s10] sm:$0x1]
      %v1328 = vmul.f32 %v1327, %v1327
      %vm1329 = vcmask 57344
      %v1330 = vsel %vm1329, %v1328, 0.0
      %1331 = vadd.xlane.f32.xlu0 %v1330
      %v1332 = vpop.xlane.xlu0 %1331
      %v1333 = vrot.slane %v1332, 4
      %v1334 = vadd.f32 %v1332, %v1333
      %v1335 = vrot.slane %v1334, 2
      %v1336 = vadd.f32 %v1334, %v1335
      %v1337 = vrot.slane %v1336, 1
      %v1338 = vadd.f32 %v1336, %v1337
      %s1339 = vtos %v1338
      %v1340 = vstv %s1339
      %v1341 = vrsqrt.pop %v1340
      %v1342 = vmul.f32 %v1341, %v1340
      %v1343 = vmul.f32 %v1342, %v1341
      %v1344 = vmul.f32 0.5, %v1343
      %v1345 = vsub.f32 1.5, %v1344
      %v1346 = vmul.f32 %v1341, %v1345
      %vm1347 = vweird.f32 %v1340
      %vm1348 = vweird.f32 %v1341
      %vm1349 = vmor %vm1347, %vm1348
      %v1350 = vsel %vm1349, %v1341, %v1346
      %s1351 = vtos %v1350
      %v1353 = vsel %vm1297, %v1327, 0
      %v1356 = vsel %vm1297, %v1323, 0
      %v1359 = vsel %vm1297, %v1324, 0
      %1361 = vmatpush.xpose.msra.mxu0 0.0
      %1362 = vmatpush.xpose.msra.mxu0 0.0
      %1363 = vmatpush.xpose.msra.mxu0 0.0
      %1364 = vmatpush.xpose.msra.mxu0 0.0
      %1365 = vmatpush.xpose.msra.mxu0 0.0
      %1366 = vmatpush.xpose.msra.mxu0 0.0
      %1367 = vmatpush.xpose.msra.mxu0 0.0
      %1368 = vmatpush.xpose.msra.mxu0 0.0
      %1369 = vmatpush.xpose.msra.mxu0 0.0
      %1370 = vmatpush.xpose.msra.mxu0 0.0
      %1371 = vmatpush.xpose.msra.mxu0 0.0
      %1372 = vmatpush.xpose.msra.mxu0 0.0
      %1373 = vmatpush.xpose.msra.mxu0 0.0
      %1374 = vmatpush.xpose.msra.mxu0 0.0
      %1375 = vmatpush.xpose.msra.mxu0 %v1359
      %1376 = vmatpush.xpose.msra.mxu0 %v1356
      %1377 = vmatmul.f32.gmra.mxu0 %v1353
      %v1378 = vpop.f32.mrf.mxu0
      %v1379 = vadd.f32 0.0, %v1378
      %1380 = vdwg.mxu0
      %v1381 = vstv %s1351
      %v1382 = vmul.f32 %v1379, %v1381
      %v1383 = vadd.f32 %v1382, %v623
      %v1384 = vsel %vm668, %v1383, -inf
      %1385 = vmax.xlane.f32.xlu0 %v1384
      %v1386 = vpop.xlane.xlu0 %1385
      %vm1387 = vcmp.eq.f32.partialorder %v1383, %v1386
      %v1388 = vsel %vm1387, %v625, 16
      %v1389 = vsel %vm668, %v1388, 2147483647
      %v1390 = vand.u32 %v1389, 65535
      %v1391 = vshra.s32 %v1389, 16
      %v1392 = vcvt.s32.f32 %v1390
      %v1393 = vcvt.s32.f32 %v1391
      %1394 = vmin.xlane.f32.xlu0 %v1393
      %v1395 = vpop.xlane.xlu0 %1394
      %vm1396 = vcmp.eq.f32.partialorder %v1393, %v1395
      %v1397 = vsel %vm1396, %v1392, inf
      %1398 = vmin.xlane.f32.xlu0 %v1397
      %v1399 = vpop.xlane.xlu0 %1398
      %v1400 = vcvt.f32.s32 %v1399
      %v1401 = vcvt.f32.s32 %v1395
      %v1402 = vshll.u32 %v1401, 16
      %v1403 = vadd.s32 %v1402, %v1400
      %v1404 = vrot.slane %v1403, 4
      %vm1405 = vcmp.lt.s32.totalorder %v1403, %v1404
      %v1406 = vsel %vm1405, %v1403, %v1404
      %v1407 = vrot.slane %v1406, 2
      %vm1408 = vcmp.lt.s32.totalorder %v1406, %v1407
      %v1409 = vsel %vm1408, %v1406, %v1407
      %v1410 = vrot.slane %v1409, 1
      %vm1411 = vcmp.lt.s32.totalorder %v1409, %v1410
      %v1412 = vsel %vm1411, %v1409, %v1410
      %s1413 = vtos %v1412
      %s1414 = scalar_lea.vmem [#allocation6], %s1413
      %v1415 = vld [vmem:[%s1414] sm:$0x1]
      %v1416 = vtanh.pop %v1386
      %v1417 = vmul.f32 %v1415, %v1416
      %v1418 = vstv %s1413
      %vm1419 = vcmp.eq.s32.totalorder %v625, %v1418
      %v1420 = vsel %vm1419, -inf, %v1383
      %v1421 = vsel %vm668, %v1420, -inf
      %1422 = vmax.xlane.f32.xlu0 %v1421
      %v1423 = vpop.xlane.xlu0 %1422
      %vm1424 = vcmp.eq.f32.partialorder %v1420, %v1423
      %v1425 = vsel %vm1424, %v625, 16
      %v1426 = vsel %vm668, %v1425, 2147483647
      %v1427 = vand.u32 %v1426, 65535
      %v1428 = vshra.s32 %v1426, 16
      %v1429 = vcvt.s32.f32 %v1427
      %v1430 = vcvt.s32.f32 %v1428
      %1431 = vmin.xlane.f32.xlu0 %v1430
      %v1432 = vpop.xlane.xlu0 %1431
      %vm1433 = vcmp.eq.f32.partialorder %v1430, %v1432
      %v1434 = vsel %vm1433, %v1429, inf
      %1435 = vmin.xlane.f32.xlu0 %v1434
      %v1436 = vpop.xlane.xlu0 %1435
      %v1437 = vcvt.f32.s32 %v1436
      %v1438 = vcvt.f32.s32 %v1432
      %v1439 = vshll.u32 %v1438, 16
      %v1440 = vadd.s32 %v1439, %v1437
      %v1441 = vrot.slane %v1440, 4
      %vm1442 = vcmp.lt.s32.totalorder %v1440, %v1441
      %v1443 = vsel %vm1442, %v1440, %v1441
      %v1444 = vrot.slane %v1443, 2
      %vm1445 = vcmp.lt.s32.totalorder %v1443, %v1444
      %v1446 = vsel %vm1445, %v1443, %v1444
      %v1447 = vrot.slane %v1446, 1
      %vm1448 = vcmp.lt.s32.totalorder %v1446, %v1447
      %v1449 = vsel %vm1448, %v1446, %v1447
      %s1450 = vtos %v1449
      %s1451 = scalar_lea.vmem [#allocation6], %s1450
      %v1452 = vld [vmem:[%s1451] sm:$0x1]
      %v1453 = vtanh.pop %v1423
      %v1454 = vmul.f32 %v1452, %v1453
      %v1455 = vstv %s1450
      %vm1456 = vcmp.eq.s32.totalorder %v625, %v1455
      %v1457 = vsel %vm1456, -inf, %v1420
      %v1458 = vsel %vm668, %v1457, -inf
      %1459 = vmax.xlane.f32.xlu0 %v1458
      %v1460 = vpop.xlane.xlu0 %1459
      %vm1461 = vcmp.eq.f32.partialorder %v1457, %v1460
      %v1462 = vsel %vm1461, %v625, 16
      %v1463 = vsel %vm668, %v1462, 2147483647
      %v1464 = vand.u32 %v1463, 65535
      %v1465 = vshra.s32 %v1463, 16
      %v1466 = vcvt.s32.f32 %v1464
      %v1467 = vcvt.s32.f32 %v1465
      %1468 = vmin.xlane.f32.xlu0 %v1467
      %v1469 = vpop.xlane.xlu0 %1468
      %vm1470 = vcmp.eq.f32.partialorder %v1467, %v1469
      %v1471 = vsel %vm1470, %v1466, inf
      %1472 = vmin.xlane.f32.xlu0 %v1471
      %v1473 = vpop.xlane.xlu0 %1472
      %v1474 = vcvt.f32.s32 %v1473
      %v1475 = vcvt.f32.s32 %v1469
      %v1476 = vshll.u32 %v1475, 16
      %v1477 = vadd.s32 %v1476, %v1474
      %v1478 = vrot.slane %v1477, 4
      %vm1479 = vcmp.lt.s32.totalorder %v1477, %v1478
      %v1480 = vsel %vm1479, %v1477, %v1478
      %v1481 = vrot.slane %v1480, 2
      %vm1482 = vcmp.lt.s32.totalorder %v1480, %v1481
      %v1483 = vsel %vm1482, %v1480, %v1481
      %v1484 = vrot.slane %v1483, 1
      %vm1485 = vcmp.lt.s32.totalorder %v1483, %v1484
      %v1486 = vsel %vm1485, %v1483, %v1484
      %s1487 = vtos %v1486
      %s1488 = scalar_lea.vmem [#allocation6], %s1487
      %v1489 = vld [vmem:[%s1488] sm:$0x1]
      %v1490 = vtanh.pop %v1460
      %v1491 = vmul.f32 %v1489, %v1490
      %v1492 = vstv %s1487
      %vm1493 = vcmp.eq.s32.totalorder %v625, %v1492
      %v1494 = vsel %vm1493, -inf, %v1457
      %v1495 = vsel %vm668, %v1494, -inf
      %1496 = vmax.xlane.f32.xlu0 %v1495
      %v1497 = vpop.xlane.xlu0 %1496
      %vm1498 = vcmp.eq.f32.partialorder %v1494, %v1497
      %v1499 = vsel %vm1498, %v625, 16
      %v1500 = vsel %vm668, %v1499, 2147483647
      %v1501 = vand.u32 %v1500, 65535
      %v1502 = vshra.s32 %v1500, 16
      %v1503 = vcvt.s32.f32 %v1501
      %v1504 = vcvt.s32.f32 %v1502
      %1505 = vmin.xlane.f32.xlu0 %v1504
      %v1506 = vpop.xlane.xlu0 %1505
      %vm1507 = vcmp.eq.f32.partialorder %v1504, %v1506
      %v1508 = vsel %vm1507, %v1503, inf
      %1509 = vmin.xlane.f32.xlu0 %v1508
      %v1510 = vpop.xlane.xlu0 %1509
      %v1511 = vcvt.f32.s32 %v1510
      %v1512 = vcvt.f32.s32 %v1506
      %v1513 = vshll.u32 %v1512, 16
      %v1514 = vadd.s32 %v1513, %v1511
      %v1515 = vrot.slane %v1514, 4
      %vm1516 = vcmp.lt.s32.totalorder %v1514, %v1515
      %v1517 = vsel %vm1516, %v1514, %v1515
      %v1518 = vrot.slane %v1517, 2
      %vm1519 = vcmp.lt.s32.totalorder %v1517, %v1518
      %v1520 = vsel %vm1519, %v1517, %v1518
      %v1521 = vrot.slane %v1520, 1
      %vm1522 = vcmp.lt.s32.totalorder %v1520, %v1521
      %v1523 = vsel %vm1522, %v1520, %v1521
      %s1524 = vtos %v1523
      %s1525 = scalar_lea.vmem [#allocation6], %s1524
      %v1526 = vld [vmem:[%s1525] sm:$0x1]
      %v1527 = vtanh.pop %v1497
      %v1528 = vmul.f32 %v1526, %v1527
      %v1529 = vstv %s1524
      %vm1530 = vcmp.eq.s32.totalorder %v625, %v1529
      %v1531 = vsel %vm1530, -inf, %v1494
      %v1532 = vsel %vm668, %v1531, -inf
      %1533 = vmax.xlane.f32.xlu0 %v1532
      %v1534 = vpop.xlane.xlu0 %1533
      %vm1535 = vcmp.eq.f32.partialorder %v1531, %v1534
      %v1536 = vsel %vm1535, %v625, 16
      %v1537 = vsel %vm668, %v1536, 2147483647
      %v1538 = vand.u32 %v1537, 65535
      %v1539 = vshra.s32 %v1537, 16
      %v1540 = vcvt.s32.f32 %v1538
      %v1541 = vcvt.s32.f32 %v1539
      %1542 = vmin.xlane.f32.xlu0 %v1541
      %v1543 = vpop.xlane.xlu0 %1542
      %vm1544 = vcmp.eq.f32.partialorder %v1541, %v1543
      %v1545 = vsel %vm1544, %v1540, inf
      %1546 = vmin.xlane.f32.xlu0 %v1545
      %v1547 = vpop.xlane.xlu0 %1546
      %v1548 = vcvt.f32.s32 %v1547
      %v1549 = vcvt.f32.s32 %v1543
      %v1550 = vshll.u32 %v1549, 16
      %v1551 = vadd.s32 %v1550, %v1548
      %v1552 = vrot.slane %v1551, 4
      %vm1553 = vcmp.lt.s32.totalorder %v1551, %v1552
      %v1554 = vsel %vm1553, %v1551, %v1552
      %v1555 = vrot.slane %v1554, 2
      %vm1556 = vcmp.lt.s32.totalorder %v1554, %v1555
      %v1557 = vsel %vm1556, %v1554, %v1555
      %v1558 = vrot.slane %v1557, 1
      %vm1559 = vcmp.lt.s32.totalorder %v1557, %v1558
      %v1560 = vsel %vm1559, %v1557, %v1558
      %s1561 = vtos %v1560
      %s1562 = scalar_lea.vmem [#allocation6], %s1561
      %v1563 = vld [vmem:[%s1562] sm:$0x1]
      %v1564 = vtanh.pop %v1534
      %v1565 = vmul.f32 %v1563, %v1564
      %v1566 = vstv %s1561
      %vm1567 = vcmp.eq.s32.totalorder %v625, %v1566
      %v1568 = vsel %vm1567, -inf, %v1531
      %v1569 = vsel %vm668, %v1568, -inf
      %1570 = vmax.xlane.f32.xlu0 %v1569
      %v1571 = vpop.xlane.xlu0 %1570
      %vm1572 = vcmp.eq.f32.partialorder %v1568, %v1571
      %v1573 = vsel %vm1572, %v625, 16
      %v1574 = vsel %vm668, %v1573, 2147483647
      %v1575 = vand.u32 %v1574, 65535
      %v1576 = vshra.s32 %v1574, 16
      %v1577 = vcvt.s32.f32 %v1575
      %v1578 = vcvt.s32.f32 %v1576
      %1579 = vmin.xlane.f32.xlu0 %v1578
      %v1580 = vpop.xlane.xlu0 %1579
      %vm1581 = vcmp.eq.f32.partialorder %v1578, %v1580
      %v1582 = vsel %vm1581, %v1577, inf
      %1583 = vmin.xlane.f32.xlu0 %v1582
      %v1584 = vpop.xlane.xlu0 %1583
      %v1585 = vcvt.f32.s32 %v1584
      %v1586 = vcvt.f32.s32 %v1580
      %v1587 = vshll.u32 %v1586, 16
      %v1588 = vadd.s32 %v1587, %v1585
      %v1589 = vrot.slane %v1588, 4
      %vm1590 = vcmp.lt.s32.totalorder %v1588, %v1589
      %v1591 = vsel %vm1590, %v1588, %v1589
      %v1592 = vrot.slane %v1591, 2
      %vm1593 = vcmp.lt.s32.totalorder %v1591, %v1592
      %v1594 = vsel %vm1593, %v1591, %v1592
      %v1595 = vrot.slane %v1594, 1
      %vm1596 = vcmp.lt.s32.totalorder %v1594, %v1595
      %v1597 = vsel %vm1596, %v1594, %v1595
      %s1598 = vtos %v1597
      %s1599 = scalar_lea.vmem [#allocation6], %s1598
      %v1600 = vld [vmem:[%s1599] sm:$0x1]
      %v1601 = vtanh.pop %v1571
      %v1602 = vmul.f32 %v1600, %v1601
      %v1603 = vstv %s1598
      %vm1604 = vcmp.eq.s32.totalorder %v625, %v1603
      %v1605 = vsel %vm1604, -inf, %v1568
      %v1606 = vsel %vm668, %v1605, -inf
      %1607 = vmax.xlane.f32.xlu0 %v1606
      %v1608 = vpop.xlane.xlu0 %1607
      %vm1609 = vcmp.eq.f32.partialorder %v1605, %v1608
      %v1610 = vsel %vm1609, %v625, 16
      %v1611 = vsel %vm668, %v1610, 2147483647
      %v1612 = vand.u32 %v1611, 65535
      %v1613 = vshra.s32 %v1611, 16
      %v1614 = vcvt.s32.f32 %v1612
      %v1615 = vcvt.s32.f32 %v1613
      %1616 = vmin.xlane.f32.xlu0 %v1615
      %v1617 = vpop.xlane.xlu0 %1616
      %vm1618 = vcmp.eq.f32.partialorder %v1615, %v1617
      %v1619 = vsel %vm1618, %v1614, inf
      %1620 = vmin.xlane.f32.xlu0 %v1619
      %v1621 = vpop.xlane.xlu0 %1620
      %v1622 = vcvt.f32.s32 %v1621
      %v1623 = vcvt.f32.s32 %v1617
      %v1624 = vshll.u32 %v1623, 16
      %v1625 = vadd.s32 %v1624, %v1622
      %v1626 = vrot.slane %v1625, 4
      %vm1627 = vcmp.lt.s32.totalorder %v1625, %v1626
      %v1628 = vsel %vm1627, %v1625, %v1626
      %v1629 = vrot.slane %v1628, 2
      %vm1630 = vcmp.lt.s32.totalorder %v1628, %v1629
      %v1631 = vsel %vm1630, %v1628, %v1629
      %v1632 = vrot.slane %v1631, 1
      %vm1633 = vcmp.lt.s32.totalorder %v1631, %v1632
      %v1634 = vsel %vm1633, %v1631, %v1632
      %s1635 = vtos %v1634
      %s1636 = scalar_lea.vmem [#allocation6], %s1635
      %v1637 = vld [vmem:[%s1636] sm:$0x1]
      %v1638 = vtanh.pop %v1608
      %v1639 = vmul.f32 %v1637, %v1638
      %v1640 = vstv %s1635
      %vm1641 = vcmp.eq.s32.totalorder %v625, %v1640
      %v1642 = vsel %vm1641, -inf, %v1605
      %v1643 = vsel %vm668, %v1642, -inf
      %1644 = vmax.xlane.f32.xlu0 %v1643
      %v1645 = vpop.xlane.xlu0 %1644
      %vm1646 = vcmp.eq.f32.partialorder %v1642, %v1645
      %v1647 = vsel %vm1646, %v625, 16
      %v1648 = vsel %vm668, %v1647, 2147483647
      %v1649 = vand.u32 %v1648, 65535
      %v1650 = vshra.s32 %v1648, 16
      %v1651 = vcvt.s32.f32 %v1649
      %v1652 = vcvt.s32.f32 %v1650
      %1653 = vmin.xlane.f32.xlu0 %v1652
      %v1654 = vpop.xlane.xlu0 %1653
      %vm1655 = vcmp.eq.f32.partialorder %v1652, %v1654
      %v1656 = vsel %vm1655, %v1651, inf
      %1657 = vmin.xlane.f32.xlu0 %v1656
      %v1658 = vpop.xlane.xlu0 %1657
      %v1659 = vcvt.f32.s32 %v1658
      %v1660 = vcvt.f32.s32 %v1654
      %v1661 = vshll.u32 %v1660, 16
      %v1662 = vadd.s32 %v1661, %v1659
      %v1663 = vrot.slane %v1662, 4
      %vm1664 = vcmp.lt.s32.totalorder %v1662, %v1663
      %v1665 = vsel %vm1664, %v1662, %v1663
      %v1666 = vrot.slane %v1665, 2
      %vm1667 = vcmp.lt.s32.totalorder %v1665, %v1666
      %v1668 = vsel %vm1667, %v1665, %v1666
      %v1669 = vrot.slane %v1668, 1
      %vm1670 = vcmp.lt.s32.totalorder %v1668, %v1669
      %v1671 = vsel %vm1670, %v1668, %v1669
      %s1672 = vtos %v1671
      %s1673 = scalar_lea.vmem [#allocation6], %s1672
      %v1674 = vld [vmem:[%s1673] sm:$0x1]
      %v1675 = vtanh.pop %v1645
      %v1676 = vmul.f32 %v1674, %v1675
      %v1678 = vrot.slane %v1454, 7
      %v1681 = vrot.slane %v1491, 6
      %v1684 = vrot.slane %v1528, 5
      %v1687 = vrot.slane %v1565, 4
      %v1690 = vrot.slane %v1602, 3
      %v1693 = vrot.slane %v1639, 2
      %v1696 = vrot.slane %v1676, 1
      %v1698 = vsel %vm1037, %v1417, %v1678
      %v1699 = vsel %vm1039, %v1698, %v1681
      %v1700 = vsel %vm1041, %v1699, %v1684
      %v1701 = vsel %vm1043, %v1700, %v1687
      %v1702 = vsel %vm1045, %v1701, %v1690
      %v1703 = vsel %vm1047, %v1702, %v1693
      %v1704 = vsel %vm1049, %v1703, %v1696
      %v1705 = vld [vmem:[#allocation3] sm:$0xff]
      %v1706 = vld [vmem:[%s11] sm:$0xff]
      %v1707 = vld [vmem:[%s11 + $0x8] sm:$0xff]
      %v1708 = vld [vmem:[%s11 + $0x10] sm:$0xff]
      %v1709 = vld [vmem:[%s12] sm:$0xff]
      %v1710 = vld [vmem:[%s12 + $0x8] sm:$0xff]
      %v1711 = vld [vmem:[%s12 + $0x10] sm:$0xff]
      %v1712 = vld [vmem:[%s13] sm:$0xff]
      %v1713 = vld [vmem:[%s13 + $0x8] sm:$0xff]
      %v1714 = vld [vmem:[%s13 + $0x10] sm:$0xff]
      %v1716 = vsel %vm1297, %v1706, 0
      %v1719 = vsel %vm1297, %v1707, 0
      %v1722 = vsel %vm1297, %v1708, 0
      %v1725 = vsel %vm1297, %v1704, 0
      %1727 = vmatpush.xpose.msra.mxu0 0.0
      %1728 = vmatpush.xpose.msra.mxu0 0.0
      %1729 = vmatpush.xpose.msra.mxu0 0.0
      %1730 = vmatpush.xpose.msra.mxu0 0.0
      %1731 = vmatpush.xpose.msra.mxu0 0.0
      %1732 = vmatpush.xpose.msra.mxu0 0.0
      %1733 = vmatpush.xpose.msra.mxu0 0.0
      %1734 = vmatpush.xpose.msra.mxu0 0.0
      %1735 = vmatpush.xpose.msra.mxu0 0.0
      %1736 = vmatpush.xpose.msra.mxu0 0.0
      %1737 = vmatpush.xpose.msra.mxu0 0.0
      %1738 = vmatpush.xpose.msra.mxu0 0.0
      %1739 = vmatpush.xpose.msra.mxu0 0.0
      %1740 = vmatpush.xpose.msra.mxu0 0.0
      %1741 = vmatpush.xpose.msra.mxu0 0.0
      %1742 = vmatpush.xpose.msra.mxu0 %v1725
      %1743 = vmatmul.f32.gmra.mxu0 %v1716
      %v1744 = vpop.f32.mrf.mxu0
      %v1745 = vadd.f32 0.0, %v1744
      %1746 = vmatmul.f32.gmra.mxu0 %v1719
      %v1747 = vpop.f32.mrf.mxu0
      %v1748 = vadd.f32 0.0, %v1747
      %1749 = vmatmul.f32.gmra.mxu0 %v1722
      %v1750 = vpop.f32.mrf.mxu0
      %v1751 = vadd.f32 0.0, %v1750
      %1752 = vdwg.mxu0
      %v1754 = vsel %vm1297, %v1709, 0
      %v1757 = vsel %vm1297, %v1710, 0
      %1759 = vmatpush.msra.mxu0 0.0
      %1760 = vmatpush.msra.mxu0 0.0
      %1761 = vmatpush.msra.mxu0 0.0
      %1762 = vmatpush.msra.mxu0 0.0
      %1763 = vmatpush.msra.mxu0 0.0
      %1764 = vmatpush.msra.mxu0 0.0
      %1765 = vmatpush.msra.mxu0 0.0
      %1766 = vmatpush.msra.mxu0 0.0
      %1767 = vmatpush.msra.mxu0 0.0
      %1768 = vmatpush.msra.mxu0 0.0
      %1769 = vmatpush.msra.mxu0 0.0
      %1770 = vmatpush.msra.mxu0 0.0
      %1771 = vmatpush.msra.mxu0 0.0
      %1772 = vmatpush.msra.mxu0 0.0
      %1773 = vmatpush.msra.mxu0 0.0
      %1774 = vmatpush.msra.mxu0 %v1705
      %1775 = vmatmul.f32.gmra.mxu0 %v1754
      %v1776 = vpop.f32.mrf.mxu0
      %v1777 = vadd.f32 0.0, %v1776
      %1778 = vmatmul.f32.gmra.mxu0 %v1757
      %v1779 = vpop.f32.mrf.mxu0
      %v1780 = vadd.f32 0.0, %v1779
      %1781 = vdwg.mxu0
      %v1782 = vadd.f32 %v1745, %v1777
      %v1783 = vadd.f32 %v1782, %v1712
      %v1784 = vxor.u32 %v1783, 2147483648
      %v1785 = vmul.f32 %v1784, 1.442695
      %v1786 = vpow.pop %v1785
      %v1787 = vadd.f32 %v1786, 1.0
      %v1788 = vrcp.pop %v1787
      %v1789 = vmul.f32 %v1787, %v1788
      %v1790 = vsub.f32 1.0, %v1789
      %v1791 = vmul.f32 %v1788, %v1790
      %v1792 = vadd.f32 %v1788, %v1791
      %vm1793 = vweird.f32 %v1787
      %vm1794 = vweird.f32 %v1788
      %vm1795 = vmor %vm1793, %vm1794
      %v1796 = vsel %vm1795, %v1788, %v1792
      %v1797 = vand.u32 2147483647, %v1787
      %vm1798 = vcmp.eq.f32.partialorder %v1797, 8.507059e+37
      %v1799 = vand.u32 %v1787, 2147483648
      %v1800 = vor.u32 1.1754944e-38, %v1799
      %v1801 = vsel %vm1798, %v1800, %v1796
      %v1802 = vmul.f32 1.0, %v1801
      %v1803 = vadd.f32 %v1748, %v1780
      %v1804 = vadd.f32 %v1803, %v1713
      %v1805 = vxor.u32 %v1804, 2147483648
      %v1806 = vmul.f32 %v1805, 1.442695
      %v1807 = vpow.pop %v1806
      %v1808 = vadd.f32 %v1807, 1.0
      %v1809 = vrcp.pop %v1808
      %v1810 = vmul.f32 %v1808, %v1809
      %v1811 = vsub.f32 1.0, %v1810
      %v1812 = vmul.f32 %v1809, %v1811
      %v1813 = vadd.f32 %v1809, %v1812
      %vm1814 = vweird.f32 %v1808
      %vm1815 = vweird.f32 %v1809
      %vm1816 = vmor %vm1814, %vm1815
      %v1817 = vsel %vm1816, %v1809, %v1813
      %v1818 = vand.u32 2147483647, %v1808
      %vm1819 = vcmp.eq.f32.partialorder %v1818, 8.507059e+37
      %v1820 = vand.u32 %v1808, 2147483648
      %v1821 = vor.u32 1.1754944e-38, %v1820
      %v1822 = vsel %vm1819, %v1821, %v1817
      %v1823 = vmul.f32 1.0, %v1822
      %v1824 = vmul.f32 %v1823, %v1705
      %v1826 = vsel %vm1297, %v1711, 0
      %1828 = vmatpush.msra.mxu0 0.0
      %1829 = vmatpush.msra.mxu0 0.0
      %1830 = vmatpush.msra.mxu0 0.0
      %1831 = vmatpush.msra.mxu0 0.0
      %1832 = vmatpush.msra.mxu0 0.0
      %1833 = vmatpush.msra.mxu0 0.0
      %1834 = vmatpush.msra.mxu0 0.0
      %1835 = vmatpush.msra.mxu0 0.0
      %1836 = vmatpush.msra.mxu0 0.0
      %1837 = vmatpush.msra.mxu0 0.0
      %1838 = vmatpush.msra.mxu0 0.0
      %1839 = vmatpush.msra.mxu0 0.0
      %1840 = vmatpush.msra.mxu0 0.0
      %1841 = vmatpush.msra.mxu0 0.0
      %1842 = vmatpush.msra.mxu0 0.0
      %1843 = vmatpush.msra.mxu0 %v1824
      %1844 = vmatmul.f32.gmra.mxu0 %v1826
      %v1845 = vpop.f32.mrf.mxu0
      %v1846 = vadd.f32 0.0, %v1845
      %1847 = vdwg.mxu0
      %v1848 = vadd.f32 %v1751, %v1846
      %v1849 = vadd.f32 %v1848, %v1714
      %v1850 = vtanh.pop %v1849
      %v1851 = vsub.f32 1.0, %v1802
      %v1852 = vmul.f32 %v1851, %v1705
      %v1853 = vmul.f32 %v1802, %v1850
      %v1854 = vadd.f32 %v1852, %v1853
      %1855 = vst.msk [vmem:[#allocation3] sm:$0xff] %vm1297, %v1854
      %1856 = vmatpush.msra.mxu0 0.0
      %1857 = vmatpush.msra.mxu0 0.0
      %1858 = vmatpush.msra.mxu0 0.0
      %1859 = vmatpush.msra.mxu0 0.0
      %1860 = vmatpush.msra.mxu0 0.0
      %1861 = vmatpush.msra.mxu0 0.0
      %1862 = vmatpush.msra.mxu0 0.0
      %1863 = vmatpush.msra.mxu0 0.0
      %1864 = vmatpush.msra.mxu0 0.0
      %1865 = vmatpush.msra.mxu0 0.0
      %1866 = vmatpush.msra.mxu0 0.0
      %1867 = vmatpush.msra.mxu0 0.0
      %1868 = vmatpush.msra.mxu0 0.0
      %1869 = vmatpush.msra.mxu0 0.0
      %1870 = vmatpush.msra.mxu0 0.0
      %1871 = vmatpush.msra.mxu0 %v1854
      %1872 = vmatmul.f32.gmra.mxu0 %v1356
      %v1873 = vpop.f32.mrf.mxu0
      %v1874 = vadd.f32 0.0, %v1873
      %1875 = vmatmul.f32.gmra.mxu0 %v1359
      %v1876 = vpop.f32.mrf.mxu0
      %v1877 = vadd.f32 0.0, %v1876
      %1878 = vdwg.mxu0
      %v1879 = vmax.f32 %v1874, 0.0
      %v1880 = vmax.f32 %v1877, 0.0
      %1881 = vst.msk [vmem:[#allocation7] sm:$0xff] %vm1297, %v1879
      %1882 = vst.msk [vmem:[#allocation7 + $0x8] sm:$0xff] %vm1297, %v1880
      %v1883 = vld [vmem:[%s14] sm:$0x1]
      %v1884 = vmul.f32 %v1883, %v1883
      %v1885 = vsel %vm1329, %v1884, 0.0
      %1886 = vadd.xlane.f32.xlu0 %v1885
      %v1887 = vpop.xlane.xlu0 %1886
      %v1888 = vrot.slane %v1887, 4
      %v1889 = vadd.f32 %v1887, %v1888
      %v1890 = vrot.slane %v1889, 2
      %v1891 = vadd.f32 %v1889, %v1890
      %v1892 = vrot.slane %v1891, 1
      %v1893 = vadd.f32 %v1891, %v1892
      %s1894 = vtos %v1893
      %v1895 = vstv %s1894
      %v1896 = vrsqrt.pop %v1895
      %v1897 = vmul.f32 %v1896, %v1895
      %v1898 = vmul.f32 %v1897, %v1896
      %v1899 = vmul.f32 0.5, %v1898
      %v1900 = vsub.f32 1.5, %v1899
      %v1901 = vmul.f32 %v1896, %v1900
      %vm1902 = vweird.f32 %v1895
      %vm1903 = vweird.f32 %v1896
      %vm1904 = vmor %vm1902, %vm1903
      %v1905 = vsel %vm1904, %v1896, %v1901
      %s1906 = vtos %v1905
      %v1908 = vsel %vm1297, %v1883, 0
      %v1911 = vsel %vm1297, %v1879, 0
      %v1914 = vsel %vm1297, %v1880, 0
      %1916 = vmatpush.xpose.msra.mxu0 0.0
      %1917 = vmatpush.xpose.msra.mxu0 0.0
      %1918 = vmatpush.xpose.msra.mxu0 0.0
      %1919 = vmatpush.xpose.msra.mxu0 0.0
      %1920 = vmatpush.xpose.msra.mxu0 0.0
      %1921 = vmatpush.xpose.msra.mxu0 0.0
      %1922 = vmatpush.xpose.msra.mxu0 0.0
      %1923 = vmatpush.xpose.msra.mxu0 0.0
      %1924 = vmatpush.xpose.msra.mxu0 0.0
      %1925 = vmatpush.xpose.msra.mxu0 0.0
      %1926 = vmatpush.xpose.msra.mxu0 0.0
      %1927 = vmatpush.xpose.msra.mxu0 0.0
      %1928 = vmatpush.xpose.msra.mxu0 0.0
      %1929 = vmatpush.xpose.msra.mxu0 0.0
      %1930 = vmatpush.xpose.msra.mxu0 %v1914
      %1931 = vmatpush.xpose.msra.mxu0 %v1911
      %1932 = vmatmul.f32.gmra.mxu0 %v1908
      %v1933 = vpop.f32.mrf.mxu0
      %v1934 = vadd.f32 0.0, %v1933
      %1935 = vdwg.mxu0
      %v1936 = vstv %s1906
      %v1937 = vmul.f32 %v1934, %v1936
      %v1938 = vadd.f32 %v1937, %v623
      %v1939 = vsel %vm668, %v1938, -inf
      %1940 = vmax.xlane.f32.xlu0 %v1939
      %v1941 = vpop.xlane.xlu0 %1940
      %vm1942 = vcmp.eq.f32.partialorder %v1938, %v1941
      %v1943 = vsel %vm1942, %v625, 16
      %v1944 = vsel %vm668, %v1943, 2147483647
      %v1945 = vand.u32 %v1944, 65535
      %v1946 = vshra.s32 %v1944, 16
      %v1947 = vcvt.s32.f32 %v1945
      %v1948 = vcvt.s32.f32 %v1946
      %1949 = vmin.xlane.f32.xlu0 %v1948
      %v1950 = vpop.xlane.xlu0 %1949
      %vm1951 = vcmp.eq.f32.partialorder %v1948, %v1950
      %v1952 = vsel %vm1951, %v1947, inf
      %1953 = vmin.xlane.f32.xlu0 %v1952
      %v1954 = vpop.xlane.xlu0 %1953
      %v1955 = vcvt.f32.s32 %v1954
      %v1956 = vcvt.f32.s32 %v1950
      %v1957 = vshll.u32 %v1956, 16
      %v1958 = vadd.s32 %v1957, %v1955
      %v1959 = vrot.slane %v1958, 4
      %vm1960 = vcmp.lt.s32.totalorder %v1958, %v1959
      %v1961 = vsel %vm1960, %v1958, %v1959
      %v1962 = vrot.slane %v1961, 2
      %vm1963 = vcmp.lt.s32.totalorder %v1961, %v1962
      %v1964 = vsel %vm1963, %v1961, %v1962
      %v1965 = vrot.slane %v1964, 1
      %vm1966 = vcmp.lt.s32.totalorder %v1964, %v1965
      %v1967 = vsel %vm1966, %v1964, %v1965
      %s1968 = vtos %v1967
      %s1969 = scalar_lea.vmem [#allocation7], %s1968
      %v1970 = vld [vmem:[%s1969] sm:$0x1]
      %v1971 = vtanh.pop %v1941
      %v1972 = vmul.f32 %v1970, %v1971
      %v1973 = vstv %s1968
      %vm1974 = vcmp.eq.s32.totalorder %v625, %v1973
      %v1975 = vsel %vm1974, -inf, %v1938
      %v1976 = vsel %vm668, %v1975, -inf
      %1977 = vmax.xlane.f32.xlu0 %v1976
      %v1978 = vpop.xlane.xlu0 %1977
      %vm1979 = vcmp.eq.f32.partialorder %v1975, %v1978
      %v1980 = vsel %vm1979, %v625, 16
      %v1981 = vsel %vm668, %v1980, 2147483647
      %v1982 = vand.u32 %v1981, 65535
      %v1983 = vshra.s32 %v1981, 16
      %v1984 = vcvt.s32.f32 %v1982
      %v1985 = vcvt.s32.f32 %v1983
      %1986 = vmin.xlane.f32.xlu0 %v1985
      %v1987 = vpop.xlane.xlu0 %1986
      %vm1988 = vcmp.eq.f32.partialorder %v1985, %v1987
      %v1989 = vsel %vm1988, %v1984, inf
      %1990 = vmin.xlane.f32.xlu0 %v1989
      %v1991 = vpop.xlane.xlu0 %1990
      %v1992 = vcvt.f32.s32 %v1991
      %v1993 = vcvt.f32.s32 %v1987
      %v1994 = vshll.u32 %v1993, 16
      %v1995 = vadd.s32 %v1994, %v1992
      %v1996 = vrot.slane %v1995, 4
      %vm1997 = vcmp.lt.s32.totalorder %v1995, %v1996
      %v1998 = vsel %vm1997, %v1995, %v1996
      %v1999 = vrot.slane %v1998, 2
      %vm2000 = vcmp.lt.s32.totalorder %v1998, %v1999
      %v2001 = vsel %vm2000, %v1998, %v1999
      %v2002 = vrot.slane %v2001, 1
      %vm2003 = vcmp.lt.s32.totalorder %v2001, %v2002
      %v2004 = vsel %vm2003, %v2001, %v2002
      %s2005 = vtos %v2004
      %s2006 = scalar_lea.vmem [#allocation7], %s2005
      %v2007 = vld [vmem:[%s2006] sm:$0x1]
      %v2008 = vtanh.pop %v1978
      %v2009 = vmul.f32 %v2007, %v2008
      %v2010 = vstv %s2005
      %vm2011 = vcmp.eq.s32.totalorder %v625, %v2010
      %v2012 = vsel %vm2011, -inf, %v1975
      %v2013 = vsel %vm668, %v2012, -inf
      %2014 = vmax.xlane.f32.xlu0 %v2013
      %v2015 = vpop.xlane.xlu0 %2014
      %vm2016 = vcmp.eq.f32.partialorder %v2012, %v2015
      %v2017 = vsel %vm2016, %v625, 16
      %v2018 = vsel %vm668, %v2017, 2147483647
      %v2019 = vand.u32 %v2018, 65535
      %v2020 = vshra.s32 %v2018, 16
      %v2021 = vcvt.s32.f32 %v2019
      %v2022 = vcvt.s32.f32 %v2020
      %2023 = vmin.xlane.f32.xlu0 %v2022
      %v2024 = vpop.xlane.xlu0 %2023
      %vm2025 = vcmp.eq.f32.partialorder %v2022, %v2024
      %v2026 = vsel %vm2025, %v2021, inf
      %2027 = vmin.xlane.f32.xlu0 %v2026
      %v2028 = vpop.xlane.xlu0 %2027
      %v2029 = vcvt.f32.s32 %v2028
      %v2030 = vcvt.f32.s32 %v2024
      %v2031 = vshll.u32 %v2030, 16
      %v2032 = vadd.s32 %v2031, %v2029
      %v2033 = vrot.slane %v2032, 4
      %vm2034 = vcmp.lt.s32.totalorder %v2032, %v2033
      %v2035 = vsel %vm2034, %v2032, %v2033
      %v2036 = vrot.slane %v2035, 2
      %vm2037 = vcmp.lt.s32.totalorder %v2035, %v2036
      %v2038 = vsel %vm2037, %v2035, %v2036
      %v2039 = vrot.slane %v2038, 1
      %vm2040 = vcmp.lt.s32.totalorder %v2038, %v2039
      %v2041 = vsel %vm2040, %v2038, %v2039
      %s2042 = vtos %v2041
      %s2043 = scalar_lea.vmem [#allocation7], %s2042
      %v2044 = vld [vmem:[%s2043] sm:$0x1]
      %v2045 = vtanh.pop %v2015
      %v2046 = vmul.f32 %v2044, %v2045
      %v2047 = vstv %s2042
      %vm2048 = vcmp.eq.s32.totalorder %v625, %v2047
      %v2049 = vsel %vm2048, -inf, %v2012
      %v2050 = vsel %vm668, %v2049, -inf
      %2051 = vmax.xlane.f32.xlu0 %v2050
      %v2052 = vpop.xlane.xlu0 %2051
      %vm2053 = vcmp.eq.f32.partialorder %v2049, %v2052
      %v2054 = vsel %vm2053, %v625, 16
      %v2055 = vsel %vm668, %v2054, 2147483647
      %v2056 = vand.u32 %v2055, 65535
      %v2057 = vshra.s32 %v2055, 16
      %v2058 = vcvt.s32.f32 %v2056
      %v2059 = vcvt.s32.f32 %v2057
      %2060 = vmin.xlane.f32.xlu0 %v2059
      %v2061 = vpop.xlane.xlu0 %2060
      %vm2062 = vcmp.eq.f32.partialorder %v2059, %v2061
      %v2063 = vsel %vm2062, %v2058, inf
      %2064 = vmin.xlane.f32.xlu0 %v2063
      %v2065 = vpop.xlane.xlu0 %2064
      %v2066 = vcvt.f32.s32 %v2065
      %v2067 = vcvt.f32.s32 %v2061
      %v2068 = vshll.u32 %v2067, 16
      %v2069 = vadd.s32 %v2068, %v2066
      %v2070 = vrot.slane %v2069, 4
      %vm2071 = vcmp.lt.s32.totalorder %v2069, %v2070
      %v2072 = vsel %vm2071, %v2069, %v2070
      %v2073 = vrot.slane %v2072, 2
      %vm2074 = vcmp.lt.s32.totalorder %v2072, %v2073
      %v2075 = vsel %vm2074, %v2072, %v2073
      %v2076 = vrot.slane %v2075, 1
      %vm2077 = vcmp.lt.s32.totalorder %v2075, %v2076
      %v2078 = vsel %vm2077, %v2075, %v2076
      %s2079 = vtos %v2078
      %s2080 = scalar_lea.vmem [#allocation7], %s2079
      %v2081 = vld [vmem:[%s2080] sm:$0x1]
      %v2082 = vtanh.pop %v2052
      %v2083 = vmul.f32 %v2081, %v2082
      %v2084 = vstv %s2079
      %vm2085 = vcmp.eq.s32.totalorder %v625, %v2084
      %v2086 = vsel %vm2085, -inf, %v2049
      %v2087 = vsel %vm668, %v2086, -inf
      %2088 = vmax.xlane.f32.xlu0 %v2087
      %v2089 = vpop.xlane.xlu0 %2088
      %vm2090 = vcmp.eq.f32.partialorder %v2086, %v2089
      %v2091 = vsel %vm2090, %v625, 16
      %v2092 = vsel %vm668, %v2091, 2147483647
      %v2093 = vand.u32 %v2092, 65535
      %v2094 = vshra.s32 %v2092, 16
      %v2095 = vcvt.s32.f32 %v2093
      %v2096 = vcvt.s32.f32 %v2094
      %2097 = vmin.xlane.f32.xlu0 %v2096
      %v2098 = vpop.xlane.xlu0 %2097
      %vm2099 = vcmp.eq.f32.partialorder %v2096, %v2098
      %v2100 = vsel %vm2099, %v2095, inf
      %2101 = vmin.xlane.f32.xlu0 %v2100
      %v2102 = vpop.xlane.xlu0 %2101
      %v2103 = vcvt.f32.s32 %v2102
      %v2104 = vcvt.f32.s32 %v2098
      %v2105 = vshll.u32 %v2104, 16
      %v2106 = vadd.s32 %v2105, %v2103
      %v2107 = vrot.slane %v2106, 4
      %vm2108 = vcmp.lt.s32.totalorder %v2106, %v2107
      %v2109 = vsel %vm2108, %v2106, %v2107
      %v2110 = vrot.slane %v2109, 2
      %vm2111 = vcmp.lt.s32.totalorder %v2109, %v2110
      %v2112 = vsel %vm2111, %v2109, %v2110
      %v2113 = vrot.slane %v2112, 1
      %vm2114 = vcmp.lt.s32.totalorder %v2112, %v2113
      %v2115 = vsel %vm2114, %v2112, %v2113
      %s2116 = vtos %v2115
      %s2117 = scalar_lea.vmem [#allocation7], %s2116
      %v2118 = vld [vmem:[%s2117] sm:$0x1]
      %v2119 = vtanh.pop %v2089
      %v2120 = vmul.f32 %v2118, %v2119
      %v2121 = vstv %s2116
      %vm2122 = vcmp.eq.s32.totalorder %v625, %v2121
      %v2123 = vsel %vm2122, -inf, %v2086
      %v2124 = vsel %vm668, %v2123, -inf
      %2125 = vmax.xlane.f32.xlu0 %v2124
      %v2126 = vpop.xlane.xlu0 %2125
      %vm2127 = vcmp.eq.f32.partialorder %v2123, %v2126
      %v2128 = vsel %vm2127, %v625, 16
      %v2129 = vsel %vm668, %v2128, 2147483647
      %v2130 = vand.u32 %v2129, 65535
      %v2131 = vshra.s32 %v2129, 16
      %v2132 = vcvt.s32.f32 %v2130
      %v2133 = vcvt.s32.f32 %v2131
      %2134 = vmin.xlane.f32.xlu0 %v2133
      %v2135 = vpop.xlane.xlu0 %2134
      %vm2136 = vcmp.eq.f32.partialorder %v2133, %v2135
      %v2137 = vsel %vm2136, %v2132, inf
      %2138 = vmin.xlane.f32.xlu0 %v2137
      %v2139 = vpop.xlane.xlu0 %2138
      %v2140 = vcvt.f32.s32 %v2139
      %v2141 = vcvt.f32.s32 %v2135
      %v2142 = vshll.u32 %v2141, 16
      %v2143 = vadd.s32 %v2142, %v2140
      %v2144 = vrot.slane %v2143, 4
      %vm2145 = vcmp.lt.s32.totalorder %v2143, %v2144
      %v2146 = vsel %vm2145, %v2143, %v2144
      %v2147 = vrot.slane %v2146, 2
      %vm2148 = vcmp.lt.s32.totalorder %v2146, %v2147
      %v2149 = vsel %vm2148, %v2146, %v2147
      %v2150 = vrot.slane %v2149, 1
      %vm2151 = vcmp.lt.s32.totalorder %v2149, %v2150
      %v2152 = vsel %vm2151, %v2149, %v2150
      %s2153 = vtos %v2152
      %s2154 = scalar_lea.vmem [#allocation7], %s2153
      %v2155 = vld [vmem:[%s2154] sm:$0x1]
      %v2156 = vtanh.pop %v2126
      %v2157 = vmul.f32 %v2155, %v2156
      %v2158 = vstv %s2153
      %vm2159 = vcmp.eq.s32.totalorder %v625, %v2158
      %v2160 = vsel %vm2159, -inf, %v2123
      %v2161 = vsel %vm668, %v2160, -inf
      %2162 = vmax.xlane.f32.xlu0 %v2161
      %v2163 = vpop.xlane.xlu0 %2162
      %vm2164 = vcmp.eq.f32.partialorder %v2160, %v2163
      %v2165 = vsel %vm2164, %v625, 16
      %v2166 = vsel %vm668, %v2165, 2147483647
      %v2167 = vand.u32 %v2166, 65535
      %v2168 = vshra.s32 %v2166, 16
      %v2169 = vcvt.s32.f32 %v2167
      %v2170 = vcvt.s32.f32 %v2168
      %2171 = vmin.xlane.f32.xlu0 %v2170
      %v2172 = vpop.xlane.xlu0 %2171
      %vm2173 = vcmp.eq.f32.partialorder %v2170, %v2172
      %v2174 = vsel %vm2173, %v2169, inf
      %2175 = vmin.xlane.f32.xlu0 %v2174
      %v2176 = vpop.xlane.xlu0 %2175
      %v2177 = vcvt.f32.s32 %v2176
      %v2178 = vcvt.f32.s32 %v2172
      %v2179 = vshll.u32 %v2178, 16
      %v2180 = vadd.s32 %v2179, %v2177
      %v2181 = vrot.slane %v2180, 4
      %vm2182 = vcmp.lt.s32.totalorder %v2180, %v2181
      %v2183 = vsel %vm2182, %v2180, %v2181
      %v2184 = vrot.slane %v2183, 2
      %vm2185 = vcmp.lt.s32.totalorder %v2183, %v2184
      %v2186 = vsel %vm2185, %v2183, %v2184
      %v2187 = vrot.slane %v2186, 1
      %vm2188 = vcmp.lt.s32.totalorder %v2186, %v2187
      %v2189 = vsel %vm2188, %v2186, %v2187
      %s2190 = vtos %v2189
      %s2191 = scalar_lea.vmem [#allocation7], %s2190
      %v2192 = vld [vmem:[%s2191] sm:$0x1]
      %v2193 = vtanh.pop %v2163
      %v2194 = vmul.f32 %v2192, %v2193
      %v2195 = vstv %s2190
      %vm2196 = vcmp.eq.s32.totalorder %v625, %v2195
      %v2197 = vsel %vm2196, -inf, %v2160
      %v2198 = vsel %vm668, %v2197, -inf
      %2199 = vmax.xlane.f32.xlu0 %v2198
      %v2200 = vpop.xlane.xlu0 %2199
      %vm2201 = vcmp.eq.f32.partialorder %v2197, %v2200
      %v2202 = vsel %vm2201, %v625, 16
      %v2203 = vsel %vm668, %v2202, 2147483647
      %v2204 = vand.u32 %v2203, 65535
      %v2205 = vshra.s32 %v2203, 16
      %v2206 = vcvt.s32.f32 %v2204
      %v2207 = vcvt.s32.f32 %v2205
      %2208 = vmin.xlane.f32.xlu0 %v2207
      %v2209 = vpop.xlane.xlu0 %2208
      %vm2210 = vcmp.eq.f32.partialorder %v2207, %v2209
      %v2211 = vsel %vm2210, %v2206, inf
      %2212 = vmin.xlane.f32.xlu0 %v2211
      %v2213 = vpop.xlane.xlu0 %2212
      %v2214 = vcvt.f32.s32 %v2213
      %v2215 = vcvt.f32.s32 %v2209
      %v2216 = vshll.u32 %v2215, 16
      %v2217 = vadd.s32 %v2216, %v2214
      %v2218 = vrot.slane %v2217, 4
      %vm2219 = vcmp.lt.s32.totalorder %v2217, %v2218
      %v2220 = vsel %vm2219, %v2217, %v2218
      %v2221 = vrot.slane %v2220, 2
      %vm2222 = vcmp.lt.s32.totalorder %v2220, %v2221
      %v2223 = vsel %vm2222, %v2220, %v2221
      %v2224 = vrot.slane %v2223, 1
      %vm2225 = vcmp.lt.s32.totalorder %v2223, %v2224
      %v2226 = vsel %vm2225, %v2223, %v2224
      %s2227 = vtos %v2226
      %s2228 = scalar_lea.vmem [#allocation7], %s2227
      %v2229 = vld [vmem:[%s2228] sm:$0x1]
      %v2230 = vtanh.pop %v2200
      %v2231 = vmul.f32 %v2229, %v2230
      %v2233 = vrot.slane %v2009, 7
      %v2236 = vrot.slane %v2046, 6
      %v2239 = vrot.slane %v2083, 5
      %v2242 = vrot.slane %v2120, 4
      %v2245 = vrot.slane %v2157, 3
      %v2248 = vrot.slane %v2194, 2
      %v2251 = vrot.slane %v2231, 1
      %v2253 = vsel %vm1037, %v1972, %v2233
      %v2254 = vsel %vm1039, %v2253, %v2236
      %v2255 = vsel %vm1041, %v2254, %v2239
      %v2256 = vsel %vm1043, %v2255, %v2242
      %v2257 = vsel %vm1045, %v2256, %v2245
      %v2258 = vsel %vm1047, %v2257, %v2248
      %v2259 = vsel %vm1049, %v2258, %v2251
      %v2260 = vld [vmem:[#allocation4] sm:$0xff]
      %v2261 = vld [vmem:[%s15] sm:$0xff]
      %v2262 = vld [vmem:[%s15 + $0x8] sm:$0xff]
      %v2263 = vld [vmem:[%s15 + $0x10] sm:$0xff]
      %v2264 = vld [vmem:[%s16] sm:$0xff]
      %v2265 = vld [vmem:[%s16 + $0x8] sm:$0xff]
      %v2266 = vld [vmem:[%s16 + $0x10] sm:$0xff]
      %v2267 = vld [vmem:[%s17] sm:$0xff]
      %v2268 = vld [vmem:[%s17 + $0x8] sm:$0xff]
      %v2269 = vld [vmem:[%s17 + $0x10] sm:$0xff]
      %v2271 = vsel %vm1297, %v2261, 0
      %v2274 = vsel %vm1297, %v2262, 0
      %v2277 = vsel %vm1297, %v2263, 0
      %v2280 = vsel %vm1297, %v2259, 0
      %2282 = vmatpush.xpose.msra.mxu0 0.0
      %2283 = vmatpush.xpose.msra.mxu0 0.0
      %2284 = vmatpush.xpose.msra.mxu0 0.0
      %2285 = vmatpush.xpose.msra.mxu0 0.0
      %2286 = vmatpush.xpose.msra.mxu0 0.0
      %2287 = vmatpush.xpose.msra.mxu0 0.0
      %2288 = vmatpush.xpose.msra.mxu0 0.0
      %2289 = vmatpush.xpose.msra.mxu0 0.0
      %2290 = vmatpush.xpose.msra.mxu0 0.0
      %2291 = vmatpush.xpose.msra.mxu0 0.0
      %2292 = vmatpush.xpose.msra.mxu0 0.0
      %2293 = vmatpush.xpose.msra.mxu0 0.0
      %2294 = vmatpush.xpose.msra.mxu0 0.0
      %2295 = vmatpush.xpose.msra.mxu0 0.0
      %2296 = vmatpush.xpose.msra.mxu0 0.0
      %2297 = vmatpush.xpose.msra.mxu0 %v2280
      %2298 = vmatmul.f32.gmra.mxu0 %v2271
      %v2299 = vpop.f32.mrf.mxu0
      %v2300 = vadd.f32 0.0, %v2299
      %2301 = vmatmul.f32.gmra.mxu0 %v2274
      %v2302 = vpop.f32.mrf.mxu0
      %v2303 = vadd.f32 0.0, %v2302
      %2304 = vmatmul.f32.gmra.mxu0 %v2277
      %v2305 = vpop.f32.mrf.mxu0
      %v2306 = vadd.f32 0.0, %v2305
      %2307 = vdwg.mxu0
      %v2309 = vsel %vm1297, %v2264, 0
      %v2312 = vsel %vm1297, %v2265, 0
      %2314 = vmatpush.msra.mxu0 0.0
      %2315 = vmatpush.msra.mxu0 0.0
      %2316 = vmatpush.msra.mxu0 0.0
      %2317 = vmatpush.msra.mxu0 0.0
      %2318 = vmatpush.msra.mxu0 0.0
      %2319 = vmatpush.msra.mxu0 0.0
      %2320 = vmatpush.msra.mxu0 0.0
      %2321 = vmatpush.msra.mxu0 0.0
      %2322 = vmatpush.msra.mxu0 0.0
      %2323 = vmatpush.msra.mxu0 0.0
      %2324 = vmatpush.msra.mxu0 0.0
      %2325 = vmatpush.msra.mxu0 0.0
      %2326 = vmatpush.msra.mxu0 0.0
      %2327 = vmatpush.msra.mxu0 0.0
      %2328 = vmatpush.msra.mxu0 0.0
      %2329 = vmatpush.msra.mxu0 %v2260
      %2330 = vmatmul.f32.gmra.mxu0 %v2309
      %v2331 = vpop.f32.mrf.mxu0
      %v2332 = vadd.f32 0.0, %v2331
      %2333 = vmatmul.f32.gmra.mxu0 %v2312
      %v2334 = vpop.f32.mrf.mxu0
      %v2335 = vadd.f32 0.0, %v2334
      %2336 = vdwg.mxu0
      %v2337 = vadd.f32 %v2300, %v2332
      %v2338 = vadd.f32 %v2337, %v2267
      %v2339 = vxor.u32 %v2338, 2147483648
      %v2340 = vmul.f32 %v2339, 1.442695
      %v2341 = vpow.pop %v2340
      %v2342 = vadd.f32 %v2341, 1.0
      %v2343 = vrcp.pop %v2342
      %v2344 = vmul.f32 %v2342, %v2343
      %v2345 = vsub.f32 1.0, %v2344
      %v2346 = vmul.f32 %v2343, %v2345
      %v2347 = vadd.f32 %v2343, %v2346
      %vm2348 = vweird.f32 %v2342
      %vm2349 = vweird.f32 %v2343
      %vm2350 = vmor %vm2348, %vm2349
      %v2351 = vsel %vm2350, %v2343, %v2347
      %v2352 = vand.u32 2147483647, %v2342
      %vm2353 = vcmp.eq.f32.partialorder %v2352, 8.507059e+37
      %v2354 = vand.u32 %v2342, 2147483648
      %v2355 = vor.u32 1.1754944e-38, %v2354
      %v2356 = vsel %vm2353, %v2355, %v2351
      %v2357 = vmul.f32 1.0, %v2356
      %v2358 = vadd.f32 %v2303, %v2335
      %v2359 = vadd.f32 %v2358, %v2268
      %v2360 = vxor.u32 %v2359, 2147483648
      %v2361 = vmul.f32 %v2360, 1.442695
      %v2362 = vpow.pop %v2361
      %v2363 = vadd.f32 %v2362, 1.0
      %v2364 = vrcp.pop %v2363
      %v2365 = vmul.f32 %v2363, %v2364
      %v2366 = vsub.f32 1.0, %v2365
      %v2367 = vmul.f32 %v2364, %v2366
      %v2368 = vadd.f32 %v2364, %v2367
      %vm2369 = vweird.f32 %v2363
      %vm2370 = vweird.f32 %v2364
      %vm2371 = vmor %vm2369, %vm2370
      %v2372 = vsel %vm2371, %v2364, %v2368
      %v2373 = vand.u32 2147483647, %v2363
      %vm2374 = vcmp.eq.f32.partialorder %v2373, 8.507059e+37
      %v2375 = vand.u32 %v2363, 2147483648
      %v2376 = vor.u32 1.1754944e-38, %v2375
      %v2377 = vsel %vm2374, %v2376, %v2372
      %v2378 = vmul.f32 1.0, %v2377
      %v2379 = vmul.f32 %v2378, %v2260
      %v2381 = vsel %vm1297, %v2266, 0
      %2383 = vmatpush.msra.mxu0 0.0
      %2384 = vmatpush.msra.mxu0 0.0
      %2385 = vmatpush.msra.mxu0 0.0
      %2386 = vmatpush.msra.mxu0 0.0
      %2387 = vmatpush.msra.mxu0 0.0
      %2388 = vmatpush.msra.mxu0 0.0
      %2389 = vmatpush.msra.mxu0 0.0
      %2390 = vmatpush.msra.mxu0 0.0
      %2391 = vmatpush.msra.mxu0 0.0
      %2392 = vmatpush.msra.mxu0 0.0
      %2393 = vmatpush.msra.mxu0 0.0
      %2394 = vmatpush.msra.mxu0 0.0
      %2395 = vmatpush.msra.mxu0 0.0
      %2396 = vmatpush.msra.mxu0 0.0
      %2397 = vmatpush.msra.mxu0 0.0
      %2398 = vmatpush.msra.mxu0 %v2379
      %2399 = vmatmul.f32.gmra.mxu0 %v2381
      %v2400 = vpop.f32.mrf.mxu0
      %v2401 = vadd.f32 0.0, %v2400
      %2402 = vdwg.mxu0
      %v2403 = vadd.f32 %v2306, %v2401
      %v2404 = vadd.f32 %v2403, %v2269
      %v2405 = vtanh.pop %v2404
      %v2406 = vsub.f32 1.0, %v2357
      %v2407 = vmul.f32 %v2406, %v2260
      %v2408 = vmul.f32 %v2357, %v2405
      %v2409 = vadd.f32 %v2407, %v2408
      %2410 = vst.msk [vmem:[#allocation4] sm:$0xff] %vm1297, %v2409
      %2411 = vmatpush.msra.mxu0 0.0
      %2412 = vmatpush.msra.mxu0 0.0
      %2413 = vmatpush.msra.mxu0 0.0
      %2414 = vmatpush.msra.mxu0 0.0
      %2415 = vmatpush.msra.mxu0 0.0
      %2416 = vmatpush.msra.mxu0 0.0
      %2417 = vmatpush.msra.mxu0 0.0
      %2418 = vmatpush.msra.mxu0 0.0
      %2419 = vmatpush.msra.mxu0 0.0
      %2420 = vmatpush.msra.mxu0 0.0
      %2421 = vmatpush.msra.mxu0 0.0
      %2422 = vmatpush.msra.mxu0 0.0
      %2423 = vmatpush.msra.mxu0 0.0
      %2424 = vmatpush.msra.mxu0 0.0
      %2425 = vmatpush.msra.mxu0 0.0
      %2426 = vmatpush.msra.mxu0 %v2409
      %2427 = vmatmul.f32.gmra.mxu0 %v1911
      %v2428 = vpop.f32.mrf.mxu0
      %v2429 = vadd.f32 0.0, %v2428
      %2430 = vmatmul.f32.gmra.mxu0 %v1914
      %v2431 = vpop.f32.mrf.mxu0
      %v2432 = vadd.f32 0.0, %v2431
      %2433 = vdwg.mxu0
      %v2434 = vmax.f32 %v2429, 0.0
      %v2435 = vmax.f32 %v2432, 0.0
      %2436 = vst.msk [vmem:[%s609] sm:$0xff] %vm1297, %v2434
      %2437 = vst.msk [vmem:[%s609 + $0x8] sm:$0xff] %vm1297, %v2435
      %p2438 = scmp.lt.s32.totalorder %s29, 2
      %s2439 = scalar_select %p2438, %s29, 2
      %s2440 = smul.addr %s2439, 2
      %s2441 = smul.addr %s2440, 8
      %s2442 = scalar_lea.vmem %s18, %s2441
      // Predicated region
      $region97: #{grcu_gin_forward.1} parent=91 // pred_check
        %p2443 = pneg %p440
      $region98: #{grcu_gin_forward.1} parent=91 // pred_check_branch
        %2445 = sbr.rel (%p2443) target = $region100
      $region99: #{grcu_gin_forward.1} parent=91 // pred_region
        _
      $region100: #{grcu_gin_forward.1} parent=91 // pred_fallthru
        _
    $region92: #{grcu_gin_forward.1} parent=5 // pred_fallthru
      _
    %p2446 = scmp.le.s32.totalorder 2, %s24
    // Predicated region
    $region101: #{grcu_gin_forward.1} parent=5 // pred_check
      %p2447 = pneg %p2446
    $region102: #{grcu_gin_forward.1} parent=5 // pred_check_branch
      %2449 = sbr.rel (%p2447) target = $region104
    $region103: #{grcu_gin_forward.1} parent=5 // pred_region
      %s2450 = ssub.s32 %s24, 2
      // Predicated region
      $region105: #{grcu_gin_forward.1} parent=103 // pred_check
        %p2451 = pneg %p446
      $region106: #{grcu_gin_forward.1} parent=103 // pred_check_branch
        %2453 = sbr.rel (%p2451) target = $region108
      $region107: #{grcu_gin_forward.1} parent=103 // pred_region
        %p2454 = scmp.lt.s32.totalorder %s30, 2
        %s2455 = scalar_select %p2454, %s30, 2
        %s2456 = smul.addr %s2455, 2
        %s2457 = smul.addr %s2456, 8
        %s2458 = scalar_lea.vmem %s18, %s2457
      $region108: #{grcu_gin_forward.1} parent=103 // pred_fallthru
        _
    $region104: #{grcu_gin_forward.1} parent=5 // pred_fallthru
      _
  $region6: #{grcu_gin_forward.1} parent=0 // loop_footer
    %s28 = sadd.s32 1, %s24
  $region7: #{grcu_gin_forward.1} parent=0 // loop_footer_branch
    %23 = sbr.rel target = $region3
  $region8: #{grcu_gin_forward.1} parent=0 // loop_exit
    _

</llo_original>
